<compile_context>
chip_gen: v6e
topology: v6e:2x2x1
jax: 0.10.0
libtpu: 0.0.40
codegen_flags: <defaults>
</compile_context>

<pallas_src>
import functools

import jax
import jax.numpy as jnp
from jax import lax
from jax.experimental import pallas as pl
from jax.experimental.pallas import tpu as pltpu


def _vmem_spec():
    return pl.BlockSpec(memory_space=pltpu.MemorySpace.VMEM)


# ---------------------------------------------------------------------------
# One HypergraphConv layer (attention, node mode, concat, negative_slope=0.0),
# expressed on in-VMEM values; head results are written into `scratch`.
# ---------------------------------------------------------------------------
def _conv_layer(x_in, e_in, Hm, incident, B, D, n_nodes,
                lin, attx_bd, atte_rows, bias, heads, F, scratch):
    # Single MXU projection for node + hyperedge features (weight stationary).
    xe = jnp.concatenate([x_in, e_in], axis=0)                          # (N+M, Cin)
    xe_lin = jnp.dot(xe, lin, preferred_element_type=jnp.float32)       # (N+M, H*F)
    x_lin = xe_lin[:n_nodes]                                            # (N, H*F)
    e_lin = xe_lin[n_nodes:]                                            # (M, H*F)

    # All-heads attention logits in two dots (block-diagonal att matrices).
    a_node = jnp.dot(x_lin, attx_bd, preferred_element_type=jnp.float32)   # (N, H)
    # (H, M) directly via a trans_b-style contraction -> no per-head relayout.
    a_edge_t = lax.dot_general(atte_rows, e_lin, (((1,), (1,)), ((), ())),
                               preferred_element_type=jnp.float32)         # (H, M)

    for h in range(heads):
        xh = x_lin[:, h * F:(h + 1) * F]                                   # (N, F)
        # leaky_relu with negative_slope == 0.0  ->  relu
        logits = jnp.maximum(a_node[:, h:h + 1] + a_edge_t[h:h + 1, :], 0.0)  # (N, M)

        # segment softmax over the incident nodes of each hyperedge (axis 0)
        masked = jnp.where(incident, logits, -1e30)
        mx = jnp.max(masked, axis=0, keepdims=True)                        # (1, M)
        ex = jnp.where(incident, jnp.exp(masked - mx), 0.0)                # (N, M)
        den = jnp.sum(ex, axis=0, keepdims=True)                           # (1, M)
        alpha = ex * jnp.where(den > 0, 1.0 / den, 0.0)                    # (N, M)
        # dropout(alpha) is identity in eval mode

        # propagate 1 (node -> hyperedge) with B folded into alpha (lane bcast):
        #   edge_out[e] = B[e] * sum_n alpha[n,e] * x'[n]
        edge_out = lax.dot_general(alpha * B, xh, (((0,), (0,)), ((), ())),
                                   preferred_element_type=jnp.float32)     # (M, F)

        # propagate 2 (hyperedge -> node): out[n] = D[n] * sum_e alpha[n,e]*eo[e]
        node_out = jnp.dot(alpha, edge_out,
                           preferred_element_type=jnp.float32) * D         # (N, F)

        # write head slice straight into the VMEM scratch (no concat), bias fused
        scratch[:, h * F:(h + 1) * F] = node_out + bias[:, h * F:(h + 1) * F]

    return scratch[:, :heads * F]


# ---------------------------------------------------------------------------
# Fully fused forward kernel: 3x (Linear on edge features + HypergraphConv)
# followed by the MLP head. Everything resident in VMEM.
# ---------------------------------------------------------------------------
def _fused_forward_kernel(*refs, heads, conv_out_dims, n_mlp_hidden):
    it = iter(refs)
    x_ref = next(it)
    h_ref = next(it)
    w_ref = next(it)
    ef_ref = next(it)

    stages = []
    for _ in range(3):
        # (linear_w, linear_b, conv_lin, conv_attx_bd, conv_atte_rows, conv_bias)
        stages.append(tuple(next(it) for _ in range(6)))
    mlp = [(next(it), next(it)) for _ in range(n_mlp_hidden + 1)]
    o_ref = next(it)
    scratch = next(it)

    n_nodes = x_ref.shape[0]
    Hm = h_ref[...]                                       # (N, M) 0/1 incidence
    w_e = w_ref[...]                                      # (1, M)
    incident = Hm > 0

    # Normalisation factors are shared by all three conv layers -> compute once.
    deg_e = jnp.sum(Hm, axis=0, keepdims=True)            # (1, M)
    B = jnp.where(deg_e > 0, 1.0 / deg_e, 0.0)            # (1, M)
    deg_n = jnp.sum(Hm * w_e, axis=1, keepdims=True)      # (N, 1)
    D = jnp.where(deg_n > 0, 1.0 / deg_n, 0.0)            # (N, 1)

    x = x_ref[...]
    ef = ef_ref[...]
    for s in range(3):
        lw, lb, clin, attx_bd, atte_rows, cbias = stages[s]
        # edge-feature Linear preceding the conv (linear1/2/3 in the reference)
        ef = jnp.dot(ef, lw[...], preferred_element_type=jnp.float32) + lb[...]
        x = _conv_layer(x, ef, Hm, incident, B, D, n_nodes,
                        clin[...], attx_bd[...], atte_rows[...], cbias[...],
                        heads[s], conv_out_dims[s], scratch)

    # MLP head (dropout identity in eval mode)
    for i, (mw, mb) in enumerate(mlp):
        x = jnp.dot(x, mw[...], preferred_element_type=jnp.float32) + mb[...]
        if i < n_mlp_hidden:
            x = jnp.maximum(x, 0.0)

    o_ref[...] = x.astype(o_ref.dtype)


# ---------------------------------------------------------------------------
# Wrapper: flattens parameters, builds block-diagonal attention matrices, and
# launches the single fused pallas_call.
# ---------------------------------------------------------------------------
def hypergraph_mlp_net(params, x, Hm, hyperedge_weight, hyperedge_features,
                       *, hidden, out_ch, heads):
    n_nodes = x.shape[0]
    conv_out_dims = (hidden, hidden, out_ch)

    def att_block_matrices(att, F):
        # att: (H, 2F) -> attx_bd (H*F, H) column-block-diag, atte_rows (H, H*F)
        H = att.shape[0]
        eye = jnp.eye(H, dtype=att.dtype)
        attx = att[:, :F]
        atte = att[:, F:]
        attx_bd = (attx[:, :, None] * eye[:, None, :]).reshape(H * F, H)
        atte_rows = (eye[:, :, None] * atte[None, :, :]).reshape(H, H * F)
        return attx_bd, atte_rows

    inputs = [x, Hm, hyperedge_weight.reshape(1, -1), hyperedge_features]
    for s, (conv_name, lin_name) in enumerate(
            [("conv1", "linear1"), ("conv2", "linear2"), ("conv3", "linear3")]):
        lp = params[lin_name]
        cp = params[conv_name]
        attx_bd, atte_rows = att_block_matrices(cp["att"], conv_out_dims[s])
        inputs += [lp["w"], lp["b"].reshape(1, -1),
                   cp["lin"], attx_bd, atte_rows, cp["bias"].reshape(1, -1)]
    for layer in params["mlp_hidden"]:
        inputs += [layer["w"], layer["b"].reshape(1, -1)]
    inputs += [params["mlp_out"]["w"], params["mlp_out"]["b"].reshape(1, -1)]

    output_size = params["mlp_out"]["w"].shape[1]
    d_max = max(heads[s] * conv_out_dims[s] for s in range(3))
    n_mlp_hidden = len(params["mlp_hidden"])

    kernel = functools.partial(
        _fused_forward_kernel,
        heads=tuple(int(h) for h in heads),
        conv_out_dims=tuple(int(d) for d in conv_out_dims),
        n_mlp_hidden=n_mlp_hidden,
    )
    return pl.pallas_call(
        kernel,
        out_shape=jax.ShapeDtypeStruct((n_nodes, output_size), jnp.float32),
        in_specs=[_vmem_spec()] * len(inputs),
        out_specs=_vmem_spec(),
        scratch_shapes=[pltpu.VMEM((n_nodes, d_max), jnp.float32)],
    )(*inputs)


# ---------------------------------------------------------------------------
# Deterministic parameter construction (shapes mirror the PyTorch __init__).
# ---------------------------------------------------------------------------
def _dense(key, shape, scale=0.1):
    return (scale * jax.random.normal(key, shape)).astype(jnp.float32)


def init_params(key, in_ch, out_ch, hidden, edge_feat_dim, heads,
                mlp_hidden_sizes, output_size):
    keys = jax.random.split(key, 32)
    k = iter(keys)

    def conv_params(cin, cout, h):
        return {
            "lin": _dense(next(k), (cin, h * cout)),      # Linear(cin, h*cout, bias=False)
            "att": _dense(next(k), (h, 2 * cout)),        # (1, heads, 2*out) in torch
            "bias": _dense(next(k), (h * cout,)),
        }

    def lin_params(cin, cout):
        return {"w": _dense(next(k), (cin, cout)), "b": _dense(next(k), (cout,))}

    params = {
        "conv1": conv_params(in_ch, hidden, heads[0]),
        "conv2": conv_params(hidden * heads[0], hidden, heads[1]),
        "conv3": conv_params(hidden * heads[1], out_ch, heads[2]),
        "linear1": lin_params(edge_feat_dim, in_ch),
        "linear2": lin_params(in_ch, hidden * heads[0]),
        "linear3": lin_params(hidden * heads[0], hidden * heads[1]),
    }
    mlp_in = out_ch * heads[2]
    mlp_hidden = []
    prev = mlp_in
    for hsz in mlp_hidden_sizes:
        mlp_hidden.append(lin_params(prev, hsz))
        prev = hsz
    params["mlp_hidden"] = mlp_hidden
    params["mlp_out"] = lin_params(prev, output_size)
    return params


if __name__ == "__main__":
    # --- configuration (small, consistent with the module) ---
    num_nodes = 16
    num_edges = 8
    hypergraph_inputs = 8       # in_channels
    hypergraph_out_channels = 8
    hypergraph_hidden = 8
    hyperedge_features_dim = 6
    heads = (2, 2, 2)
    mlp_hidden_sizes = [32, 16]
    output_size = 4

    root = jax.random.PRNGKey(0)
    k_param, k_x, k_ef, k_w = jax.random.split(root, 4)

    params = init_params(k_param, hypergraph_inputs, hypergraph_out_channels,
                         hypergraph_hidden, hyperedge_features_dim, heads,
                         mlp_hidden_sizes, output_size)

    # --- deterministic inputs ---
    x = jax.random.normal(k_x, (num_nodes, hypergraph_inputs), dtype=jnp.float32)
    hyperedge_features = jax.random.normal(
        k_ef, (num_edges, hyperedge_features_dim), dtype=jnp.float32)
    hyperedge_weight = jax.random.uniform(
        k_w, (num_edges,), minval=0.5, maxval=1.5, dtype=jnp.float32)

    # hyperedge_index (2, E): every node belongs to two distinct hyperedges.
    nodes = jnp.arange(num_nodes, dtype=jnp.int32)
    e0 = nodes % num_edges
    e1 = (3 * nodes + 1) % num_edges
    node_idx = jnp.concatenate([nodes, nodes])
    edge_idx = jnp.concatenate([e0, e1])
    hyperedge_index = jnp.stack([node_idx, edge_idx])  # (2, 32)

    # densify into incidence matrix H (num_nodes, num_edges) -- JAX glue
    Hm = jnp.zeros((num_nodes, num_edges), jnp.float32).at[
        hyperedge_index[0], hyperedge_index[1]].set(1.0)

    out = hypergraph_mlp_net(params, x, Hm, hyperedge_weight, hyperedge_features,
                             hidden=hypergraph_hidden,
                             out_ch=hypergraph_out_channels, heads=heads)
    out = jax.block_until_ready(out)
    assert out.shape == (num_nodes, output_size)
    assert bool(jnp.all(jnp.isfinite(out)))
    print("KERNEL_OK")
</pallas_src>

<mosaic_0001>
module attributes {stable_mosaic.version = 11 : i64} {
  func.func @_fused_forward_kernel(%arg0: memref<16x8xf32, #tpu.memory_space<vmem>>, %arg1: memref<16x8xf32, #tpu.memory_space<vmem>>, %arg2: memref<1x8xf32, #tpu.memory_space<vmem>>, %arg3: memref<8x6xf32, #tpu.memory_space<vmem>>, %arg4: memref<6x8xf32, #tpu.memory_space<vmem>>, %arg5: memref<1x8xf32, #tpu.memory_space<vmem>>, %arg6: memref<8x16xf32, #tpu.memory_space<vmem>>, %arg7: memref<16x2xf32, #tpu.memory_space<vmem>>, %arg8: memref<2x16xf32, #tpu.memory_space<vmem>>, %arg9: memref<1x16xf32, #tpu.memory_space<vmem>>, %arg10: memref<8x16xf32, #tpu.memory_space<vmem>>, %arg11: memref<1x16xf32, #tpu.memory_space<vmem>>, %arg12: memref<16x16xf32, #tpu.memory_space<vmem>>, %arg13: memref<16x2xf32, #tpu.memory_space<vmem>>, %arg14: memref<2x16xf32, #tpu.memory_space<vmem>>, %arg15: memref<1x16xf32, #tpu.memory_space<vmem>>, %arg16: memref<16x16xf32, #tpu.memory_space<vmem>>, %arg17: memref<1x16xf32, #tpu.memory_space<vmem>>, %arg18: memref<16x16xf32, #tpu.memory_space<vmem>>, %arg19: memref<16x2xf32, #tpu.memory_space<vmem>>, %arg20: memref<2x16xf32, #tpu.memory_space<vmem>>, %arg21: memref<1x16xf32, #tpu.memory_space<vmem>>, %arg22: memref<16x32xf32, #tpu.memory_space<vmem>>, %arg23: memref<1x32xf32, #tpu.memory_space<vmem>>, %arg24: memref<32x16xf32, #tpu.memory_space<vmem>>, %arg25: memref<1x16xf32, #tpu.memory_space<vmem>>, %arg26: memref<16x4xf32, #tpu.memory_space<vmem>>, %arg27: memref<1x4xf32, #tpu.memory_space<vmem>>, %arg28: memref<16x4xf32, #tpu.memory_space<vmem>>, %arg29: memref<16x16xf32, #tpu.memory_space<vmem>>) attributes {dimension_semantics = [], scalar_prefetch = 0 : i64, scratch_operands = 1 : i64, tpu.core_type = #tpu.core_type<tc>} {
    %c0 = arith.constant 0 : index
    %c0_0 = arith.constant 0 : index
    %0 = vector.load %arg1[%c0, %c0_0] : memref<16x8xf32, #tpu.memory_space<vmem>>, vector<16x8xf32>
    %c0_1 = arith.constant 0 : index
    %c0_2 = arith.constant 0 : index
    %1 = vector.load %arg2[%c0_1, %c0_2] : memref<1x8xf32, #tpu.memory_space<vmem>>, vector<1x8xf32>
    %cst = arith.constant 0.000000e+00 : f32
    %2 = vector.broadcast %cst : f32 to vector<16x8xf32>
    %3 = arith.cmpf ogt, %0, %2 : vector<16x8xf32>
    %cst_3 = arith.constant dense<0.000000e+00> : vector<8xf32>
    %4 = vector.multi_reduction <add>, %0, %cst_3 [0] : vector<16x8xf32> to vector<8xf32>
    %5 = vector.shape_cast %4 : vector<8xf32> to vector<1x8xf32>
    %cst_4 = arith.constant 0.000000e+00 : f32
    %6 = vector.broadcast %cst_4 : f32 to vector<1x8xf32>
    %7 = arith.cmpf ogt, %5, %6 : vector<1x8xf32>
    %cst_5 = arith.constant 1.000000e+00 : f32
    %8 = vector.broadcast %cst_5 : f32 to vector<1x8xf32>
    %9 = arith.divf %8, %5 : vector<1x8xf32>
    %cst_6 = arith.constant 0.000000e+00 : f32
    %10 = vector.broadcast %cst_6 : f32 to vector<1x8xf32>
    %11 = arith.select %7, %9, %10 : vector<1x8xi1>, vector<1x8xf32>
    %12 = vector.broadcast %1 : vector<1x8xf32> to vector<16x8xf32>
    %13 = arith.mulf %0, %12 : vector<16x8xf32>
    %cst_7 = arith.constant dense<0.000000e+00> : vector<16xf32>
    %14 = vector.multi_reduction <add>, %13, %cst_7 [1] : vector<16x8xf32> to vector<16xf32>
    %15 = vector.shape_cast %14 : vector<16xf32> to vector<16x1xf32>
    %cst_8 = arith.constant 0.000000e+00 : f32
    %16 = vector.broadcast %cst_8 : f32 to vector<16x1xf32>
    %17 = arith.cmpf ogt, %15, %16 : vector<16x1xf32>
    %cst_9 = arith.constant 1.000000e+00 : f32
    %18 = vector.broadcast %cst_9 : f32 to vector<16x1xf32>
    %19 = arith.divf %18, %15 : vector<16x1xf32>
    %cst_10 = arith.constant 0.000000e+00 : f32
    %20 = vector.broadcast %cst_10 : f32 to vector<16x1xf32>
    %21 = arith.select %17, %19, %20 : vector<16x1xi1>, vector<16x1xf32>
    %c0_11 = arith.constant 0 : index
    %c0_12 = arith.constant 0 : index
    %22 = vector.load %arg0[%c0_11, %c0_12] : memref<16x8xf32, #tpu.memory_space<vmem>>, vector<16x8xf32>
    %c0_13 = arith.constant 0 : index
    %c0_14 = arith.constant 0 : index
    %23 = vector.load %arg3[%c0_13, %c0_14] : memref<8x6xf32, #tpu.memory_space<vmem>>, vector<8x6xf32>
    %c0_15 = arith.constant 0 : index
    %c0_16 = arith.constant 0 : index
    %24 = vector.load %arg4[%c0_15, %c0_16] : memref<6x8xf32, #tpu.memory_space<vmem>>, vector<6x8xf32>
    %cst_17 = arith.constant dense<0.000000e+00> : vector<8x8xf32>
    %25 = tpu.matmul %23, %24, %cst_17 {dimension_numbers = #tpu.dot_dimension_numbers<[1], [0], [0], [1], [0, 0, 1, 1], [], []>} : vector<8x6xf32>, vector<6x8xf32>, vector<8x8xf32> -> vector<8x8xf32>
    %c0_18 = arith.constant 0 : index
    %c0_19 = arith.constant 0 : index
    %26 = vector.load %arg5[%c0_18, %c0_19] : memref<1x8xf32, #tpu.memory_space<vmem>>, vector<1x8xf32>
    %27 = vector.broadcast %26 : vector<1x8xf32> to vector<8x8xf32>
    %28 = arith.addf %25, %27 : vector<8x8xf32>
    %c0_20 = arith.constant 0 : index
    %c0_21 = arith.constant 0 : index
    %29 = vector.load %arg6[%c0_20, %c0_21] : memref<8x16xf32, #tpu.memory_space<vmem>>, vector<8x16xf32>
    %c0_22 = arith.constant 0 : index
    %c0_23 = arith.constant 0 : index
    %30 = vector.load %arg7[%c0_22, %c0_23] : memref<16x2xf32, #tpu.memory_space<vmem>>, vector<16x2xf32>
    %c0_24 = arith.constant 0 : index
    %c0_25 = arith.constant 0 : index
    %31 = vector.load %arg8[%c0_24, %c0_25] : memref<2x16xf32, #tpu.memory_space<vmem>>, vector<2x16xf32>
    %c0_26 = arith.constant 0 : index
    %c0_27 = arith.constant 0 : index
    %32 = vector.load %arg9[%c0_26, %c0_27] : memref<1x16xf32, #tpu.memory_space<vmem>>, vector<1x16xf32>
    %33 = tpu.concatenate %22, %28 in 0 : vector<16x8xf32>, vector<8x8xf32> -> vector<24x8xf32>
    %cst_28 = arith.constant dense<0.000000e+00> : vector<24x16xf32>
    %34 = tpu.matmul %33, %29, %cst_28 {dimension_numbers = #tpu.dot_dimension_numbers<[1], [0], [0], [1], [0, 0, 1, 1], [], []>} : vector<24x8xf32>, vector<8x16xf32>, vector<24x16xf32> -> vector<24x16xf32>
    %35 = vector.extract_strided_slice %34 {offsets = [0, 0], sizes = [16, 16], strides = [1, 1]} : vector<24x16xf32> to vector<16x16xf32>
    %36 = vector.extract_strided_slice %34 {offsets = [16, 0], sizes = [8, 16], strides = [1, 1]} : vector<24x16xf32> to vector<8x16xf32>
    %cst_29 = arith.constant dense<0.000000e+00> : vector<16x2xf32>
    %37 = tpu.matmul %35, %30, %cst_29 {dimension_numbers = #tpu.dot_dimension_numbers<[1], [0], [0], [1], [0, 0, 1, 1], [], []>} : vector<16x16xf32>, vector<16x2xf32>, vector<16x2xf32> -> vector<16x2xf32>
    %cst_30 = arith.constant dense<0.000000e+00> : vector<2x8xf32>
    %38 = tpu.matmul %31, %36, %cst_30 {dimension_numbers = #tpu.dot_dimension_numbers<[1], [1], [0], [0], [0, 0, 1, 0], [], []>} : vector<2x16xf32>, vector<8x16xf32>, vector<2x8xf32> -> vector<2x8xf32>
    %39 = vector.extract_strided_slice %35 {offsets = [0, 0], sizes = [16, 8], strides = [1, 1]} : vector<16x16xf32> to vector<16x8xf32>
    %40 = vector.extract_strided_slice %37 {offsets = [0, 0], sizes = [16, 1], strides = [1, 1]} : vector<16x2xf32> to vector<16x1xf32>
    %41 = vector.extract_strided_slice %38 {offsets = [0, 0], sizes = [1, 8], strides = [1, 1]} : vector<2x8xf32> to vector<1x8xf32>
    %42 = vector.broadcast %40 : vector<16x1xf32> to vector<16x8xf32>
    %43 = vector.broadcast %41 : vector<1x8xf32> to vector<16x8xf32>
    %44 = arith.addf %42, %43 : vector<16x8xf32>
    %cst_31 = arith.constant 0.000000e+00 : f32
    %45 = vector.broadcast %cst_31 : f32 to vector<16x8xf32>
    %46 = arith.maximumf %44, %45 : vector<16x8xf32>
    %cst_32 = arith.constant -1.000000e+30 : f32
    %47 = vector.broadcast %cst_32 : f32 to vector<16x8xf32>
    %48 = arith.select %3, %46, %47 : vector<16x8xi1>, vector<16x8xf32>
    %cst_33 = arith.constant dense<0xFF800000> : vector<8xf32>
    %49 = vector.multi_reduction <maximumf>, %48, %cst_33 [0] : vector<16x8xf32> to vector<8xf32>
    %50 = vector.shape_cast %49 : vector<8xf32> to vector<1x8xf32>
    %51 = vector.broadcast %50 : vector<1x8xf32> to vector<16x8xf32>
    %52 = arith.subf %48, %51 : vector<16x8xf32>
    %53 = math.exp %52 : vector<16x8xf32>
    %cst_34 = arith.constant 0.000000e+00 : f32
    %54 = vector.broadcast %cst_34 : f32 to vector<16x8xf32>
    %55 = arith.select %3, %53, %54 : vector<16x8xi1>, vector<16x8xf32>
    %cst_35 = arith.constant dense<0.000000e+00> : vector<8xf32>
    %56 = vector.multi_reduction <add>, %55, %cst_35 [0] : vector<16x8xf32> to vector<8xf32>
    %57 = vector.shape_cast %56 : vector<8xf32> to vector<1x8xf32>
    %cst_36 = arith.constant 0.000000e+00 : f32
    %58 = vector.broadcast %cst_36 : f32 to vector<1x8xf32>
    %59 = arith.cmpf ogt, %57, %58 : vector<1x8xf32>
    %cst_37 = arith.constant 1.000000e+00 : f32
    %60 = vector.broadcast %cst_37 : f32 to vector<1x8xf32>
    %61 = arith.divf %60, %57 : vector<1x8xf32>
    %cst_38 = arith.constant 0.000000e+00 : f32
    %62 = vector.broadcast %cst_38 : f32 to vector<1x8xf32>
    %63 = arith.select %59, %61, %62 : vector<1x8xi1>, vector<1x8xf32>
    %64 = vector.broadcast %63 : vector<1x8xf32> to vector<16x8xf32>
    %65 = arith.mulf %55, %64 : vector<16x8xf32>
    %66 = vector.broadcast %11 : vector<1x8xf32> to vector<16x8xf32>
    %67 = arith.mulf %65, %66 : vector<16x8xf32>
    %cst_39 = arith.constant dense<0.000000e+00> : vector<8x8xf32>
    %68 = tpu.matmul %67, %39, %cst_39 {dimension_numbers = #tpu.dot_dimension_numbers<[0], [0], [1], [1], [0, 1, 1, 1], [], []>} : vector<16x8xf32>, vector<16x8xf32>, vector<8x8xf32> -> vector<8x8xf32>
    %cst_40 = arith.constant dense<0.000000e+00> : vector<16x8xf32>
    %69 = tpu.matmul %65, %68, %cst_40 {dimension_numbers = #tpu.dot_dimension_numbers<[1], [0], [0], [1], [0, 0, 1, 1], [], []>} : vector<16x8xf32>, vector<8x8xf32>, vector<16x8xf32> -> vector<16x8xf32>
    %70 = vector.broadcast %21 : vector<16x1xf32> to vector<16x8xf32>
    %71 = arith.mulf %69, %70 : vector<16x8xf32>
    %72 = vector.extract_strided_slice %32 {offsets = [0, 0], sizes = [1, 8], strides = [1, 1]} : vector<1x16xf32> to vector<1x8xf32>
    %73 = vector.broadcast %72 : vector<1x8xf32> to vector<16x8xf32>
    %74 = arith.addf %71, %73 : vector<16x8xf32>
    %c0_41 = arith.constant 0 : index
    %c0_42 = arith.constant 0 : index
    %75 = vector.load %arg29[%c0_41, %c0_42] : memref<16x16xf32, #tpu.memory_space<vmem>>, vector<16x8xf32>
    tpu.vector_store %arg29[%c0_41, %c0_42], %74 {strides = array<i32>} : memref<16x16xf32, #tpu.memory_space<vmem>>, vector<16x8xf32>,
    %76 = vector.extract_strided_slice %35 {offsets = [0, 8], sizes = [16, 8], strides = [1, 1]} : vector<16x16xf32> to vector<16x8xf32>
    %77 = vector.extract_strided_slice %37 {offsets = [0, 1], sizes = [16, 1], strides = [1, 1]} : vector<16x2xf32> to vector<16x1xf32>
    %78 = vector.extract_strided_slice %38 {offsets = [1, 0], sizes = [1, 8], strides = [1, 1]} : vector<2x8xf32> to vector<1x8xf32>
    %79 = vector.broadcast %77 : vector<16x1xf32> to vector<16x8xf32>
    %80 = vector.broadcast %78 : vector<1x8xf32> to vector<16x8xf32>
    %81 = arith.addf %79, %80 : vector<16x8xf32>
    %cst_43 = arith.constant 0.000000e+00 : f32
    %82 = vector.broadcast %cst_43 : f32 to vector<16x8xf32>
    %83 = arith.maximumf %81, %82 : vector<16x8xf32>
    %cst_44 = arith.constant -1.000000e+30 : f32
    %84 = vector.broadcast %cst_44 : f32 to vector<16x8xf32>
    %85 = arith.select %3, %83, %84 : vector<16x8xi1>, vector<16x8xf32>
    %cst_45 = arith.constant dense<0xFF800000> : vector<8xf32>
    %86 = vector.multi_reduction <maximumf>, %85, %cst_45 [0] : vector<16x8xf32> to vector<8xf32>
    %87 = vector.shape_cast %86 : vector<8xf32> to vector<1x8xf32>
    %88 = vector.broadcast %87 : vector<1x8xf32> to vector<16x8xf32>
    %89 = arith.subf %85, %88 : vector<16x8xf32>
    %90 = math.exp %89 : vector<16x8xf32>
    %cst_46 = arith.constant 0.000000e+00 : f32
    %91 = vector.broadcast %cst_46 : f32 to vector<16x8xf32>
    %92 = arith.select %3, %90, %91 : vector<16x8xi1>, vector<16x8xf32>
    %cst_47 = arith.constant dense<0.000000e+00> : vector<8xf32>
    %93 = vector.multi_reduction <add>, %92, %cst_47 [0] : vector<16x8xf32> to vector<8xf32>
    %94 = vector.shape_cast %93 : vector<8xf32> to vector<1x8xf32>
    %cst_48 = arith.constant 0.000000e+00 : f32
    %95 = vector.broadcast %cst_48 : f32 to vector<1x8xf32>
    %96 = arith.cmpf ogt, %94, %95 : vector<1x8xf32>
    %cst_49 = arith.constant 1.000000e+00 : f32
    %97 = vector.broadcast %cst_49 : f32 to vector<1x8xf32>
    %98 = arith.divf %97, %94 : vector<1x8xf32>
    %cst_50 = arith.constant 0.000000e+00 : f32
    %99 = vector.broadcast %cst_50 : f32 to vector<1x8xf32>
    %100 = arith.select %96, %98, %99 : vector<1x8xi1>, vector<1x8xf32>
    %101 = vector.broadcast %100 : vector<1x8xf32> to vector<16x8xf32>
    %102 = arith.mulf %92, %101 : vector<16x8xf32>
    %103 = vector.broadcast %11 : vector<1x8xf32> to vector<16x8xf32>
    %104 = arith.mulf %102, %103 : vector<16x8xf32>
    %cst_51 = arith.constant dense<0.000000e+00> : vector<8x8xf32>
    %105 = tpu.matmul %104, %76, %cst_51 {dimension_numbers = #tpu.dot_dimension_numbers<[0], [0], [1], [1], [0, 1, 1, 1], [], []>} : vector<16x8xf32>, vector<16x8xf32>, vector<8x8xf32> -> vector<8x8xf32>
    %cst_52 = arith.constant dense<0.000000e+00> : vector<16x8xf32>
    %106 = tpu.matmul %102, %105, %cst_52 {dimension_numbers = #tpu.dot_dimension_numbers<[1], [0], [0], [1], [0, 0, 1, 1], [], []>} : vector<16x8xf32>, vector<8x8xf32>, vector<16x8xf32> -> vector<16x8xf32>
    %107 = vector.broadcast %21 : vector<16x1xf32> to vector<16x8xf32>
    %108 = arith.mulf %106, %107 : vector<16x8xf32>
    %109 = vector.extract_strided_slice %32 {offsets = [0, 8], sizes = [1, 8], strides = [1, 1]} : vector<1x16xf32> to vector<1x8xf32>
    %110 = vector.broadcast %109 : vector<1x8xf32> to vector<16x8xf32>
    %111 = arith.addf %108, %110 : vector<16x8xf32>
    %c0_53 = arith.constant 0 : index
    %c8 = arith.constant 8 : index
    %112 = vector.load %arg29[%c0_53, %c8] : memref<16x16xf32, #tpu.memory_space<vmem>>, vector<16x8xf32>
    tpu.vector_store %arg29[%c0_53, %c8], %111 {strides = array<i32>} : memref<16x16xf32, #tpu.memory_space<vmem>>, vector<16x8xf32>,
    %c0_54 = arith.constant 0 : index
    %c0_55 = arith.constant 0 : index
    %113 = vector.load %arg29[%c0_54, %c0_55] : memref<16x16xf32, #tpu.memory_space<vmem>>, vector<16x16xf32>
    %c0_56 = arith.constant 0 : index
    %c0_57 = arith.constant 0 : index
    %114 = vector.load %arg10[%c0_56, %c0_57] : memref<8x16xf32, #tpu.memory_space<vmem>>, vector<8x16xf32>
    %cst_58 = arith.constant dense<0.000000e+00> : vector<8x16xf32>
    %115 = tpu.matmul %28, %114, %cst_58 {dimension_numbers = #tpu.dot_dimension_numbers<[1], [0], [0], [1], [0, 0, 1, 1], [], []>} : vector<8x8xf32>, vector<8x16xf32>, vector<8x16xf32> -> vector<8x16xf32>
    %c0_59 = arith.constant 0 : index
    %c0_60 = arith.constant 0 : index
    %116 = vector.load %arg11[%c0_59, %c0_60] : memref<1x16xf32, #tpu.memory_space<vmem>>, vector<1x16xf32>
    %117 = vector.broadcast %116 : vector<1x16xf32> to vector<8x16xf32>
    %118 = arith.addf %115, %117 : vector<8x16xf32>
    %c0_61 = arith.constant 0 : index
    %c0_62 = arith.constant 0 : index
    %119 = vector.load %arg12[%c0_61, %c0_62] : memref<16x16xf32, #tpu.memory_space<vmem>>, vector<16x16xf32>
    %c0_63 = arith.constant 0 : index
    %c0_64 = arith.constant 0 : index
    %120 = vector.load %arg13[%c0_63, %c0_64] : memref<16x2xf32, #tpu.memory_space<vmem>>, vector<16x2xf32>
    %c0_65 = arith.constant 0 : index
    %c0_66 = arith.constant 0 : index
    %121 = vector.load %arg14[%c0_65, %c0_66] : memref<2x16xf32, #tpu.memory_space<vmem>>, vector<2x16xf32>
    %c0_67 = arith.constant 0 : index
    %c0_68 = arith.constant 0 : index
    %122 = vector.load %arg15[%c0_67, %c0_68] : memref<1x16xf32, #tpu.memory_space<vmem>>, vector<1x16xf32>
    %123 = tpu.concatenate %113, %118 in 0 : vector<16x16xf32>, vector<8x16xf32> -> vector<24x16xf32>
    %cst_69 = arith.constant dense<0.000000e+00> : vector<24x16xf32>
    %124 = tpu.matmul %123, %119, %cst_69 {dimension_numbers = #tpu.dot_dimension_numbers<[1], [0], [0], [1], [0, 0, 1, 1], [], []>} : vector<24x16xf32>, vector<16x16xf32>, vector<24x16xf32> -> vector<24x16xf32>
    %125 = vector.extract_strided_slice %124 {offsets = [0, 0], sizes = [16, 16], strides = [1, 1]} : vector<24x16xf32> to vector<16x16xf32>
    %126 = vector.extract_strided_slice %124 {offsets = [16, 0], sizes = [8, 16], strides = [1, 1]} : vector<24x16xf32> to vector<8x16xf32>
    %cst_70 = arith.constant dense<0.000000e+00> : vector<16x2xf32>
    %127 = tpu.matmul %125, %120, %cst_70 {dimension_numbers = #tpu.dot_dimension_numbers<[1], [0], [0], [1], [0, 0, 1, 1], [], []>} : vector<16x16xf32>, vector<16x2xf32>, vector<16x2xf32> -> vector<16x2xf32>
    %cst_71 = arith.constant dense<0.000000e+00> : vector<2x8xf32>
    %128 = tpu.matmul %121, %126, %cst_71 {dimension_numbers = #tpu.dot_dimension_numbers<[1], [1], [0], [0], [0, 0, 1, 0], [], []>} : vector<2x16xf32>, vector<8x16xf32>, vector<2x8xf32> -> vector<2x8xf32>
    %129 = vector.extract_strided_slice %125 {offsets = [0, 0], sizes = [16, 8], strides = [1, 1]} : vector<16x16xf32> to vector<16x8xf32>
    %130 = vector.extract_strided_slice %127 {offsets = [0, 0], sizes = [16, 1], strides = [1, 1]} : vector<16x2xf32> to vector<16x1xf32>
    %131 = vector.extract_strided_slice %128 {offsets = [0, 0], sizes = [1, 8], strides = [1, 1]} : vector<2x8xf32> to vector<1x8xf32>
    %132 = vector.broadcast %130 : vector<16x1xf32> to vector<16x8xf32>
    %133 = vector.broadcast %131 : vector<1x8xf32> to vector<16x8xf32>
    %134 = arith.addf %132, %133 : vector<16x8xf32>
    %cst_72 = arith.constant 0.000000e+00 : f32
    %135 = vector.broadcast %cst_72 : f32 to vector<16x8xf32>
    %136 = arith.maximumf %134, %135 : vector<16x8xf32>
    %cst_73 = arith.constant -1.000000e+30 : f32
    %137 = vector.broadcast %cst_73 : f32 to vector<16x8xf32>
    %138 = arith.select %3, %136, %137 : vector<16x8xi1>, vector<16x8xf32>
    %cst_74 = arith.constant dense<0xFF800000> : vector<8xf32>
    %139 = vector.multi_reduction <maximumf>, %138, %cst_74 [0] : vector<16x8xf32> to vector<8xf32>
    %140 = vector.shape_cast %139 : vector<8xf32> to vector<1x8xf32>
    %141 = vector.broadcast %140 : vector<1x8xf32> to vector<16x8xf32>
    %142 = arith.subf %138, %141 : vector<16x8xf32>
    %143 = math.exp %142 : vector<16x8xf32>
    %cst_75 = arith.constant 0.000000e+00 : f32
    %144 = vector.broadcast %cst_75 : f32 to vector<16x8xf32>
    %145 = arith.select %3, %143, %144 : vector<16x8xi1>, vector<16x8xf32>
    %cst_76 = arith.constant dense<0.000000e+00> : vector<8xf32>
    %146 = vector.multi_reduction <add>, %145, %cst_76 [0] : vector<16x8xf32> to vector<8xf32>
    %147 = vector.shape_cast %146 : vector<8xf32> to vector<1x8xf32>
    %cst_77 = arith.constant 0.000000e+00 : f32
    %148 = vector.broadcast %cst_77 : f32 to vector<1x8xf32>
    %149 = arith.cmpf ogt, %147, %148 : vector<1x8xf32>
    %cst_78 = arith.constant 1.000000e+00 : f32
    %150 = vector.broadcast %cst_78 : f32 to vector<1x8xf32>
    %151 = arith.divf %150, %147 : vector<1x8xf32>
    %cst_79 = arith.constant 0.000000e+00 : f32
    %152 = vector.broadcast %cst_79 : f32 to vector<1x8xf32>
    %153 = arith.select %149, %151, %152 : vector<1x8xi1>, vector<1x8xf32>
    %154 = vector.broadcast %153 : vector<1x8xf32> to vector<16x8xf32>
    %155 = arith.mulf %145, %154 : vector<16x8xf32>
    %156 = vector.broadcast %11 : vector<1x8xf32> to vector<16x8xf32>
    %157 = arith.mulf %155, %156 : vector<16x8xf32>
    %cst_80 = arith.constant dense<0.000000e+00> : vector<8x8xf32>
    %158 = tpu.matmul %157, %129, %cst_80 {dimension_numbers = #tpu.dot_dimension_numbers<[0], [0], [1], [1], [0, 1, 1, 1], [], []>} : vector<16x8xf32>, vector<16x8xf32>, vector<8x8xf32> -> vector<8x8xf32>
    %cst_81 = arith.constant dense<0.000000e+00> : vector<16x8xf32>
    %159 = tpu.matmul %155, %158, %cst_81 {dimension_numbers = #tpu.dot_dimension_numbers<[1], [0], [0], [1], [0, 0, 1, 1], [], []>} : vector<16x8xf32>, vector<8x8xf32>, vector<16x8xf32> -> vector<16x8xf32>
    %160 = vector.broadcast %21 : vector<16x1xf32> to vector<16x8xf32>
    %161 = arith.mulf %159, %160 : vector<16x8xf32>
    %162 = vector.extract_strided_slice %122 {offsets = [0, 0], sizes = [1, 8], strides = [1, 1]} : vector<1x16xf32> to vector<1x8xf32>
    %163 = vector.broadcast %162 : vector<1x8xf32> to vector<16x8xf32>
    %164 = arith.addf %161, %163 : vector<16x8xf32>
    %c0_82 = arith.constant 0 : index
    %c0_83 = arith.constant 0 : index
    %165 = vector.load %arg29[%c0_82, %c0_83] : memref<16x16xf32, #tpu.memory_space<vmem>>, vector<16x8xf32>
    tpu.vector_store %arg29[%c0_82, %c0_83], %164 {strides = array<i32>} : memref<16x16xf32, #tpu.memory_space<vmem>>, vector<16x8xf32>,
    %166 = vector.extract_strided_slice %125 {offsets = [0, 8], sizes = [16, 8], strides = [1, 1]} : vector<16x16xf32> to vector<16x8xf32>
    %167 = vector.extract_strided_slice %127 {offsets = [0, 1], sizes = [16, 1], strides = [1, 1]} : vector<16x2xf32> to vector<16x1xf32>
    %168 = vector.extract_strided_slice %128 {offsets = [1, 0], sizes = [1, 8], strides = [1, 1]} : vector<2x8xf32> to vector<1x8xf32>
    %169 = vector.broadcast %167 : vector<16x1xf32> to vector<16x8xf32>
    %170 = vector.broadcast %168 : vector<1x8xf32> to vector<16x8xf32>
    %171 = arith.addf %169, %170 : vector<16x8xf32>
    %cst_84 = arith.constant 0.000000e+00 : f32
    %172 = vector.broadcast %cst_84 : f32 to vector<16x8xf32>
    %173 = arith.maximumf %171, %172 : vector<16x8xf32>
    %cst_85 = arith.constant -1.000000e+30 : f32
    %174 = vector.broadcast %cst_85 : f32 to vector<16x8xf32>
    %175 = arith.select %3, %173, %174 : vector<16x8xi1>, vector<16x8xf32>
    %cst_86 = arith.constant dense<0xFF800000> : vector<8xf32>
    %176 = vector.multi_reduction <maximumf>, %175, %cst_86 [0] : vector<16x8xf32> to vector<8xf32>
    %177 = vector.shape_cast %176 : vector<8xf32> to vector<1x8xf32>
    %178 = vector.broadcast %177 : vector<1x8xf32> to vector<16x8xf32>
    %179 = arith.subf %175, %178 : vector<16x8xf32>
    %180 = math.exp %179 : vector<16x8xf32>
    %cst_87 = arith.constant 0.000000e+00 : f32
    %181 = vector.broadcast %cst_87 : f32 to vector<16x8xf32>
    %182 = arith.select %3, %180, %181 : vector<16x8xi1>, vector<16x8xf32>
    %cst_88 = arith.constant dense<0.000000e+00> : vector<8xf32>
    %183 = vector.multi_reduction <add>, %182, %cst_88 [0] : vector<16x8xf32> to vector<8xf32>
    %184 = vector.shape_cast %183 : vector<8xf32> to vector<1x8xf32>
    %cst_89 = arith.constant 0.000000e+00 : f32
    %185 = vector.broadcast %cst_89 : f32 to vector<1x8xf32>
    %186 = arith.cmpf ogt, %184, %185 : vector<1x8xf32>
    %cst_90 = arith.constant 1.000000e+00 : f32
    %187 = vector.broadcast %cst_90 : f32 to vector<1x8xf32>
    %188 = arith.divf %187, %184 : vector<1x8xf32>
    %cst_91 = arith.constant 0.000000e+00 : f32
    %189 = vector.broadcast %cst_91 : f32 to vector<1x8xf32>
    %190 = arith.select %186, %188, %189 : vector<1x8xi1>, vector<1x8xf32>
    %191 = vector.broadcast %190 : vector<1x8xf32> to vector<16x8xf32>
    %192 = arith.mulf %182, %191 : vector<16x8xf32>
    %193 = vector.broadcast %11 : vector<1x8xf32> to vector<16x8xf32>
    %194 = arith.mulf %192, %193 : vector<16x8xf32>
    %cst_92 = arith.constant dense<0.000000e+00> : vector<8x8xf32>
    %195 = tpu.matmul %194, %166, %cst_92 {dimension_numbers = #tpu.dot_dimension_numbers<[0], [0], [1], [1], [0, 1, 1, 1], [], []>} : vector<16x8xf32>, vector<16x8xf32>, vector<8x8xf32> -> vector<8x8xf32>
    %cst_93 = arith.constant dense<0.000000e+00> : vector<16x8xf32>
    %196 = tpu.matmul %192, %195, %cst_93 {dimension_numbers = #tpu.dot_dimension_numbers<[1], [0], [0], [1], [0, 0, 1, 1], [], []>} : vector<16x8xf32>, vector<8x8xf32>, vector<16x8xf32> -> vector<16x8xf32>
    %197 = vector.broadcast %21 : vector<16x1xf32> to vector<16x8xf32>
    %198 = arith.mulf %196, %197 : vector<16x8xf32>
    %199 = vector.extract_strided_slice %122 {offsets = [0, 8], sizes = [1, 8], strides = [1, 1]} : vector<1x16xf32> to vector<1x8xf32>
    %200 = vector.broadcast %199 : vector<1x8xf32> to vector<16x8xf32>
    %201 = arith.addf %198, %200 : vector<16x8xf32>
    %c0_94 = arith.constant 0 : index
    %c8_95 = arith.constant 8 : index
    %202 = vector.load %arg29[%c0_94, %c8_95] : memref<16x16xf32, #tpu.memory_space<vmem>>, vector<16x8xf32>
    tpu.vector_store %arg29[%c0_94, %c8_95], %201 {strides = array<i32>} : memref<16x16xf32, #tpu.memory_space<vmem>>, vector<16x8xf32>,
    %c0_96 = arith.constant 0 : index
    %c0_97 = arith.constant 0 : index
    %203 = vector.load %arg29[%c0_96, %c0_97] : memref<16x16xf32, #tpu.memory_space<vmem>>, vector<16x16xf32>
    %c0_98 = arith.constant 0 : index
    %c0_99 = arith.constant 0 : index
    %204 = vector.load %arg16[%c0_98, %c0_99] : memref<16x16xf32, #tpu.memory_space<vmem>>, vector<16x16xf32>
    %cst_100 = arith.constant dense<0.000000e+00> : vector<8x16xf32>
    %205 = tpu.matmul %118, %204, %cst_100 {dimension_numbers = #tpu.dot_dimension_numbers<[1], [0], [0], [1], [0, 0, 1, 1], [], []>} : vector<8x16xf32>, vector<16x16xf32>, vector<8x16xf32> -> vector<8x16xf32>
    %c0_101 = arith.constant 0 : index
    %c0_102 = arith.constant 0 : index
    %206 = vector.load %arg17[%c0_101, %c0_102] : memref<1x16xf32, #tpu.memory_space<vmem>>, vector<1x16xf32>
    %207 = vector.broadcast %206 : vector<1x16xf32> to vector<8x16xf32>
    %208 = arith.addf %205, %207 : vector<8x16xf32>
    %c0_103 = arith.constant 0 : index
    %c0_104 = arith.constant 0 : index
    %209 = vector.load %arg18[%c0_103, %c0_104] : memref<16x16xf32, #tpu.memory_space<vmem>>, vector<16x16xf32>
    %c0_105 = arith.constant 0 : index
    %c0_106 = arith.constant 0 : index
    %210 = vector.load %arg19[%c0_105, %c0_106] : memref<16x2xf32, #tpu.memory_space<vmem>>, vector<16x2xf32>
    %c0_107 = arith.constant 0 : index
    %c0_108 = arith.constant 0 : index
    %211 = vector.load %arg20[%c0_107, %c0_108] : memref<2x16xf32, #tpu.memory_space<vmem>>, vector<2x16xf32>
    %c0_109 = arith.constant 0 : index
    %c0_110 = arith.constant 0 : index
    %212 = vector.load %arg21[%c0_109, %c0_110] : memref<1x16xf32, #tpu.memory_space<vmem>>, vector<1x16xf32>
    %213 = tpu.concatenate %203, %208 in 0 : vector<16x16xf32>, vector<8x16xf32> -> vector<24x16xf32>
    %cst_111 = arith.constant dense<0.000000e+00> : vector<24x16xf32>
    %214 = tpu.matmul %213, %209, %cst_111 {dimension_numbers = #tpu.dot_dimension_numbers<[1], [0], [0], [1], [0, 0, 1, 1], [], []>} : vector<24x16xf32>, vector<16x16xf32>, vector<24x16xf32> -> vector<24x16xf32>
    %215 = vector.extract_strided_slice %214 {offsets = [0, 0], sizes = [16, 16], strides = [1, 1]} : vector<24x16xf32> to vector<16x16xf32>
    %216 = vector.extract_strided_slice %214 {offsets = [16, 0], sizes = [8, 16], strides = [1, 1]} : vector<24x16xf32> to vector<8x16xf32>
    %cst_112 = arith.constant dense<0.000000e+00> : vector<16x2xf32>
    %217 = tpu.matmul %215, %210, %cst_112 {dimension_numbers = #tpu.dot_dimension_numbers<[1], [0], [0], [1], [0, 0, 1, 1], [], []>} : vector<16x16xf32>, vector<16x2xf32>, vector<16x2xf32> -> vector<16x2xf32>
    %cst_113 = arith.constant dense<0.000000e+00> : vector<2x8xf32>
    %218 = tpu.matmul %211, %216, %cst_113 {dimension_numbers = #tpu.dot_dimension_numbers<[1], [1], [0], [0], [0, 0, 1, 0], [], []>} : vector<2x16xf32>, vector<8x16xf32>, vector<2x8xf32> -> vector<2x8xf32>
    %219 = vector.extract_strided_slice %215 {offsets = [0, 0], sizes = [16, 8], strides = [1, 1]} : vector<16x16xf32> to vector<16x8xf32>
    %220 = vector.extract_strided_slice %217 {offsets = [0, 0], sizes = [16, 1], strides = [1, 1]} : vector<16x2xf32> to vector<16x1xf32>
    %221 = vector.extract_strided_slice %218 {offsets = [0, 0], sizes = [1, 8], strides = [1, 1]} : vector<2x8xf32> to vector<1x8xf32>
    %222 = vector.broadcast %220 : vector<16x1xf32> to vector<16x8xf32>
    %223 = vector.broadcast %221 : vector<1x8xf32> to vector<16x8xf32>
    %224 = arith.addf %222, %223 : vector<16x8xf32>
    %cst_114 = arith.constant 0.000000e+00 : f32
    %225 = vector.broadcast %cst_114 : f32 to vector<16x8xf32>
    %226 = arith.maximumf %224, %225 : vector<16x8xf32>
    %cst_115 = arith.constant -1.000000e+30 : f32
    %227 = vector.broadcast %cst_115 : f32 to vector<16x8xf32>
    %228 = arith.select %3, %226, %227 : vector<16x8xi1>, vector<16x8xf32>
    %cst_116 = arith.constant dense<0xFF800000> : vector<8xf32>
    %229 = vector.multi_reduction <maximumf>, %228, %cst_116 [0] : vector<16x8xf32> to vector<8xf32>
    %230 = vector.shape_cast %229 : vector<8xf32> to vector<1x8xf32>
    %231 = vector.broadcast %230 : vector<1x8xf32> to vector<16x8xf32>
    %232 = arith.subf %228, %231 : vector<16x8xf32>
    %233 = math.exp %232 : vector<16x8xf32>
    %cst_117 = arith.constant 0.000000e+00 : f32
    %234 = vector.broadcast %cst_117 : f32 to vector<16x8xf32>
    %235 = arith.select %3, %233, %234 : vector<16x8xi1>, vector<16x8xf32>
    %cst_118 = arith.constant dense<0.000000e+00> : vector<8xf32>
    %236 = vector.multi_reduction <add>, %235, %cst_118 [0] : vector<16x8xf32> to vector<8xf32>
    %237 = vector.shape_cast %236 : vector<8xf32> to vector<1x8xf32>
    %cst_119 = arith.constant 0.000000e+00 : f32
    %238 = vector.broadcast %cst_119 : f32 to vector<1x8xf32>
    %239 = arith.cmpf ogt, %237, %238 : vector<1x8xf32>
    %cst_120 = arith.constant 1.000000e+00 : f32
    %240 = vector.broadcast %cst_120 : f32 to vector<1x8xf32>
    %241 = arith.divf %240, %237 : vector<1x8xf32>
    %cst_121 = arith.constant 0.000000e+00 : f32
    %242 = vector.broadcast %cst_121 : f32 to vector<1x8xf32>
    %243 = arith.select %239, %241, %242 : vector<1x8xi1>, vector<1x8xf32>
    %244 = vector.broadcast %243 : vector<1x8xf32> to vector<16x8xf32>
    %245 = arith.mulf %235, %244 : vector<16x8xf32>
    %246 = vector.broadcast %11 : vector<1x8xf32> to vector<16x8xf32>
    %247 = arith.mulf %245, %246 : vector<16x8xf32>
    %cst_122 = arith.constant dense<0.000000e+00> : vector<8x8xf32>
    %248 = tpu.matmul %247, %219, %cst_122 {dimension_numbers = #tpu.dot_dimension_numbers<[0], [0], [1], [1], [0, 1, 1, 1], [], []>} : vector<16x8xf32>, vector<16x8xf32>, vector<8x8xf32> -> vector<8x8xf32>
    %cst_123 = arith.constant dense<0.000000e+00> : vector<16x8xf32>
    %249 = tpu.matmul %245, %248, %cst_123 {dimension_numbers = #tpu.dot_dimension_numbers<[1], [0], [0], [1], [0, 0, 1, 1], [], []>} : vector<16x8xf32>, vector<8x8xf32>, vector<16x8xf32> -> vector<16x8xf32>
    %250 = vector.broadcast %21 : vector<16x1xf32> to vector<16x8xf32>
    %251 = arith.mulf %249, %250 : vector<16x8xf32>
    %252 = vector.extract_strided_slice %212 {offsets = [0, 0], sizes = [1, 8], strides = [1, 1]} : vector<1x16xf32> to vector<1x8xf32>
    %253 = vector.broadcast %252 : vector<1x8xf32> to vector<16x8xf32>
    %254 = arith.addf %251, %253 : vector<16x8xf32>
    %c0_124 = arith.constant 0 : index
    %c0_125 = arith.constant 0 : index
    %255 = vector.load %arg29[%c0_124, %c0_125] : memref<16x16xf32, #tpu.memory_space<vmem>>, vector<16x8xf32>
    tpu.vector_store %arg29[%c0_124, %c0_125], %254 {strides = array<i32>} : memref<16x16xf32, #tpu.memory_space<vmem>>, vector<16x8xf32>,
    %256 = vector.extract_strided_slice %215 {offsets = [0, 8], sizes = [16, 8], strides = [1, 1]} : vector<16x16xf32> to vector<16x8xf32>
    %257 = vector.extract_strided_slice %217 {offsets = [0, 1], sizes = [16, 1], strides = [1, 1]} : vector<16x2xf32> to vector<16x1xf32>
    %258 = vector.extract_strided_slice %218 {offsets = [1, 0], sizes = [1, 8], strides = [1, 1]} : vector<2x8xf32> to vector<1x8xf32>
    %259 = vector.broadcast %257 : vector<16x1xf32> to vector<16x8xf32>
    %260 = vector.broadcast %258 : vector<1x8xf32> to vector<16x8xf32>
    %261 = arith.addf %259, %260 : vector<16x8xf32>
    %cst_126 = arith.constant 0.000000e+00 : f32
    %262 = vector.broadcast %cst_126 : f32 to vector<16x8xf32>
    %263 = arith.maximumf %261, %262 : vector<16x8xf32>
    %cst_127 = arith.constant -1.000000e+30 : f32
    %264 = vector.broadcast %cst_127 : f32 to vector<16x8xf32>
    %265 = arith.select %3, %263, %264 : vector<16x8xi1>, vector<16x8xf32>
    %cst_128 = arith.constant dense<0xFF800000> : vector<8xf32>
    %266 = vector.multi_reduction <maximumf>, %265, %cst_128 [0] : vector<16x8xf32> to vector<8xf32>
    %267 = vector.shape_cast %266 : vector<8xf32> to vector<1x8xf32>
    %268 = vector.broadcast %267 : vector<1x8xf32> to vector<16x8xf32>
    %269 = arith.subf %265, %268 : vector<16x8xf32>
    %270 = math.exp %269 : vector<16x8xf32>
    %cst_129 = arith.constant 0.000000e+00 : f32
    %271 = vector.broadcast %cst_129 : f32 to vector<16x8xf32>
    %272 = arith.select %3, %270, %271 : vector<16x8xi1>, vector<16x8xf32>
    %cst_130 = arith.constant dense<0.000000e+00> : vector<8xf32>
    %273 = vector.multi_reduction <add>, %272, %cst_130 [0] : vector<16x8xf32> to vector<8xf32>
    %274 = vector.shape_cast %273 : vector<8xf32> to vector<1x8xf32>
    %cst_131 = arith.constant 0.000000e+00 : f32
    %275 = vector.broadcast %cst_131 : f32 to vector<1x8xf32>
    %276 = arith.cmpf ogt, %274, %275 : vector<1x8xf32>
    %cst_132 = arith.constant 1.000000e+00 : f32
    %277 = vector.broadcast %cst_132 : f32 to vector<1x8xf32>
    %278 = arith.divf %277, %274 : vector<1x8xf32>
    %cst_133 = arith.constant 0.000000e+00 : f32
    %279 = vector.broadcast %cst_133 : f32 to vector<1x8xf32>
    %280 = arith.select %276, %278, %279 : vector<1x8xi1>, vector<1x8xf32>
    %281 = vector.broadcast %280 : vector<1x8xf32> to vector<16x8xf32>
    %282 = arith.mulf %272, %281 : vector<16x8xf32>
    %283 = vector.broadcast %11 : vector<1x8xf32> to vector<16x8xf32>
    %284 = arith.mulf %282, %283 : vector<16x8xf32>
    %cst_134 = arith.constant dense<0.000000e+00> : vector<8x8xf32>
    %285 = tpu.matmul %284, %256, %cst_134 {dimension_numbers = #tpu.dot_dimension_numbers<[0], [0], [1], [1], [0, 1, 1, 1], [], []>} : vector<16x8xf32>, vector<16x8xf32>, vector<8x8xf32> -> vector<8x8xf32>
    %cst_135 = arith.constant dense<0.000000e+00> : vector<16x8xf32>
    %286 = tpu.matmul %282, %285, %cst_135 {dimension_numbers = #tpu.dot_dimension_numbers<[1], [0], [0], [1], [0, 0, 1, 1], [], []>} : vector<16x8xf32>, vector<8x8xf32>, vector<16x8xf32> -> vector<16x8xf32>
    %287 = vector.broadcast %21 : vector<16x1xf32> to vector<16x8xf32>
    %288 = arith.mulf %286, %287 : vector<16x8xf32>
    %289 = vector.extract_strided_slice %212 {offsets = [0, 8], sizes = [1, 8], strides = [1, 1]} : vector<1x16xf32> to vector<1x8xf32>
    %290 = vector.broadcast %289 : vector<1x8xf32> to vector<16x8xf32>
    %291 = arith.addf %288, %290 : vector<16x8xf32>
    %c0_136 = arith.constant 0 : index
    %c8_137 = arith.constant 8 : index
    %292 = vector.load %arg29[%c0_136, %c8_137] : memref<16x16xf32, #tpu.memory_space<vmem>>, vector<16x8xf32>
    tpu.vector_store %arg29[%c0_136, %c8_137], %291 {strides = array<i32>} : memref<16x16xf32, #tpu.memory_space<vmem>>, vector<16x8xf32>,
    %c0_138 = arith.constant 0 : index
    %c0_139 = arith.constant 0 : index
    %293 = vector.load %arg29[%c0_138, %c0_139] : memref<16x16xf32, #tpu.memory_space<vmem>>, vector<16x16xf32>
    %c0_140 = arith.constant 0 : index
    %c0_141 = arith.constant 0 : index
    %294 = vector.load %arg22[%c0_140, %c0_141] : memref<16x32xf32, #tpu.memory_space<vmem>>, vector<16x32xf32>
    %cst_142 = arith.constant dense<0.000000e+00> : vector<16x32xf32>
    %295 = tpu.matmul %293, %294, %cst_142 {dimension_numbers = #tpu.dot_dimension_numbers<[1], [0], [0], [1], [0, 0, 1, 1], [], []>} : vector<16x16xf32>, vector<16x32xf32>, vector<16x32xf32> -> vector<16x32xf32>
    %c0_143 = arith.constant 0 : index
    %c0_144 = arith.constant 0 : index
    %296 = vector.load %arg23[%c0_143, %c0_144] : memref<1x32xf32, #tpu.memory_space<vmem>>, vector<1x32xf32>
    %297 = vector.broadcast %296 : vector<1x32xf32> to vector<16x32xf32>
    %298 = arith.addf %295, %297 : vector<16x32xf32>
    %cst_145 = arith.constant 0.000000e+00 : f32
    %299 = vector.broadcast %cst_145 : f32 to vector<16x32xf32>
    %300 = arith.maximumf %298, %299 : vector<16x32xf32>
    %c0_146 = arith.constant 0 : index
    %c0_147 = arith.constant 0 : index
    %301 = vector.load %arg24[%c0_146, %c0_147] : memref<32x16xf32, #tpu.memory_space<vmem>>, vector<32x16xf32>
    %cst_148 = arith.constant dense<0.000000e+00> : vector<16x16xf32>
    %302 = tpu.matmul %300, %301, %cst_148 {dimension_numbers = #tpu.dot_dimension_numbers<[1], [0], [0], [1], [0, 0, 1, 1], [], []>} : vector<16x32xf32>, vector<32x16xf32>, vector<16x16xf32> -> vector<16x16xf32>
    %c0_149 = arith.constant 0 : index
    %c0_150 = arith.constant 0 : index
    %303 = vector.load %arg25[%c0_149, %c0_150] : memref<1x16xf32, #tpu.memory_space<vmem>>, vector<1x16xf32>
    %304 = vector.broadcast %303 : vector<1x16xf32> to vector<16x16xf32>
    %305 = arith.addf %302, %304 : vector<16x16xf32>
    %cst_151 = arith.constant 0.000000e+00 : f32
    %306 = vector.broadcast %cst_151 : f32 to vector<16x16xf32>
    %307 = arith.maximumf %305, %306 : vector<16x16xf32>
    %c0_152 = arith.constant 0 : index
    %c0_153 = arith.constant 0 : index
    %308 = vector.load %arg26[%c0_152, %c0_153] : memref<16x4xf32, #tpu.memory_space<vmem>>, vector<16x4xf32>
    %cst_154 = arith.constant dense<0.000000e+00> : vector<16x4xf32>
    %309 = tpu.matmul %307, %308, %cst_154 {dimension_numbers = #tpu.dot_dimension_numbers<[1], [0], [0], [1], [0, 0, 1, 1], [], []>} : vector<16x16xf32>, vector<16x4xf32>, vector<16x4xf32> -> vector<16x4xf32>
    %c0_155 = arith.constant 0 : index
    %c0_156 = arith.constant 0 : index
    %310 = vector.load %arg27[%c0_155, %c0_156] : memref<1x4xf32, #tpu.memory_space<vmem>>, vector<1x4xf32>
    %311 = vector.broadcast %310 : vector<1x4xf32> to vector<16x4xf32>
    %312 = arith.addf %309, %311 : vector<16x4xf32>
    %c0_157 = arith.constant 0 : index
    %c0_158 = arith.constant 0 : index
    %313 = vector.load %arg28[%c0_157, %c0_158] : memref<16x4xf32, #tpu.memory_space<vmem>>, vector<16x4xf32>
    tpu.vector_store %arg28[%c0_157, %c0_158], %312 {strides = array<i32>} : memref<16x4xf32, #tpu.memory_space<vmem>>, vector<16x4xf32>,
    return
  }
}

</mosaic_0001>

<llo_original>
// kernel: tpu_custom_call.1
$region0: #{tpu_custom_call.1}
  #allocation0 [shape = 'u32[]', space=smem, size = 0x4, offset = 0x4, fixed_abs, tag = 'smem constant byte address 0x4 - core index']
  #allocation1 [shape = 'u32[144,128]{1,0:T(1,128)}', space=vmem, size = 0x12000, scoped, tag = 'internal scratch']
  #allocation2 [shape = 'f32[16,16]{1,0:T(8,128)}', space=vmem, size = 0x2000, scoped, tag = 'scratch operand']
  %s0 = inlined_call_operand.vmem [shape: f32[16,8], index: 0, kind: input, shape index: {}]
  %s1 = inlined_call_operand.vmem [shape: f32[16,8], index: 1, kind: input, shape index: {}]
  %s2 = inlined_call_operand.vmem [shape: f32[1,8], index: 2, kind: input, shape index: {}]
  %s3 = inlined_call_operand.vmem [shape: f32[8,6], index: 3, kind: input, shape index: {}]
  %s4 = inlined_call_operand.vmem [shape: f32[6,8], index: 4, kind: input, shape index: {}]
  %s5 = inlined_call_operand.vmem [shape: f32[1,8], index: 5, kind: input, shape index: {}]
  %s6 = inlined_call_operand.vmem [shape: f32[8,16], index: 6, kind: input, shape index: {}]
  %s7 = inlined_call_operand.vmem [shape: f32[16,2], index: 7, kind: input, shape index: {}]
  %s8 = inlined_call_operand.vmem [shape: f32[2,16], index: 8, kind: input, shape index: {}]
  %s9 = inlined_call_operand.vmem [shape: f32[1,16], index: 9, kind: input, shape index: {}]
  %s10 = inlined_call_operand.vmem [shape: f32[8,16], index: 10, kind: input, shape index: {}]
  %s11 = inlined_call_operand.vmem [shape: f32[1,16], index: 11, kind: input, shape index: {}]
  %s12 = inlined_call_operand.vmem [shape: f32[16,16], index: 12, kind: input, shape index: {}]
  %s13 = inlined_call_operand.vmem [shape: f32[16,2], index: 13, kind: input, shape index: {}]
  %s14 = inlined_call_operand.vmem [shape: f32[2,16], index: 14, kind: input, shape index: {}]
  %s15 = inlined_call_operand.vmem [shape: f32[1,16], index: 15, kind: input, shape index: {}]
  %s16 = inlined_call_operand.vmem [shape: f32[16,16], index: 16, kind: input, shape index: {}]
  %s17 = inlined_call_operand.vmem [shape: f32[1,16], index: 17, kind: input, shape index: {}]
  %s18 = inlined_call_operand.vmem [shape: f32[16,16], index: 18, kind: input, shape index: {}]
  %s19 = inlined_call_operand.vmem [shape: f32[16,2], index: 19, kind: input, shape index: {}]
  %s20 = inlined_call_operand.vmem [shape: f32[2,16], index: 20, kind: input, shape index: {}]
  %s21 = inlined_call_operand.vmem [shape: f32[1,16], index: 21, kind: input, shape index: {}]
  %s22 = inlined_call_operand.vmem [shape: f32[16,32], index: 22, kind: input, shape index: {}]
  %s23 = inlined_call_operand.vmem [shape: f32[1,32], index: 23, kind: input, shape index: {}]
  %s24 = inlined_call_operand.vmem [shape: f32[32,16], index: 24, kind: input, shape index: {}]
  %s25 = inlined_call_operand.vmem [shape: f32[1,16], index: 25, kind: input, shape index: {}]
  %s26 = inlined_call_operand.vmem [shape: f32[16,4], index: 26, kind: input, shape index: {}]
  %s27 = inlined_call_operand.vmem [shape: f32[1,4], index: 27, kind: input, shape index: {}]
  %s28 = inlined_call_operand.vmem [shape: f32[16,4], index: 28, kind: output, shape index: {}]
  %s29 = sld [smem:[#allocation0]]
  $region122: #{tpu_custom_call.1} parent=0
    _
  %s31 = ssub.s32 1, %s29
  %s32 = scalar_select 0, %s31, %s29
  // Predicated region
  $region2: #{tpu_custom_call.1} parent=0 // pred_check
    _
  $region3: #{tpu_custom_call.1} parent=0 // pred_check_branch
    %34 = sbr.rel (0) target = $region5
  $region4: #{tpu_custom_call.1} parent=0 // pred_region
    _
  $region5: #{tpu_custom_call.1} parent=0 // pred_fallthru
    _
  // Predicated region
  $region6: #{tpu_custom_call.1} parent=0 // pred_check
    _
  $region7: #{tpu_custom_call.1} parent=0 // pred_check_branch
    %36 = sbr.rel (0) target = $region9
  $region8: #{tpu_custom_call.1} parent=0 // pred_region
    _
  $region9: #{tpu_custom_call.1} parent=0 // pred_fallthru
    _
  // Predicated region
  $region10: #{tpu_custom_call.1} parent=0 // pred_check
    _
  $region11: #{tpu_custom_call.1} parent=0 // pred_check_branch
    %38 = sbr.rel (0) target = $region13
  $region12: #{tpu_custom_call.1} parent=0 // pred_region
    _
  $region13: #{tpu_custom_call.1} parent=0 // pred_fallthru
    _
  // Predicated region
  $region14: #{tpu_custom_call.1} parent=0 // pred_check
    _
  $region15: #{tpu_custom_call.1} parent=0 // pred_check_branch
    %40 = sbr.rel (0) target = $region17
  $region16: #{tpu_custom_call.1} parent=0 // pred_region
    _
  $region17: #{tpu_custom_call.1} parent=0 // pred_fallthru
    _
  // Predicated region
  $region18: #{tpu_custom_call.1} parent=0 // pred_check
    _
  $region19: #{tpu_custom_call.1} parent=0 // pred_check_branch
    %42 = sbr.rel (0) target = $region21
  $region20: #{tpu_custom_call.1} parent=0 // pred_region
    _
  $region21: #{tpu_custom_call.1} parent=0 // pred_fallthru
    _
  // Predicated region
  $region22: #{tpu_custom_call.1} parent=0 // pred_check
    _
  $region23: #{tpu_custom_call.1} parent=0 // pred_check_branch
    %44 = sbr.rel (0) target = $region25
  $region24: #{tpu_custom_call.1} parent=0 // pred_region
    _
  $region25: #{tpu_custom_call.1} parent=0 // pred_fallthru
    _
  // Predicated region
  $region26: #{tpu_custom_call.1} parent=0 // pred_check
    _
  $region27: #{tpu_custom_call.1} parent=0 // pred_check_branch
    %46 = sbr.rel (0) target = $region29
  $region28: #{tpu_custom_call.1} parent=0 // pred_region
    _
  $region29: #{tpu_custom_call.1} parent=0 // pred_fallthru
    _
  // Predicated region
  $region30: #{tpu_custom_call.1} parent=0 // pred_check
    _
  $region31: #{tpu_custom_call.1} parent=0 // pred_check_branch
    %48 = sbr.rel (0) target = $region33
  $region32: #{tpu_custom_call.1} parent=0 // pred_region
    _
  $region33: #{tpu_custom_call.1} parent=0 // pred_fallthru
    _
  // Predicated region
  $region34: #{tpu_custom_call.1} parent=0 // pred_check
    _
  $region35: #{tpu_custom_call.1} parent=0 // pred_check_branch
    %50 = sbr.rel (0) target = $region37
  $region36: #{tpu_custom_call.1} parent=0 // pred_region
    _
  $region37: #{tpu_custom_call.1} parent=0 // pred_fallthru
    _
  // Predicated region
  $region38: #{tpu_custom_call.1} parent=0 // pred_check
    _
  $region39: #{tpu_custom_call.1} parent=0 // pred_check_branch
    %52 = sbr.rel (0) target = $region41
  $region40: #{tpu_custom_call.1} parent=0 // pred_region
    _
  $region41: #{tpu_custom_call.1} parent=0 // pred_fallthru
    _
  // Predicated region
  $region42: #{tpu_custom_call.1} parent=0 // pred_check
    _
  $region43: #{tpu_custom_call.1} parent=0 // pred_check_branch
    %54 = sbr.rel (0) target = $region45
  $region44: #{tpu_custom_call.1} parent=0 // pred_region
    _
  $region45: #{tpu_custom_call.1} parent=0 // pred_fallthru
    _
  // Predicated region
  $region46: #{tpu_custom_call.1} parent=0 // pred_check
    _
  $region47: #{tpu_custom_call.1} parent=0 // pred_check_branch
    %56 = sbr.rel (0) target = $region49
  $region48: #{tpu_custom_call.1} parent=0 // pred_region
    _
  $region49: #{tpu_custom_call.1} parent=0 // pred_fallthru
    _
  // Predicated region
  $region50: #{tpu_custom_call.1} parent=0 // pred_check
    _
  $region51: #{tpu_custom_call.1} parent=0 // pred_check_branch
    %58 = sbr.rel (0) target = $region53
  $region52: #{tpu_custom_call.1} parent=0 // pred_region
    _
  $region53: #{tpu_custom_call.1} parent=0 // pred_fallthru
    _
  // Predicated region
  $region54: #{tpu_custom_call.1} parent=0 // pred_check
    _
  $region55: #{tpu_custom_call.1} parent=0 // pred_check_branch
    %60 = sbr.rel (0) target = $region57
  $region56: #{tpu_custom_call.1} parent=0 // pred_region
    _
  $region57: #{tpu_custom_call.1} parent=0 // pred_fallthru
    _
  // Predicated region
  $region58: #{tpu_custom_call.1} parent=0 // pred_check
    _
  $region59: #{tpu_custom_call.1} parent=0 // pred_check_branch
    %62 = sbr.rel (0) target = $region61
  $region60: #{tpu_custom_call.1} parent=0 // pred_region
    _
  $region61: #{tpu_custom_call.1} parent=0 // pred_fallthru
    _
  // Predicated region
  $region62: #{tpu_custom_call.1} parent=0 // pred_check
    _
  $region63: #{tpu_custom_call.1} parent=0 // pred_check_branch
    %64 = sbr.rel (0) target = $region65
  $region64: #{tpu_custom_call.1} parent=0 // pred_region
    _
  $region65: #{tpu_custom_call.1} parent=0 // pred_fallthru
    _
  // Predicated region
  $region66: #{tpu_custom_call.1} parent=0 // pred_check
    _
  $region67: #{tpu_custom_call.1} parent=0 // pred_check_branch
    %66 = sbr.rel (0) target = $region69
  $region68: #{tpu_custom_call.1} parent=0 // pred_region
    _
  $region69: #{tpu_custom_call.1} parent=0 // pred_fallthru
    _
  // Predicated region
  $region70: #{tpu_custom_call.1} parent=0 // pred_check
    _
  $region71: #{tpu_custom_call.1} parent=0 // pred_check_branch
    %68 = sbr.rel (0) target = $region73
  $region72: #{tpu_custom_call.1} parent=0 // pred_region
    _
  $region73: #{tpu_custom_call.1} parent=0 // pred_fallthru
    _
  // Predicated region
  $region74: #{tpu_custom_call.1} parent=0 // pred_check
    _
  $region75: #{tpu_custom_call.1} parent=0 // pred_check_branch
    %70 = sbr.rel (0) target = $region77
  $region76: #{tpu_custom_call.1} parent=0 // pred_region
    _
  $region77: #{tpu_custom_call.1} parent=0 // pred_fallthru
    _
  // Predicated region
  $region78: #{tpu_custom_call.1} parent=0 // pred_check
    _
  $region79: #{tpu_custom_call.1} parent=0 // pred_check_branch
    %72 = sbr.rel (0) target = $region81
  $region80: #{tpu_custom_call.1} parent=0 // pred_region
    _
  $region81: #{tpu_custom_call.1} parent=0 // pred_fallthru
    _
  // Predicated region
  $region82: #{tpu_custom_call.1} parent=0 // pred_check
    _
  $region83: #{tpu_custom_call.1} parent=0 // pred_check_branch
    %74 = sbr.rel (0) target = $region85
  $region84: #{tpu_custom_call.1} parent=0 // pred_region
    _
  $region85: #{tpu_custom_call.1} parent=0 // pred_fallthru
    _
  // Predicated region
  $region86: #{tpu_custom_call.1} parent=0 // pred_check
    _
  $region87: #{tpu_custom_call.1} parent=0 // pred_check_branch
    %76 = sbr.rel (0) target = $region89
  $region88: #{tpu_custom_call.1} parent=0 // pred_region
    _
  $region89: #{tpu_custom_call.1} parent=0 // pred_fallthru
    _
  // Predicated region
  $region90: #{tpu_custom_call.1} parent=0 // pred_check
    _
  $region91: #{tpu_custom_call.1} parent=0 // pred_check_branch
    %78 = sbr.rel (0) target = $region93
  $region92: #{tpu_custom_call.1} parent=0 // pred_region
    _
  $region93: #{tpu_custom_call.1} parent=0 // pred_fallthru
    _
  // Predicated region
  $region94: #{tpu_custom_call.1} parent=0 // pred_check
    _
  $region95: #{tpu_custom_call.1} parent=0 // pred_check_branch
    %80 = sbr.rel (0) target = $region97
  $region96: #{tpu_custom_call.1} parent=0 // pred_region
    _
  $region97: #{tpu_custom_call.1} parent=0 // pred_fallthru
    _
  // Predicated region
  $region98: #{tpu_custom_call.1} parent=0 // pred_check
    _
  $region99: #{tpu_custom_call.1} parent=0 // pred_check_branch
    %82 = sbr.rel (0) target = $region101
  $region100: #{tpu_custom_call.1} parent=0 // pred_region
    _
  $region101: #{tpu_custom_call.1} parent=0 // pred_fallthru
    _
  // Predicated region
  $region102: #{tpu_custom_call.1} parent=0 // pred_check
    _
  $region103: #{tpu_custom_call.1} parent=0 // pred_check_branch
    %84 = sbr.rel (0) target = $region105
  $region104: #{tpu_custom_call.1} parent=0 // pred_region
    _
  $region105: #{tpu_custom_call.1} parent=0 // pred_fallthru
    _
  // Predicated region
  $region106: #{tpu_custom_call.1} parent=0 // pred_check
    _
  $region107: #{tpu_custom_call.1} parent=0 // pred_check_branch
    %86 = sbr.rel (0) target = $region109
  $region108: #{tpu_custom_call.1} parent=0 // pred_region
    _
  $region109: #{tpu_custom_call.1} parent=0 // pred_fallthru
    _
  // Predicated region
  $region110: #{tpu_custom_call.1} parent=0 // pred_check
    _
  $region111: #{tpu_custom_call.1} parent=0 // pred_check_branch
    %88 = sbr.rel (0) target = $region113
  $region112: #{tpu_custom_call.1} parent=0 // pred_region
    _
  $region113: #{tpu_custom_call.1} parent=0 // pred_fallthru
    _
  %v89 = vld [vmem:[%s1] sm:$0xff]
  %v90 = vld [vmem:[%s1 + $0x8] sm:$0xff]
  %v91 = vld [vmem:[%s2] sm:$0x1]
  %vm92 = vcmp.gt.f32.partialorder %v89, 0.0
  %vm93 = vcmp.gt.f32.partialorder %v90, 0.0
  %vm94 = vcmask 64512
  %v95 = vsel %vm94, %v89, 0.0
  %v96 = vsel %vm94, %v90, 0.0
  %v97 = vadd.f32 %v95, %v96
  %v98 = vrot.slane %v97, 4
  %v99 = vadd.f32 %v97, %v98
  %v100 = vrot.slane %v99, 2
  %v101 = vadd.f32 %v99, %v100
  %v102 = vrot.slane %v101, 1
  %v103 = vadd.f32 %v101, %v102
  %vm104 = vcmp.gt.f32.partialorder %v103, 0.0
  %v105 = vrcp.pop %v103
  %v106 = vmul.f32 1.0, %v105
  %v107 = vsel %vm104, %v106, 0.0
  %v109 = vlaneseq
  %v110 = vshrl.u32 %v109, 7
  %v111 = vsub.s32 0, %v110
  %v112 = vrot.slane %v91, %v111
  %v114 = vmul.f32 %v89, %v112
  %v115 = vmul.f32 %v90, %v112
  %v116 = vsel %vm94, %v114, 0.0
  %117 = vadd.xlane.f32.xlu0 %v116
  %v118 = vpop.xlane.xlu0 %117
  %v119 = vsel %vm94, %v115, 0.0
  %120 = vadd.xlane.f32.xlu0 %v119
  %v121 = vpop.xlane.xlu0 %120
  %vm122 = vcmp.gt.f32.partialorder %v118, 0.0
  %vm123 = vcmp.gt.f32.partialorder %v121, 0.0
  %v124 = vrcp.pop %v118
  %v125 = vmul.f32 1.0, %v124
  %v126 = vrcp.pop %v121
  %v127 = vmul.f32 1.0, %v126
  %v128 = vsel %vm122, %v125, 0.0
  %v129 = vsel %vm123, %v127, 0.0
  %v130 = vld [vmem:[%s0] sm:$0xff]
  %v131 = vld [vmem:[%s0 + $0x8] sm:$0xff]
  %v132 = vld [vmem:[%s3] sm:$0xff]
  %v133 = vld [vmem:[%s4] sm:$0x3f]
  %v134 = vld [vmem:[%s5] sm:$0x1]
  %v136 = vlaneseq
  %v137 = vshrl.u32 %v136, 7
  %v138 = vsub.s32 0, %v137
  %v139 = vrot.slane %v134, %v138
  %vm141 = vcmask 48128
  %v143 = vsel %vm141, %v132, 0
  %vm145 = vcmask 1045504
  %v147 = vsel %vm145, %v133, 0
  %149 = vmatprep.subr.mxu0 0.0
  %150 = vmatpush1.msra.mxu0 0.0
  %151 = vmatprep.subr.mxu0 0.0
  %152 = vmatpush1.msra.mxu0 0.0
  %153 = vmatprep.subr.mxu0 0.0
  %154 = vmatpush1.msra.mxu0 0.0
  %155 = vmatprep.subr.mxu0 0.0
  %156 = vmatpush1.msra.mxu0 0.0
  %157 = vmatprep.subr.mxu0 0.0
  %158 = vmatpush1.msra.mxu0 0.0
  %159 = vmatprep.subr.mxu0 0.0
  %160 = vmatpush1.msra.mxu0 0.0
  %161 = vmatprep.subr.mxu0 0.0
  %162 = vmatpush1.msra.mxu0 0.0
  %163 = vmatprep.subr.mxu0 0.0
  %164 = vmatpush1.msra.mxu0 0.0
  %165 = vmatprep.subr.mxu0 0.0
  %166 = vmatpush1.msra.mxu0 0.0
  %167 = vmatprep.subr.mxu0 0.0
  %168 = vmatpush1.msra.mxu0 0.0
  %169 = vmatprep.subr.mxu0 0.0
  %170 = vmatpush1.msra.mxu0 0.0
  %171 = vmatprep.subr.mxu0 0.0
  %172 = vmatpush1.msra.mxu0 0.0
  %173 = vmatprep.subr.mxu0 0.0
  %174 = vmatpush1.msra.mxu0 0.0
  %175 = vmatprep.subr.mxu0 0.0
  %176 = vmatpush1.msra.mxu0 0.0
  %177 = vmatprep.subr.mxu0 0.0
  %178 = vmatpush1.msra.mxu0 0.0
  %179 = vmatprep.subr.mxu0 0.0
  %180 = vmatpush1.msra.mxu0 %v147
  %181 = vmatprep.subr.mxu0 0.0
  %182 = vmatpush2.msra.mxu0 0.0
  %183 = vmatprep.subr.mxu0 0.0
  %184 = vmatpush2.msra.mxu0 0.0
  %185 = vmatprep.subr.mxu0 0.0
  %186 = vmatpush2.msra.mxu0 0.0
  %187 = vmatprep.subr.mxu0 0.0
  %188 = vmatpush2.msra.mxu0 0.0
  %189 = vmatprep.subr.mxu0 0.0
  %190 = vmatpush2.msra.mxu0 0.0
  %191 = vmatprep.subr.mxu0 0.0
  %192 = vmatpush2.msra.mxu0 0.0
  %193 = vmatprep.subr.mxu0 0.0
  %194 = vmatpush2.msra.mxu0 0.0
  %195 = vmatprep.subr.mxu0 0.0
  %196 = vmatpush2.msra.mxu0 0.0
  %197 = vmatprep.subr.mxu0 0.0
  %198 = vmatpush2.msra.mxu0 0.0
  %199 = vmatprep.subr.mxu0 0.0
  %200 = vmatpush2.msra.mxu0 0.0
  %201 = vmatprep.subr.mxu0 0.0
  %202 = vmatpush2.msra.mxu0 0.0
  %203 = vmatprep.subr.mxu0 0.0
  %204 = vmatpush2.msra.mxu0 0.0
  %205 = vmatprep.subr.mxu0 0.0
  %206 = vmatpush2.msra.mxu0 0.0
  %207 = vmatprep.subr.mxu0 0.0
  %208 = vmatpush2.msra.mxu0 0.0
  %209 = vmatprep.subr.mxu0 0.0
  %210 = vmatpush2.msra.mxu0 0.0
  %211 = vmatprep.subr.mxu0 0.0
  %212 = vmatpush2.msra.mxu0 0.0
  %213 = vmatprep.mubr.f32.mxu0 0.0
  %214 = vmatmul.mubr.f32.gmra.mxu0 %v143
  %v215 = vpop.f32.mrf.mxu0
  %v216 = vadd.f32 %v139, %v215
  %v217 = vpop.f32.mrf.mxu0
  %218 = vdwg.mxu0
  %v219 = vld [vmem:[%s6] sm:$0xff]
  %v220 = vld [vmem:[%s7] sm:$0xff]
  %v221 = vld [vmem:[%s7 + $0x8] sm:$0xff]
  %v222 = vld [vmem:[%s8] sm:$0x3]
  %v223 = vld [vmem:[%s9] sm:$0x1]
  %v225 = vsel %vm94, %v130, 0
  %v228 = vsel %vm94, %v131, 0
  %v231 = vsel %vm94, %v216, 0
  %233 = vmatprep.subr.mxu0 0.0
  %234 = vmatpush1.msra.mxu0 0.0
  %235 = vmatprep.subr.mxu0 0.0
  %236 = vmatpush1.msra.mxu0 0.0
  %237 = vmatprep.subr.mxu0 0.0
  %238 = vmatpush1.msra.mxu0 0.0
  %239 = vmatprep.subr.mxu0 0.0
  %240 = vmatpush1.msra.mxu0 0.0
  %241 = vmatprep.subr.mxu0 0.0
  %242 = vmatpush1.msra.mxu0 0.0
  %243 = vmatprep.subr.mxu0 0.0
  %244 = vmatpush1.msra.mxu0 0.0
  %245 = vmatprep.subr.mxu0 0.0
  %246 = vmatpush1.msra.mxu0 0.0
  %247 = vmatprep.subr.mxu0 0.0
  %248 = vmatpush1.msra.mxu0 0.0
  %249 = vmatprep.subr.mxu0 0.0
  %250 = vmatpush1.msra.mxu0 0.0
  %251 = vmatprep.subr.mxu0 0.0
  %252 = vmatpush1.msra.mxu0 0.0
  %253 = vmatprep.subr.mxu0 0.0
  %254 = vmatpush1.msra.mxu0 0.0
  %255 = vmatprep.subr.mxu0 0.0
  %256 = vmatpush1.msra.mxu0 0.0
  %257 = vmatprep.subr.mxu0 0.0
  %258 = vmatpush1.msra.mxu0 0.0
  %259 = vmatprep.subr.mxu0 0.0
  %260 = vmatpush1.msra.mxu0 0.0
  %261 = vmatprep.subr.mxu0 0.0
  %262 = vmatpush1.msra.mxu0 0.0
  %263 = vmatprep.subr.mxu0 0.0
  %264 = vmatpush1.msra.mxu0 %v219
  %265 = vmatprep.subr.mxu0 0.0
  %266 = vmatpush2.msra.mxu0 0.0
  %267 = vmatprep.subr.mxu0 0.0
  %268 = vmatpush2.msra.mxu0 0.0
  %269 = vmatprep.subr.mxu0 0.0
  %270 = vmatpush2.msra.mxu0 0.0
  %271 = vmatprep.subr.mxu0 0.0
  %272 = vmatpush2.msra.mxu0 0.0
  %273 = vmatprep.subr.mxu0 0.0
  %274 = vmatpush2.msra.mxu0 0.0
  %275 = vmatprep.subr.mxu0 0.0
  %276 = vmatpush2.msra.mxu0 0.0
  %277 = vmatprep.subr.mxu0 0.0
  %278 = vmatpush2.msra.mxu0 0.0
  %279 = vmatprep.subr.mxu0 0.0
  %280 = vmatpush2.msra.mxu0 0.0
  %281 = vmatprep.subr.mxu0 0.0
  %282 = vmatpush2.msra.mxu0 0.0
  %283 = vmatprep.subr.mxu0 0.0
  %284 = vmatpush2.msra.mxu0 0.0
  %285 = vmatprep.subr.mxu0 0.0
  %286 = vmatpush2.msra.mxu0 0.0
  %287 = vmatprep.subr.mxu0 0.0
  %288 = vmatpush2.msra.mxu0 0.0
  %289 = vmatprep.subr.mxu0 0.0
  %290 = vmatpush2.msra.mxu0 0.0
  %291 = vmatprep.subr.mxu0 0.0
  %292 = vmatpush2.msra.mxu0 0.0
  %293 = vmatprep.subr.mxu0 0.0
  %294 = vmatpush2.msra.mxu0 0.0
  %295 = vmatprep.subr.mxu0 0.0
  %296 = vmatpush2.msra.mxu0 0.0
  %297 = vmatprep.mubr.f32.mxu0 0.0
  %298 = vmatmul.mubr.f32.gmra.mxu0 %v225
  %v299 = vpop.f32.mrf.mxu0
  %v300 = vadd.f32 0.0, %v299
  %v301 = vpop.f32.mrf.mxu0
  %302 = vmatprep.mubr.f32.mxu0 0.0
  %303 = vmatmul.mubr.f32.gmra.mxu0 %v228
  %v304 = vpop.f32.mrf.mxu0
  %v305 = vadd.f32 0.0, %v304
  %v306 = vpop.f32.mrf.mxu0
  %307 = vmatprep.mubr.f32.mxu0 0.0
  %308 = vmatmul.mubr.f32.gmra.mxu0 %v231
  %v309 = vpop.f32.mrf.mxu0
  %v310 = vadd.f32 0.0, %v309
  %v311 = vpop.f32.mrf.mxu0
  %312 = vdwg.mxu0
  %vm313 = vcmask 130048
  %v315 = vsel %vm313, %v300, 0
  %v318 = vsel %vm313, %v305, 0
  %320 = vmatprep.subr.mxu0 0.0
  %321 = vmatpush1.msra.mxu0 0.0
  %322 = vmatprep.subr.mxu0 0.0
  %323 = vmatpush1.msra.mxu0 0.0
  %324 = vmatprep.subr.mxu0 0.0
  %325 = vmatpush1.msra.mxu0 0.0
  %326 = vmatprep.subr.mxu0 0.0
  %327 = vmatpush1.msra.mxu0 0.0
  %328 = vmatprep.subr.mxu0 0.0
  %329 = vmatpush1.msra.mxu0 0.0
  %330 = vmatprep.subr.mxu0 0.0
  %331 = vmatpush1.msra.mxu0 0.0
  %332 = vmatprep.subr.mxu0 0.0
  %333 = vmatpush1.msra.mxu0 0.0
  %334 = vmatprep.subr.mxu0 0.0
  %335 = vmatpush1.msra.mxu0 0.0
  %336 = vmatprep.subr.mxu0 0.0
  %337 = vmatpush1.msra.mxu0 0.0
  %338 = vmatprep.subr.mxu0 0.0
  %339 = vmatpush1.msra.mxu0 0.0
  %340 = vmatprep.subr.mxu0 0.0
  %341 = vmatpush1.msra.mxu0 0.0
  %342 = vmatprep.subr.mxu0 0.0
  %343 = vmatpush1.msra.mxu0 0.0
  %344 = vmatprep.subr.mxu0 0.0
  %345 = vmatpush1.msra.mxu0 0.0
  %346 = vmatprep.subr.mxu0 0.0
  %347 = vmatpush1.msra.mxu0 0.0
  %348 = vmatprep.subr.mxu0 0.0
  %349 = vmatpush1.msra.mxu0 %v221
  %350 = vmatprep.subr.mxu0 0.0
  %351 = vmatpush1.msra.mxu0 %v220
  %352 = vmatprep.subr.mxu0 0.0
  %353 = vmatpush2.msra.mxu0 0.0
  %354 = vmatprep.subr.mxu0 0.0
  %355 = vmatpush2.msra.mxu0 0.0
  %356 = vmatprep.subr.mxu0 0.0
  %357 = vmatpush2.msra.mxu0 0.0
  %358 = vmatprep.subr.mxu0 0.0
  %359 = vmatpush2.msra.mxu0 0.0
  %360 = vmatprep.subr.mxu0 0.0
  %361 = vmatpush2.msra.mxu0 0.0
  %362 = vmatprep.subr.mxu0 0.0
  %363 = vmatpush2.msra.mxu0 0.0
  %364 = vmatprep.subr.mxu0 0.0
  %365 = vmatpush2.msra.mxu0 0.0
  %366 = vmatprep.subr.mxu0 0.0
  %367 = vmatpush2.msra.mxu0 0.0
  %368 = vmatprep.subr.mxu0 0.0
  %369 = vmatpush2.msra.mxu0 0.0
  %370 = vmatprep.subr.mxu0 0.0
  %371 = vmatpush2.msra.mxu0 0.0
  %372 = vmatprep.subr.mxu0 0.0
  %373 = vmatpush2.msra.mxu0 0.0
  %374 = vmatprep.subr.mxu0 0.0
  %375 = vmatpush2.msra.mxu0 0.0
  %376 = vmatprep.subr.mxu0 0.0
  %377 = vmatpush2.msra.mxu0 0.0
  %378 = vmatprep.subr.mxu0 0.0
  %379 = vmatpush2.msra.mxu0 0.0
  %380 = vmatprep.subr.mxu0 0.0
  %381 = vmatpush2.msra.mxu0 0.0
  %382 = vmatprep.subr.mxu0 0.0
  %383 = vmatpush2.msra.mxu0 0.0
  %384 = vmatprep.mubr.f32.mxu0 0.0
  %385 = vmatmul.mubr.f32.gmra.mxu0 %v315
  %v386 = vpop.f32.mrf.mxu0
  %v387 = vadd.f32 0.0, %v386
  %v388 = vpop.f32.mrf.mxu0
  %389 = vmatprep.mubr.f32.mxu0 0.0
  %390 = vmatmul.mubr.f32.gmra.mxu0 %v318
  %v391 = vpop.f32.mrf.mxu0
  %v392 = vadd.f32 0.0, %v391
  %v393 = vpop.f32.mrf.mxu0
  %394 = vdwg.mxu0
  %v396 = vsel %vm313, %v222, 0
  %v399 = vsel %vm313, %v310, 0
  %401 = vmatprep.subr.mxu0 0.0
  %402 = vmatpush1.xpose.msra.mxu0 0.0
  %403 = vmatprep.subr.mxu0 0.0
  %404 = vmatpush1.xpose.msra.mxu0 0.0
  %405 = vmatprep.subr.mxu0 0.0
  %406 = vmatpush1.xpose.msra.mxu0 0.0
  %407 = vmatprep.subr.mxu0 0.0
  %408 = vmatpush1.xpose.msra.mxu0 0.0
  %409 = vmatprep.subr.mxu0 0.0
  %410 = vmatpush1.xpose.msra.mxu0 0.0
  %411 = vmatprep.subr.mxu0 0.0
  %412 = vmatpush1.xpose.msra.mxu0 0.0
  %413 = vmatprep.subr.mxu0 0.0
  %414 = vmatpush1.xpose.msra.mxu0 0.0
  %415 = vmatprep.subr.mxu0 0.0
  %416 = vmatpush1.xpose.msra.mxu0 0.0
  %417 = vmatprep.subr.mxu0 0.0
  %418 = vmatpush1.xpose.msra.mxu0 0.0
  %419 = vmatprep.subr.mxu0 0.0
  %420 = vmatpush1.xpose.msra.mxu0 0.0
  %421 = vmatprep.subr.mxu0 0.0
  %422 = vmatpush1.xpose.msra.mxu0 0.0
  %423 = vmatprep.subr.mxu0 0.0
  %424 = vmatpush1.xpose.msra.mxu0 0.0
  %425 = vmatprep.subr.mxu0 0.0
  %426 = vmatpush1.xpose.msra.mxu0 0.0
  %427 = vmatprep.subr.mxu0 0.0
  %428 = vmatpush1.xpose.msra.mxu0 0.0
  %429 = vmatprep.subr.mxu0 0.0
  %430 = vmatpush1.xpose.msra.mxu0 0.0
  %431 = vmatprep.subr.mxu0 0.0
  %432 = vmatpush1.xpose.msra.mxu0 %v399
  %433 = vmatprep.subr.mxu0 0.0
  %434 = vmatpush2.xpose.msra.mxu0 0.0
  %435 = vmatprep.subr.mxu0 0.0
  %436 = vmatpush2.xpose.msra.mxu0 0.0
  %437 = vmatprep.subr.mxu0 0.0
  %438 = vmatpush2.xpose.msra.mxu0 0.0
  %439 = vmatprep.subr.mxu0 0.0
  %440 = vmatpush2.xpose.msra.mxu0 0.0
  %441 = vmatprep.subr.mxu0 0.0
  %442 = vmatpush2.xpose.msra.mxu0 0.0
  %443 = vmatprep.subr.mxu0 0.0
  %444 = vmatpush2.xpose.msra.mxu0 0.0
  %445 = vmatprep.subr.mxu0 0.0
  %446 = vmatpush2.xpose.msra.mxu0 0.0
  %447 = vmatprep.subr.mxu0 0.0
  %448 = vmatpush2.xpose.msra.mxu0 0.0
  %449 = vmatprep.subr.mxu0 0.0
  %450 = vmatpush2.xpose.msra.mxu0 0.0
  %451 = vmatprep.subr.mxu0 0.0
  %452 = vmatpush2.xpose.msra.mxu0 0.0
  %453 = vmatprep.subr.mxu0 0.0
  %454 = vmatpush2.xpose.msra.mxu0 0.0
  %455 = vmatprep.subr.mxu0 0.0
  %456 = vmatpush2.xpose.msra.mxu0 0.0
  %457 = vmatprep.subr.mxu0 0.0
  %458 = vmatpush2.xpose.msra.mxu0 0.0
  %459 = vmatprep.subr.mxu0 0.0
  %460 = vmatpush2.xpose.msra.mxu0 0.0
  %461 = vmatprep.subr.mxu0 0.0
  %462 = vmatpush2.xpose.msra.mxu0 0.0
  %463 = vmatprep.subr.mxu0 0.0
  %464 = vmatpush2.xpose.msra.mxu0 0.0
  %465 = vmatprep.mubr.f32.mxu0 0.0
  %466 = vmatmul.mubr.f32.gmra.mxu0 %v396
  %v467 = vpop.f32.mrf.mxu0
  %v468 = vadd.f32 0.0, %v467
  %v469 = vpop.f32.mrf.mxu0
  %470 = vdwg.mxu0
  %472 = vset.pattern.permute.xlu0 0
  %473 = vperm.xlu0 %472, %v387
  %v474 = vpop.permute.xlu0 %473
  %477 = vset.pattern.permute.xlu0 0
  %478 = vperm.xlu0 %477, %v392
  %v479 = vpop.permute.xlu0 %478
  %v481 = vlaneseq
  %v482 = vshrl.u32 %v481, 7
  %v483 = vsub.s32 0, %v482
  %v484 = vrot.slane %v468, %v483
  %v485 = vadd.f32 %v474, %v484
  %v486 = vadd.f32 %v479, %v484
  %v487 = vmax.f32 %v485, 0.0
  %v488 = vmax.f32 %v486, 0.0
  %v489 = vsel %vm92, %v487, -1e+30
  %v490 = vsel %vm93, %v488, -1e+30
  %v491 = vsel %vm94, %v489, -inf
  %v492 = vsel %vm94, %v490, -inf
  %v493 = vmax.f32 %v491, %v492
  %v494 = vrot.slane %v493, 4
  %v495 = vmax.f32 %v493, %v494
  %v496 = vrot.slane %v495, 2
  %v497 = vmax.f32 %v495, %v496
  %v498 = vrot.slane %v497, 1
  %v499 = vmax.f32 %v497, %v498
  %v500 = vsub.f32 %v489, %v499
  %v501 = vsub.f32 %v490, %v499
  %v502 = vmul.f32 %v500, 1.442695
  %v503 = vpow.pop %v502
  %v504 = vmul.f32 %v501, 1.442695
  %v505 = vpow.pop %v504
  %v506 = vsel %vm92, %v503, 0.0
  %v507 = vsel %vm93, %v505, 0.0
  %v508 = vsel %vm94, %v506, 0.0
  %v509 = vsel %vm94, %v507, 0.0
  %v510 = vadd.f32 %v508, %v509
  %v511 = vrot.slane %v510, 4
  %v512 = vadd.f32 %v510, %v511
  %v513 = vrot.slane %v512, 2
  %v514 = vadd.f32 %v512, %v513
  %v515 = vrot.slane %v514, 1
  %v516 = vadd.f32 %v514, %v515
  %vm517 = vcmp.gt.f32.partialorder %v516, 0.0
  %v518 = vrcp.pop %v516
  %v519 = vmul.f32 1.0, %v518
  %v520 = vsel %vm517, %v519, 0.0
  %v521 = vmul.f32 %v506, %v520
  %v522 = vmul.f32 %v507, %v520
  %v523 = vmul.f32 %v521, %v107
  %v524 = vmul.f32 %v522, %v107
  %525 = vxpose.xlu0.b32.start [1/16] %v523, 128
  %526 = vxpose.xlu0.b32.cont [2/16] %v524, 128
  %527 = vxpose.xlu0.b32.cont [3/16] 0.0, 128
  %528 = vxpose.xlu0.b32.cont [4/16] 0.0, 128
  %529 = vxpose.xlu0.b32.cont [5/16] 0.0, 128
  %530 = vxpose.xlu0.b32.cont [6/16] 0.0, 128
  %531 = vxpose.xlu0.b32.cont [7/16] 0.0, 128
  %532 = vxpose.xlu0.b32.cont [8/16] 0.0, 128
  %533 = vxpose.xlu0.b32.cont [9/16] 0.0, 128
  %534 = vxpose.xlu0.b32.cont [10/16] 0.0, 128
  %535 = vxpose.xlu0.b32.cont [11/16] 0.0, 128
  %536 = vxpose.xlu0.b32.cont [12/16] 0.0, 128
  %537 = vxpose.xlu0.b32.cont [13/16] 0.0, 128
  %538 = vxpose.xlu0.b32.cont [14/16] 0.0, 128
  %539 = vxpose.xlu0.b32.cont [15/16] 0.0, 128
  %540 = vxpose.xlu0.b32.end [16/16] 0.0, 128
  %v541 = vpop.trf.xlu0
  %v542 = vpop.trf.xlu0
  %v543 = vpop.trf.xlu0
  %v544 = vpop.trf.xlu0
  %v545 = vpop.trf.xlu0
  %v546 = vpop.trf.xlu0
  %v547 = vpop.trf.xlu0
  %v548 = vpop.trf.xlu0
  %v549 = vpop.trf.xlu0
  %v550 = vpop.trf.xlu0
  %v551 = vpop.trf.xlu0
  %v552 = vpop.trf.xlu0
  %v553 = vpop.trf.xlu0
  %v554 = vpop.trf.xlu0
  %v555 = vpop.trf.xlu0
  %v556 = vpop.trf.xlu0
  %v558 = vsel %vm313, %v541, 0
  %560 = vmatprep.subr.mxu0 0.0
  %561 = vmatpush1.msra.mxu0 0.0
  %562 = vmatprep.subr.mxu0 0.0
  %563 = vmatpush1.msra.mxu0 0.0
  %564 = vmatprep.subr.mxu0 0.0
  %565 = vmatpush1.msra.mxu0 0.0
  %566 = vmatprep.subr.mxu0 0.0
  %567 = vmatpush1.msra.mxu0 0.0
  %568 = vmatprep.subr.mxu0 0.0
  %569 = vmatpush1.msra.mxu0 0.0
  %570 = vmatprep.subr.mxu0 0.0
  %571 = vmatpush1.msra.mxu0 0.0
  %572 = vmatprep.subr.mxu0 0.0
  %573 = vmatpush1.msra.mxu0 0.0
  %574 = vmatprep.subr.mxu0 0.0
  %575 = vmatpush1.msra.mxu0 0.0
  %576 = vmatprep.subr.mxu0 0.0
  %577 = vmatpush1.msra.mxu0 0.0
  %578 = vmatprep.subr.mxu0 0.0
  %579 = vmatpush1.msra.mxu0 0.0
  %580 = vmatprep.subr.mxu0 0.0
  %581 = vmatpush1.msra.mxu0 0.0
  %582 = vmatprep.subr.mxu0 0.0
  %583 = vmatpush1.msra.mxu0 0.0
  %584 = vmatprep.subr.mxu0 0.0
  %585 = vmatpush1.msra.mxu0 0.0
  %586 = vmatprep.subr.mxu0 0.0
  %587 = vmatpush1.msra.mxu0 0.0
  %588 = vmatprep.subr.mxu0 0.0
  %589 = vmatpush1.msra.mxu0 %v305
  %590 = vmatprep.subr.mxu0 0.0
  %591 = vmatpush1.msra.mxu0 %v300
  %592 = vmatprep.subr.mxu0 0.0
  %593 = vmatpush2.msra.mxu0 0.0
  %594 = vmatprep.subr.mxu0 0.0
  %595 = vmatpush2.msra.mxu0 0.0
  %596 = vmatprep.subr.mxu0 0.0
  %597 = vmatpush2.msra.mxu0 0.0
  %598 = vmatprep.subr.mxu0 0.0
  %599 = vmatpush2.msra.mxu0 0.0
  %600 = vmatprep.subr.mxu0 0.0
  %601 = vmatpush2.msra.mxu0 0.0
  %602 = vmatprep.subr.mxu0 0.0
  %603 = vmatpush2.msra.mxu0 0.0
  %604 = vmatprep.subr.mxu0 0.0
  %605 = vmatpush2.msra.mxu0 0.0
  %606 = vmatprep.subr.mxu0 0.0
  %607 = vmatpush2.msra.mxu0 0.0
  %608 = vmatprep.subr.mxu0 0.0
  %609 = vmatpush2.msra.mxu0 0.0
  %610 = vmatprep.subr.mxu0 0.0
  %611 = vmatpush2.msra.mxu0 0.0
  %612 = vmatprep.subr.mxu0 0.0
  %613 = vmatpush2.msra.mxu0 0.0
  %614 = vmatprep.subr.mxu0 0.0
  %615 = vmatpush2.msra.mxu0 0.0
  %616 = vmatprep.subr.mxu0 0.0
  %617 = vmatpush2.msra.mxu0 0.0
  %618 = vmatprep.subr.mxu0 0.0
  %619 = vmatpush2.msra.mxu0 0.0
  %620 = vmatprep.subr.mxu0 0.0
  %621 = vmatpush2.msra.mxu0 0.0
  %622 = vmatprep.subr.mxu0 0.0
  %623 = vmatpush2.msra.mxu0 0.0
  %624 = vmatprep.mubr.f32.mxu0 0.0
  %625 = vmatmul.mubr.f32.gmra.mxu0 %v558
  %v626 = vpop.f32.mrf.mxu0
  %v627 = vadd.f32 0.0, %v626
  %v628 = vpop.f32.mrf.mxu0
  %629 = vdwg.mxu0
  %v631 = vsel %vm94, %v521, 0
  %v634 = vsel %vm94, %v522, 0
  %636 = vmatprep.subr.mxu0 0.0
  %637 = vmatpush1.msra.mxu0 0.0
  %638 = vmatprep.subr.mxu0 0.0
  %639 = vmatpush1.msra.mxu0 0.0
  %640 = vmatprep.subr.mxu0 0.0
  %641 = vmatpush1.msra.mxu0 0.0
  %642 = vmatprep.subr.mxu0 0.0
  %643 = vmatpush1.msra.mxu0 0.0
  %644 = vmatprep.subr.mxu0 0.0
  %645 = vmatpush1.msra.mxu0 0.0
  %646 = vmatprep.subr.mxu0 0.0
  %647 = vmatpush1.msra.mxu0 0.0
  %648 = vmatprep.subr.mxu0 0.0
  %649 = vmatpush1.msra.mxu0 0.0
  %650 = vmatprep.subr.mxu0 0.0
  %651 = vmatpush1.msra.mxu0 0.0
  %652 = vmatprep.subr.mxu0 0.0
  %653 = vmatpush1.msra.mxu0 0.0
  %654 = vmatprep.subr.mxu0 0.0
  %655 = vmatpush1.msra.mxu0 0.0
  %656 = vmatprep.subr.mxu0 0.0
  %657 = vmatpush1.msra.mxu0 0.0
  %658 = vmatprep.subr.mxu0 0.0
  %659 = vmatpush1.msra.mxu0 0.0
  %660 = vmatprep.subr.mxu0 0.0
  %661 = vmatpush1.msra.mxu0 0.0
  %662 = vmatprep.subr.mxu0 0.0
  %663 = vmatpush1.msra.mxu0 0.0
  %664 = vmatprep.subr.mxu0 0.0
  %665 = vmatpush1.msra.mxu0 0.0
  %666 = vmatprep.subr.mxu0 0.0
  %667 = vmatpush1.msra.mxu0 %v627
  %668 = vmatprep.subr.mxu0 0.0
  %669 = vmatpush2.msra.mxu0 0.0
  %670 = vmatprep.subr.mxu0 0.0
  %671 = vmatpush2.msra.mxu0 0.0
  %672 = vmatprep.subr.mxu0 0.0
  %673 = vmatpush2.msra.mxu0 0.0
  %674 = vmatprep.subr.mxu0 0.0
  %675 = vmatpush2.msra.mxu0 0.0
  %676 = vmatprep.subr.mxu0 0.0
  %677 = vmatpush2.msra.mxu0 0.0
  %678 = vmatprep.subr.mxu0 0.0
  %679 = vmatpush2.msra.mxu0 0.0
  %680 = vmatprep.subr.mxu0 0.0
  %681 = vmatpush2.msra.mxu0 0.0
  %682 = vmatprep.subr.mxu0 0.0
  %683 = vmatpush2.msra.mxu0 0.0
  %684 = vmatprep.subr.mxu0 0.0
  %685 = vmatpush2.msra.mxu0 0.0
  %686 = vmatprep.subr.mxu0 0.0
  %687 = vmatpush2.msra.mxu0 0.0
  %688 = vmatprep.subr.mxu0 0.0
  %689 = vmatpush2.msra.mxu0 0.0
  %690 = vmatprep.subr.mxu0 0.0
  %691 = vmatpush2.msra.mxu0 0.0
  %692 = vmatprep.subr.mxu0 0.0
  %693 = vmatpush2.msra.mxu0 0.0
  %694 = vmatprep.subr.mxu0 0.0
  %695 = vmatpush2.msra.mxu0 0.0
  %696 = vmatprep.subr.mxu0 0.0
  %697 = vmatpush2.msra.mxu0 0.0
  %698 = vmatprep.subr.mxu0 0.0
  %699 = vmatpush2.msra.mxu0 0.0
  %700 = vmatprep.mubr.f32.mxu0 0.0
  %701 = vmatmul.mubr.f32.gmra.mxu0 %v631
  %v702 = vpop.f32.mrf.mxu0
  %v703 = vadd.f32 0.0, %v702
  %v704 = vpop.f32.mrf.mxu0
  %705 = vmatprep.mubr.f32.mxu0 0.0
  %706 = vmatmul.mubr.f32.gmra.mxu0 %v634
  %v707 = vpop.f32.mrf.mxu0
  %v708 = vadd.f32 0.0, %v707
  %v709 = vpop.f32.mrf.mxu0
  %710 = vdwg.mxu0
  %v711 = vmul.f32 %v703, %v128
  %v712 = vmul.f32 %v708, %v129
  %v714 = vlaneseq
  %v715 = vshrl.u32 %v714, 7
  %v716 = vsub.s32 0, %v715
  %v717 = vrot.slane %v223, %v716
  %v719 = vadd.f32 %v711, %v717
  %v720 = vadd.f32 %v712, %v717
  %721 = vst.msk [vmem:[#allocation2] sm:$0xff] %vm94, %v719
  %722 = vst.msk [vmem:[#allocation2 + $0x8] sm:$0xff] %vm94, %v720
  %723 = vset.pattern.permute.xlu0 1
  %724 = vperm.xlu0 %723, %v387
  %v725 = vpop.permute.xlu0 %724
  %727 = vset.pattern.permute.xlu0 1
  %728 = vperm.xlu0 %727, %v392
  %v729 = vpop.permute.xlu0 %728
  %v731 = vlaneseq
  %v732 = vshrl.u32 %v731, 7
  %v733 = vsub.s32 1, %v732
  %v734 = vrot.slane %v468, %v733
  %v735 = vadd.f32 %v725, %v734
  %v736 = vadd.f32 %v729, %v734
  %v737 = vmax.f32 %v735, 0.0
  %v738 = vmax.f32 %v736, 0.0
  %v739 = vsel %vm92, %v737, -1e+30
  %v740 = vsel %vm93, %v738, -1e+30
  %v741 = vsel %vm94, %v739, -inf
  %v742 = vsel %vm94, %v740, -inf
  %v743 = vmax.f32 %v741, %v742
  %v744 = vrot.slane %v743, 4
  %v745 = vmax.f32 %v743, %v744
  %v746 = vrot.slane %v745, 2
  %v747 = vmax.f32 %v745, %v746
  %v748 = vrot.slane %v747, 1
  %v749 = vmax.f32 %v747, %v748
  %v750 = vsub.f32 %v739, %v749
  %v751 = vsub.f32 %v740, %v749
  %v752 = vmul.f32 %v750, 1.442695
  %v753 = vpow.pop %v752
  %v754 = vmul.f32 %v751, 1.442695
  %v755 = vpow.pop %v754
  %v756 = vsel %vm92, %v753, 0.0
  %v757 = vsel %vm93, %v755, 0.0
  %v758 = vsel %vm94, %v756, 0.0
  %v759 = vsel %vm94, %v757, 0.0
  %v760 = vadd.f32 %v758, %v759
  %v761 = vrot.slane %v760, 4
  %v762 = vadd.f32 %v760, %v761
  %v763 = vrot.slane %v762, 2
  %v764 = vadd.f32 %v762, %v763
  %v765 = vrot.slane %v764, 1
  %v766 = vadd.f32 %v764, %v765
  %vm767 = vcmp.gt.f32.partialorder %v766, 0.0
  %v768 = vrcp.pop %v766
  %v769 = vmul.f32 1.0, %v768
  %v770 = vsel %vm767, %v769, 0.0
  %v771 = vmul.f32 %v756, %v770
  %v772 = vmul.f32 %v757, %v770
  %v773 = vmul.f32 %v771, %v107
  %v774 = vmul.f32 %v772, %v107
  %775 = vxpose.xlu0.b32.start [1/16] %v773, 128
  %776 = vxpose.xlu0.b32.cont [2/16] %v774, 128
  %777 = vxpose.xlu0.b32.cont [3/16] 0.0, 128
  %778 = vxpose.xlu0.b32.cont [4/16] 0.0, 128
  %779 = vxpose.xlu0.b32.cont [5/16] 0.0, 128
  %780 = vxpose.xlu0.b32.cont [6/16] 0.0, 128
  %781 = vxpose.xlu0.b32.cont [7/16] 0.0, 128
  %782 = vxpose.xlu0.b32.cont [8/16] 0.0, 128
  %783 = vxpose.xlu0.b32.cont [9/16] 0.0, 128
  %784 = vxpose.xlu0.b32.cont [10/16] 0.0, 128
  %785 = vxpose.xlu0.b32.cont [11/16] 0.0, 128
  %786 = vxpose.xlu0.b32.cont [12/16] 0.0, 128
  %787 = vxpose.xlu0.b32.cont [13/16] 0.0, 128
  %788 = vxpose.xlu0.b32.cont [14/16] 0.0, 128
  %789 = vxpose.xlu0.b32.cont [15/16] 0.0, 128
  %790 = vxpose.xlu0.b32.end [16/16] 0.0, 128
  %v791 = vpop.trf.xlu0
  %v792 = vpop.trf.xlu0
  %v793 = vpop.trf.xlu0
  %v794 = vpop.trf.xlu0
  %v795 = vpop.trf.xlu0
  %v796 = vpop.trf.xlu0
  %v797 = vpop.trf.xlu0
  %v798 = vpop.trf.xlu0
  %v799 = vpop.trf.xlu0
  %v800 = vpop.trf.xlu0
  %v801 = vpop.trf.xlu0
  %v802 = vpop.trf.xlu0
  %v803 = vpop.trf.xlu0
  %v804 = vpop.trf.xlu0
  %v805 = vpop.trf.xlu0
  %v806 = vpop.trf.xlu0
  %807 = vrot.lane.b32.xlu0 %v300, 120
  %v808 = vpop.permute.xlu0 %807
  %809 = vrot.lane.b32.xlu0 %v305, 120
  %v810 = vpop.permute.xlu0 %809
  %v814 = vsel %vm313, %v791, 0
  %816 = vmatprep.subr.mxu0 0.0
  %817 = vmatpush1.msra.mxu0 0.0
  %818 = vmatprep.subr.mxu0 0.0
  %819 = vmatpush1.msra.mxu0 0.0
  %820 = vmatprep.subr.mxu0 0.0
  %821 = vmatpush1.msra.mxu0 0.0
  %822 = vmatprep.subr.mxu0 0.0
  %823 = vmatpush1.msra.mxu0 0.0
  %824 = vmatprep.subr.mxu0 0.0
  %825 = vmatpush1.msra.mxu0 0.0
  %826 = vmatprep.subr.mxu0 0.0
  %827 = vmatpush1.msra.mxu0 0.0
  %828 = vmatprep.subr.mxu0 0.0
  %829 = vmatpush1.msra.mxu0 0.0
  %830 = vmatprep.subr.mxu0 0.0
  %831 = vmatpush1.msra.mxu0 0.0
  %832 = vmatprep.subr.mxu0 0.0
  %833 = vmatpush1.msra.mxu0 0.0
  %834 = vmatprep.subr.mxu0 0.0
  %835 = vmatpush1.msra.mxu0 0.0
  %836 = vmatprep.subr.mxu0 0.0
  %837 = vmatpush1.msra.mxu0 0.0
  %838 = vmatprep.subr.mxu0 0.0
  %839 = vmatpush1.msra.mxu0 0.0
  %840 = vmatprep.subr.mxu0 0.0
  %841 = vmatpush1.msra.mxu0 0.0
  %842 = vmatprep.subr.mxu0 0.0
  %843 = vmatpush1.msra.mxu0 0.0
  %844 = vmatprep.subr.mxu0 0.0
  %845 = vmatpush1.msra.mxu0 %v810
  %846 = vmatprep.subr.mxu0 0.0
  %847 = vmatpush1.msra.mxu0 %v808
  %848 = vmatprep.subr.mxu0 0.0
  %849 = vmatpush2.msra.mxu0 0.0
  %850 = vmatprep.subr.mxu0 0.0
  %851 = vmatpush2.msra.mxu0 0.0
  %852 = vmatprep.subr.mxu0 0.0
  %853 = vmatpush2.msra.mxu0 0.0
  %854 = vmatprep.subr.mxu0 0.0
  %855 = vmatpush2.msra.mxu0 0.0
  %856 = vmatprep.subr.mxu0 0.0
  %857 = vmatpush2.msra.mxu0 0.0
  %858 = vmatprep.subr.mxu0 0.0
  %859 = vmatpush2.msra.mxu0 0.0
  %860 = vmatprep.subr.mxu0 0.0
  %861 = vmatpush2.msra.mxu0 0.0
  %862 = vmatprep.subr.mxu0 0.0
  %863 = vmatpush2.msra.mxu0 0.0
  %864 = vmatprep.subr.mxu0 0.0
  %865 = vmatpush2.msra.mxu0 0.0
  %866 = vmatprep.subr.mxu0 0.0
  %867 = vmatpush2.msra.mxu0 0.0
  %868 = vmatprep.subr.mxu0 0.0
  %869 = vmatpush2.msra.mxu0 0.0
  %870 = vmatprep.subr.mxu0 0.0
  %871 = vmatpush2.msra.mxu0 0.0
  %872 = vmatprep.subr.mxu0 0.0
  %873 = vmatpush2.msra.mxu0 0.0
  %874 = vmatprep.subr.mxu0 0.0
  %875 = vmatpush2.msra.mxu0 0.0
  %876 = vmatprep.subr.mxu0 0.0
  %877 = vmatpush2.msra.mxu0 0.0
  %878 = vmatprep.subr.mxu0 0.0
  %879 = vmatpush2.msra.mxu0 0.0
  %880 = vmatprep.mubr.f32.mxu0 0.0
  %881 = vmatmul.mubr.f32.gmra.mxu0 %v814
  %v882 = vpop.f32.mrf.mxu0
  %v883 = vadd.f32 0.0, %v882
  %v884 = vpop.f32.mrf.mxu0
  %885 = vdwg.mxu0
  %v887 = vsel %vm94, %v771, 0
  %v890 = vsel %vm94, %v772, 0
  %892 = vmatprep.subr.mxu0 0.0
  %893 = vmatpush1.msra.mxu0 0.0
  %894 = vmatprep.subr.mxu0 0.0
  %895 = vmatpush1.msra.mxu0 0.0
  %896 = vmatprep.subr.mxu0 0.0
  %897 = vmatpush1.msra.mxu0 0.0
  %898 = vmatprep.subr.mxu0 0.0
  %899 = vmatpush1.msra.mxu0 0.0
  %900 = vmatprep.subr.mxu0 0.0
  %901 = vmatpush1.msra.mxu0 0.0
  %902 = vmatprep.subr.mxu0 0.0
  %903 = vmatpush1.msra.mxu0 0.0
  %904 = vmatprep.subr.mxu0 0.0
  %905 = vmatpush1.msra.mxu0 0.0
  %906 = vmatprep.subr.mxu0 0.0
  %907 = vmatpush1.msra.mxu0 0.0
  %908 = vmatprep.subr.mxu0 0.0
  %909 = vmatpush1.msra.mxu0 0.0
  %910 = vmatprep.subr.mxu0 0.0
  %911 = vmatpush1.msra.mxu0 0.0
  %912 = vmatprep.subr.mxu0 0.0
  %913 = vmatpush1.msra.mxu0 0.0
  %914 = vmatprep.subr.mxu0 0.0
  %915 = vmatpush1.msra.mxu0 0.0
  %916 = vmatprep.subr.mxu0 0.0
  %917 = vmatpush1.msra.mxu0 0.0
  %918 = vmatprep.subr.mxu0 0.0
  %919 = vmatpush1.msra.mxu0 0.0
  %920 = vmatprep.subr.mxu0 0.0
  %921 = vmatpush1.msra.mxu0 0.0
  %922 = vmatprep.subr.mxu0 0.0
  %923 = vmatpush1.msra.mxu0 %v883
  %924 = vmatprep.subr.mxu0 0.0
  %925 = vmatpush2.msra.mxu0 0.0
  %926 = vmatprep.subr.mxu0 0.0
  %927 = vmatpush2.msra.mxu0 0.0
  %928 = vmatprep.subr.mxu0 0.0
  %929 = vmatpush2.msra.mxu0 0.0
  %930 = vmatprep.subr.mxu0 0.0
  %931 = vmatpush2.msra.mxu0 0.0
  %932 = vmatprep.subr.mxu0 0.0
  %933 = vmatpush2.msra.mxu0 0.0
  %934 = vmatprep.subr.mxu0 0.0
  %935 = vmatpush2.msra.mxu0 0.0
  %936 = vmatprep.subr.mxu0 0.0
  %937 = vmatpush2.msra.mxu0 0.0
  %938 = vmatprep.subr.mxu0 0.0
  %939 = vmatpush2.msra.mxu0 0.0
  %940 = vmatprep.subr.mxu0 0.0
  %941 = vmatpush2.msra.mxu0 0.0
  %942 = vmatprep.subr.mxu0 0.0
  %943 = vmatpush2.msra.mxu0 0.0
  %944 = vmatprep.subr.mxu0 0.0
  %945 = vmatpush2.msra.mxu0 0.0
  %946 = vmatprep.subr.mxu0 0.0
  %947 = vmatpush2.msra.mxu0 0.0
  %948 = vmatprep.subr.mxu0 0.0
  %949 = vmatpush2.msra.mxu0 0.0
  %950 = vmatprep.subr.mxu0 0.0
  %951 = vmatpush2.msra.mxu0 0.0
  %952 = vmatprep.subr.mxu0 0.0
  %953 = vmatpush2.msra.mxu0 0.0
  %954 = vmatprep.subr.mxu0 0.0
  %955 = vmatpush2.msra.mxu0 0.0
  %956 = vmatprep.mubr.f32.mxu0 0.0
  %957 = vmatmul.mubr.f32.gmra.mxu0 %v887
  %v958 = vpop.f32.mrf.mxu0
  %v959 = vadd.f32 0.0, %v958
  %v960 = vpop.f32.mrf.mxu0
  %961 = vmatprep.mubr.f32.mxu0 0.0
  %962 = vmatmul.mubr.f32.gmra.mxu0 %v890
  %v963 = vpop.f32.mrf.mxu0
  %v964 = vadd.f32 0.0, %v963
  %v965 = vpop.f32.mrf.mxu0
  %966 = vdwg.mxu0
  %v967 = vmul.f32 %v959, %v128
  %v968 = vmul.f32 %v964, %v129
  %969 = vrot.lane.b32.xlu0 %v717, 120
  %v970 = vpop.permute.xlu0 %969
  %v972 = vadd.f32 %v967, %v970
  %v973 = vadd.f32 %v968, %v970
  %976 = vrot.lane.b32.xlu0 %v972, 8
  %v977 = vpop.permute.xlu0 %976
  %978 = vrot.lane.b32.xlu0 %v973, 8
  %v979 = vpop.permute.xlu0 %978
  %vm982 = vcmask 130112
  %983 = vst.msk [vmem:[#allocation2] sm:$0xff] %vm982, %v977
  %984 = vst.msk [vmem:[#allocation2 + $0x8] sm:$0xff] %vm982, %v979
  %v985 = vld [vmem:[#allocation2] sm:$0xff]
  %v986 = vld [vmem:[#allocation2 + $0x8] sm:$0xff]
  %v987 = vld [vmem:[%s10] sm:$0xff]
  %v988 = vld [vmem:[%s11] sm:$0x1]
  %v990 = vlaneseq
  %v991 = vshrl.u32 %v990, 7
  %v992 = vsub.s32 0, %v991
  %v993 = vrot.slane %v988, %v992
  %995 = vmatprep.subr.mxu0 0.0
  %996 = vmatpush1.msra.mxu0 0.0
  %997 = vmatprep.subr.mxu0 0.0
  %998 = vmatpush1.msra.mxu0 0.0
  %999 = vmatprep.subr.mxu0 0.0
  %1000 = vmatpush1.msra.mxu0 0.0
  %1001 = vmatprep.subr.mxu0 0.0
  %1002 = vmatpush1.msra.mxu0 0.0
  %1003 = vmatprep.subr.mxu0 0.0
  %1004 = vmatpush1.msra.mxu0 0.0
  %1005 = vmatprep.subr.mxu0 0.0
  %1006 = vmatpush1.msra.mxu0 0.0
  %1007 = vmatprep.subr.mxu0 0.0
  %1008 = vmatpush1.msra.mxu0 0.0
  %1009 = vmatprep.subr.mxu0 0.0
  %1010 = vmatpush1.msra.mxu0 0.0
  %1011 = vmatprep.subr.mxu0 0.0
  %1012 = vmatpush1.msra.mxu0 0.0
  %1013 = vmatprep.subr.mxu0 0.0
  %1014 = vmatpush1.msra.mxu0 0.0
  %1015 = vmatprep.subr.mxu0 0.0
  %1016 = vmatpush1.msra.mxu0 0.0
  %1017 = vmatprep.subr.mxu0 0.0
  %1018 = vmatpush1.msra.mxu0 0.0
  %1019 = vmatprep.subr.mxu0 0.0
  %1020 = vmatpush1.msra.mxu0 0.0
  %1021 = vmatprep.subr.mxu0 0.0
  %1022 = vmatpush1.msra.mxu0 0.0
  %1023 = vmatprep.subr.mxu0 0.0
  %1024 = vmatpush1.msra.mxu0 0.0
  %1025 = vmatprep.subr.mxu0 0.0
  %1026 = vmatpush1.msra.mxu0 %v987
  %1027 = vmatprep.subr.mxu0 0.0
  %1028 = vmatpush2.msra.mxu0 0.0
  %1029 = vmatprep.subr.mxu0 0.0
  %1030 = vmatpush2.msra.mxu0 0.0
  %1031 = vmatprep.subr.mxu0 0.0
  %1032 = vmatpush2.msra.mxu0 0.0
  %1033 = vmatprep.subr.mxu0 0.0
  %1034 = vmatpush2.msra.mxu0 0.0
  %1035 = vmatprep.subr.mxu0 0.0
  %1036 = vmatpush2.msra.mxu0 0.0
  %1037 = vmatprep.subr.mxu0 0.0
  %1038 = vmatpush2.msra.mxu0 0.0
  %1039 = vmatprep.subr.mxu0 0.0
  %1040 = vmatpush2.msra.mxu0 0.0
  %1041 = vmatprep.subr.mxu0 0.0
  %1042 = vmatpush2.msra.mxu0 0.0
  %1043 = vmatprep.subr.mxu0 0.0
  %1044 = vmatpush2.msra.mxu0 0.0
  %1045 = vmatprep.subr.mxu0 0.0
  %1046 = vmatpush2.msra.mxu0 0.0
  %1047 = vmatprep.subr.mxu0 0.0
  %1048 = vmatpush2.msra.mxu0 0.0
  %1049 = vmatprep.subr.mxu0 0.0
  %1050 = vmatpush2.msra.mxu0 0.0
  %1051 = vmatprep.subr.mxu0 0.0
  %1052 = vmatpush2.msra.mxu0 0.0
  %1053 = vmatprep.subr.mxu0 0.0
  %1054 = vmatpush2.msra.mxu0 0.0
  %1055 = vmatprep.subr.mxu0 0.0
  %1056 = vmatpush2.msra.mxu0 0.0
  %1057 = vmatprep.subr.mxu0 0.0
  %1058 = vmatpush2.msra.mxu0 0.0
  %1059 = vmatprep.mubr.f32.mxu0 0.0
  %1060 = vmatmul.mubr.f32.gmra.mxu0 %v231
  %v1061 = vpop.f32.mrf.mxu0
  %v1062 = vadd.f32 %v993, %v1061
  %v1063 = vpop.f32.mrf.mxu0
  %1064 = vdwg.mxu0
  %v1065 = vld [vmem:[%s12] sm:$0xff]
  %v1066 = vld [vmem:[%s12 + $0x8] sm:$0xff]
  %v1067 = vld [vmem:[%s13] sm:$0xff]
  %v1068 = vld [vmem:[%s13 + $0x8] sm:$0xff]
  %v1069 = vld [vmem:[%s14] sm:$0x3]
  %v1070 = vld [vmem:[%s15] sm:$0x1]
  %v1072 = vsel %vm313, %v985, 0
  %v1075 = vsel %vm313, %v986, 0
  %v1078 = vsel %vm313, %v1062, 0
  %1080 = vmatprep.subr.mxu0 0.0
  %1081 = vmatpush1.msra.mxu0 0.0
  %1082 = vmatprep.subr.mxu0 0.0
  %1083 = vmatpush1.msra.mxu0 0.0
  %1084 = vmatprep.subr.mxu0 0.0
  %1085 = vmatpush1.msra.mxu0 0.0
  %1086 = vmatprep.subr.mxu0 0.0
  %1087 = vmatpush1.msra.mxu0 0.0
  %1088 = vmatprep.subr.mxu0 0.0
  %1089 = vmatpush1.msra.mxu0 0.0
  %1090 = vmatprep.subr.mxu0 0.0
  %1091 = vmatpush1.msra.mxu0 0.0
  %1092 = vmatprep.subr.mxu0 0.0
  %1093 = vmatpush1.msra.mxu0 0.0
  %1094 = vmatprep.subr.mxu0 0.0
  %1095 = vmatpush1.msra.mxu0 0.0
  %1096 = vmatprep.subr.mxu0 0.0
  %1097 = vmatpush1.msra.mxu0 0.0
  %1098 = vmatprep.subr.mxu0 0.0
  %1099 = vmatpush1.msra.mxu0 0.0
  %1100 = vmatprep.subr.mxu0 0.0
  %1101 = vmatpush1.msra.mxu0 0.0
  %1102 = vmatprep.subr.mxu0 0.0
  %1103 = vmatpush1.msra.mxu0 0.0
  %1104 = vmatprep.subr.mxu0 0.0
  %1105 = vmatpush1.msra.mxu0 0.0
  %1106 = vmatprep.subr.mxu0 0.0
  %1107 = vmatpush1.msra.mxu0 0.0
  %1108 = vmatprep.subr.mxu0 0.0
  %1109 = vmatpush1.msra.mxu0 %v1066
  %1110 = vmatprep.subr.mxu0 0.0
  %1111 = vmatpush1.msra.mxu0 %v1065
  %1112 = vmatprep.subr.mxu0 0.0
  %1113 = vmatpush2.msra.mxu0 0.0
  %1114 = vmatprep.subr.mxu0 0.0
  %1115 = vmatpush2.msra.mxu0 0.0
  %1116 = vmatprep.subr.mxu0 0.0
  %1117 = vmatpush2.msra.mxu0 0.0
  %1118 = vmatprep.subr.mxu0 0.0
  %1119 = vmatpush2.msra.mxu0 0.0
  %1120 = vmatprep.subr.mxu0 0.0
  %1121 = vmatpush2.msra.mxu0 0.0
  %1122 = vmatprep.subr.mxu0 0.0
  %1123 = vmatpush2.msra.mxu0 0.0
  %1124 = vmatprep.subr.mxu0 0.0
  %1125 = vmatpush2.msra.mxu0 0.0
  %1126 = vmatprep.subr.mxu0 0.0
  %1127 = vmatpush2.msra.mxu0 0.0
  %1128 = vmatprep.subr.mxu0 0.0
  %1129 = vmatpush2.msra.mxu0 0.0
  %1130 = vmatprep.subr.mxu0 0.0
  %1131 = vmatpush2.msra.mxu0 0.0
  %1132 = vmatprep.subr.mxu0 0.0
  %1133 = vmatpush2.msra.mxu0 0.0
  %1134 = vmatprep.subr.mxu0 0.0
  %1135 = vmatpush2.msra.mxu0 0.0
  %1136 = vmatprep.subr.mxu0 0.0
  %1137 = vmatpush2.msra.mxu0 0.0
  %1138 = vmatprep.subr.mxu0 0.0
  %1139 = vmatpush2.msra.mxu0 0.0
  %1140 = vmatprep.subr.mxu0 0.0
  %1141 = vmatpush2.msra.mxu0 0.0
  %1142 = vmatprep.subr.mxu0 0.0
  %1143 = vmatpush2.msra.mxu0 0.0
  %1144 = vmatprep.mubr.f32.mxu0 0.0
  %1145 = vmatmul.mubr.f32.gmra.mxu0 %v1072
  %v1146 = vpop.f32.mrf.mxu0
  %v1147 = vadd.f32 0.0, %v1146
  %v1148 = vpop.f32.mrf.mxu0
  %1149 = vmatprep.mubr.f32.mxu0 0.0
  %1150 = vmatmul.mubr.f32.gmra.mxu0 %v1075
  %v1151 = vpop.f32.mrf.mxu0
  %v1152 = vadd.f32 0.0, %v1151
  %v1153 = vpop.f32.mrf.mxu0
  %1154 = vmatprep.mubr.f32.mxu0 0.0
  %1155 = vmatmul.mubr.f32.gmra.mxu0 %v1078
  %v1156 = vpop.f32.mrf.mxu0
  %v1157 = vadd.f32 0.0, %v1156
  %v1158 = vpop.f32.mrf.mxu0
  %1159 = vdwg.mxu0
  %v1161 = vsel %vm313, %v1147, 0
  %v1164 = vsel %vm313, %v1152, 0
  %1166 = vmatprep.subr.mxu0 0.0
  %1167 = vmatpush1.msra.mxu0 0.0
  %1168 = vmatprep.subr.mxu0 0.0
  %1169 = vmatpush1.msra.mxu0 0.0
  %1170 = vmatprep.subr.mxu0 0.0
  %1171 = vmatpush1.msra.mxu0 0.0
  %1172 = vmatprep.subr.mxu0 0.0
  %1173 = vmatpush1.msra.mxu0 0.0
  %1174 = vmatprep.subr.mxu0 0.0
  %1175 = vmatpush1.msra.mxu0 0.0
  %1176 = vmatprep.subr.mxu0 0.0
  %1177 = vmatpush1.msra.mxu0 0.0
  %1178 = vmatprep.subr.mxu0 0.0
  %1179 = vmatpush1.msra.mxu0 0.0
  %1180 = vmatprep.subr.mxu0 0.0
  %1181 = vmatpush1.msra.mxu0 0.0
  %1182 = vmatprep.subr.mxu0 0.0
  %1183 = vmatpush1.msra.mxu0 0.0
  %1184 = vmatprep.subr.mxu0 0.0
  %1185 = vmatpush1.msra.mxu0 0.0
  %1186 = vmatprep.subr.mxu0 0.0
  %1187 = vmatpush1.msra.mxu0 0.0
  %1188 = vmatprep.subr.mxu0 0.0
  %1189 = vmatpush1.msra.mxu0 0.0
  %1190 = vmatprep.subr.mxu0 0.0
  %1191 = vmatpush1.msra.mxu0 0.0
  %1192 = vmatprep.subr.mxu0 0.0
  %1193 = vmatpush1.msra.mxu0 0.0
  %1194 = vmatprep.subr.mxu0 0.0
  %1195 = vmatpush1.msra.mxu0 %v1068
  %1196 = vmatprep.subr.mxu0 0.0
  %1197 = vmatpush1.msra.mxu0 %v1067
  %1198 = vmatprep.subr.mxu0 0.0
  %1199 = vmatpush2.msra.mxu0 0.0
  %1200 = vmatprep.subr.mxu0 0.0
  %1201 = vmatpush2.msra.mxu0 0.0
  %1202 = vmatprep.subr.mxu0 0.0
  %1203 = vmatpush2.msra.mxu0 0.0
  %1204 = vmatprep.subr.mxu0 0.0
  %1205 = vmatpush2.msra.mxu0 0.0
  %1206 = vmatprep.subr.mxu0 0.0
  %1207 = vmatpush2.msra.mxu0 0.0
  %1208 = vmatprep.subr.mxu0 0.0
  %1209 = vmatpush2.msra.mxu0 0.0
  %1210 = vmatprep.subr.mxu0 0.0
  %1211 = vmatpush2.msra.mxu0 0.0
  %1212 = vmatprep.subr.mxu0 0.0
  %1213 = vmatpush2.msra.mxu0 0.0
  %1214 = vmatprep.subr.mxu0 0.0
  %1215 = vmatpush2.msra.mxu0 0.0
  %1216 = vmatprep.subr.mxu0 0.0
  %1217 = vmatpush2.msra.mxu0 0.0
  %1218 = vmatprep.subr.mxu0 0.0
  %1219 = vmatpush2.msra.mxu0 0.0
  %1220 = vmatprep.subr.mxu0 0.0
  %1221 = vmatpush2.msra.mxu0 0.0
  %1222 = vmatprep.subr.mxu0 0.0
  %1223 = vmatpush2.msra.mxu0 0.0
  %1224 = vmatprep.subr.mxu0 0.0
  %1225 = vmatpush2.msra.mxu0 0.0
  %1226 = vmatprep.subr.mxu0 0.0
  %1227 = vmatpush2.msra.mxu0 0.0
  %1228 = vmatprep.subr.mxu0 0.0
  %1229 = vmatpush2.msra.mxu0 0.0
  %1230 = vmatprep.mubr.f32.mxu0 0.0
  %1231 = vmatmul.mubr.f32.gmra.mxu0 %v1161
  %v1232 = vpop.f32.mrf.mxu0
  %v1233 = vadd.f32 0.0, %v1232
  %v1234 = vpop.f32.mrf.mxu0
  %1235 = vmatprep.mubr.f32.mxu0 0.0
  %1236 = vmatmul.mubr.f32.gmra.mxu0 %v1164
  %v1237 = vpop.f32.mrf.mxu0
  %v1238 = vadd.f32 0.0, %v1237
  %v1239 = vpop.f32.mrf.mxu0
  %1240 = vdwg.mxu0
  %v1242 = vsel %vm313, %v1069, 0
  %v1245 = vsel %vm313, %v1157, 0
  %1247 = vmatprep.subr.mxu0 0.0
  %1248 = vmatpush1.xpose.msra.mxu0 0.0
  %1249 = vmatprep.subr.mxu0 0.0
  %1250 = vmatpush1.xpose.msra.mxu0 0.0
  %1251 = vmatprep.subr.mxu0 0.0
  %1252 = vmatpush1.xpose.msra.mxu0 0.0
  %1253 = vmatprep.subr.mxu0 0.0
  %1254 = vmatpush1.xpose.msra.mxu0 0.0
  %1255 = vmatprep.subr.mxu0 0.0
  %1256 = vmatpush1.xpose.msra.mxu0 0.0
  %1257 = vmatprep.subr.mxu0 0.0
  %1258 = vmatpush1.xpose.msra.mxu0 0.0
  %1259 = vmatprep.subr.mxu0 0.0
  %1260 = vmatpush1.xpose.msra.mxu0 0.0
  %1261 = vmatprep.subr.mxu0 0.0
  %1262 = vmatpush1.xpose.msra.mxu0 0.0
  %1263 = vmatprep.subr.mxu0 0.0
  %1264 = vmatpush1.xpose.msra.mxu0 0.0
  %1265 = vmatprep.subr.mxu0 0.0
  %1266 = vmatpush1.xpose.msra.mxu0 0.0
  %1267 = vmatprep.subr.mxu0 0.0
  %1268 = vmatpush1.xpose.msra.mxu0 0.0
  %1269 = vmatprep.subr.mxu0 0.0
  %1270 = vmatpush1.xpose.msra.mxu0 0.0
  %1271 = vmatprep.subr.mxu0 0.0
  %1272 = vmatpush1.xpose.msra.mxu0 0.0
  %1273 = vmatprep.subr.mxu0 0.0
  %1274 = vmatpush1.xpose.msra.mxu0 0.0
  %1275 = vmatprep.subr.mxu0 0.0
  %1276 = vmatpush1.xpose.msra.mxu0 0.0
  %1277 = vmatprep.subr.mxu0 0.0
  %1278 = vmatpush1.xpose.msra.mxu0 %v1245
  %1279 = vmatprep.subr.mxu0 0.0
  %1280 = vmatpush2.xpose.msra.mxu0 0.0
  %1281 = vmatprep.subr.mxu0 0.0
  %1282 = vmatpush2.xpose.msra.mxu0 0.0
  %1283 = vmatprep.subr.mxu0 0.0
  %1284 = vmatpush2.xpose.msra.mxu0 0.0
  %1285 = vmatprep.subr.mxu0 0.0
  %1286 = vmatpush2.xpose.msra.mxu0 0.0
  %1287 = vmatprep.subr.mxu0 0.0
  %1288 = vmatpush2.xpose.msra.mxu0 0.0
  %1289 = vmatprep.subr.mxu0 0.0
  %1290 = vmatpush2.xpose.msra.mxu0 0.0
  %1291 = vmatprep.subr.mxu0 0.0
  %1292 = vmatpush2.xpose.msra.mxu0 0.0
  %1293 = vmatprep.subr.mxu0 0.0
  %1294 = vmatpush2.xpose.msra.mxu0 0.0
  %1295 = vmatprep.subr.mxu0 0.0
  %1296 = vmatpush2.xpose.msra.mxu0 0.0
  %1297 = vmatprep.subr.mxu0 0.0
  %1298 = vmatpush2.xpose.msra.mxu0 0.0
  %1299 = vmatprep.subr.mxu0 0.0
  %1300 = vmatpush2.xpose.msra.mxu0 0.0
  %1301 = vmatprep.subr.mxu0 0.0
  %1302 = vmatpush2.xpose.msra.mxu0 0.0
  %1303 = vmatprep.subr.mxu0 0.0
  %1304 = vmatpush2.xpose.msra.mxu0 0.0
  %1305 = vmatprep.subr.mxu0 0.0
  %1306 = vmatpush2.xpose.msra.mxu0 0.0
  %1307 = vmatprep.subr.mxu0 0.0
  %1308 = vmatpush2.xpose.msra.mxu0 0.0
  %1309 = vmatprep.subr.mxu0 0.0
  %1310 = vmatpush2.xpose.msra.mxu0 0.0
  %1311 = vmatprep.mubr.f32.mxu0 0.0
  %1312 = vmatmul.mubr.f32.gmra.mxu0 %v1242
  %v1313 = vpop.f32.mrf.mxu0
  %v1314 = vadd.f32 0.0, %v1313
  %v1315 = vpop.f32.mrf.mxu0
  %1316 = vdwg.mxu0
  %1318 = vset.pattern.permute.xlu0 0
  %1319 = vperm.xlu0 %1318, %v1233
  %v1320 = vpop.permute.xlu0 %1319
  %1323 = vset.pattern.permute.xlu0 0
  %1324 = vperm.xlu0 %1323, %v1238
  %v1325 = vpop.permute.xlu0 %1324
  %v1327 = vlaneseq
  %v1328 = vshrl.u32 %v1327, 7
  %v1329 = vsub.s32 0, %v1328
  %v1330 = vrot.slane %v1314, %v1329
  %v1331 = vadd.f32 %v1320, %v1330
  %v1332 = vadd.f32 %v1325, %v1330
  %v1333 = vmax.f32 %v1331, 0.0
  %v1334 = vmax.f32 %v1332, 0.0
  %v1335 = vsel %vm92, %v1333, -1e+30
  %v1336 = vsel %vm93, %v1334, -1e+30
  %v1337 = vsel %vm94, %v1335, -inf
  %v1338 = vsel %vm94, %v1336, -inf
  %v1339 = vmax.f32 %v1337, %v1338
  %v1340 = vrot.slane %v1339, 4
  %v1341 = vmax.f32 %v1339, %v1340
  %v1342 = vrot.slane %v1341, 2
  %v1343 = vmax.f32 %v1341, %v1342
  %v1344 = vrot.slane %v1343, 1
  %v1345 = vmax.f32 %v1343, %v1344
  %v1346 = vsub.f32 %v1335, %v1345
  %v1347 = vsub.f32 %v1336, %v1345
  %v1348 = vmul.f32 %v1346, 1.442695
  %v1349 = vpow.pop %v1348
  %v1350 = vmul.f32 %v1347, 1.442695
  %v1351 = vpow.pop %v1350
  %v1352 = vsel %vm92, %v1349, 0.0
  %v1353 = vsel %vm93, %v1351, 0.0
  %v1354 = vsel %vm94, %v1352, 0.0
  %v1355 = vsel %vm94, %v1353, 0.0
  %v1356 = vadd.f32 %v1354, %v1355
  %v1357 = vrot.slane %v1356, 4
  %v1358 = vadd.f32 %v1356, %v1357
  %v1359 = vrot.slane %v1358, 2
  %v1360 = vadd.f32 %v1358, %v1359
  %v1361 = vrot.slane %v1360, 1
  %v1362 = vadd.f32 %v1360, %v1361
  %vm1363 = vcmp.gt.f32.partialorder %v1362, 0.0
  %v1364 = vrcp.pop %v1362
  %v1365 = vmul.f32 1.0, %v1364
  %v1366 = vsel %vm1363, %v1365, 0.0
  %v1367 = vmul.f32 %v1352, %v1366
  %v1368 = vmul.f32 %v1353, %v1366
  %v1369 = vmul.f32 %v1367, %v107
  %v1370 = vmul.f32 %v1368, %v107
  %1371 = vxpose.xlu0.b32.start [1/16] %v1369, 128
  %1372 = vxpose.xlu0.b32.cont [2/16] %v1370, 128
  %1373 = vxpose.xlu0.b32.cont [3/16] 0.0, 128
  %1374 = vxpose.xlu0.b32.cont [4/16] 0.0, 128
  %1375 = vxpose.xlu0.b32.cont [5/16] 0.0, 128
  %1376 = vxpose.xlu0.b32.cont [6/16] 0.0, 128
  %1377 = vxpose.xlu0.b32.cont [7/16] 0.0, 128
  %1378 = vxpose.xlu0.b32.cont [8/16] 0.0, 128
  %1379 = vxpose.xlu0.b32.cont [9/16] 0.0, 128
  %1380 = vxpose.xlu0.b32.cont [10/16] 0.0, 128
  %1381 = vxpose.xlu0.b32.cont [11/16] 0.0, 128
  %1382 = vxpose.xlu0.b32.cont [12/16] 0.0, 128
  %1383 = vxpose.xlu0.b32.cont [13/16] 0.0, 128
  %1384 = vxpose.xlu0.b32.cont [14/16] 0.0, 128
  %1385 = vxpose.xlu0.b32.cont [15/16] 0.0, 128
  %1386 = vxpose.xlu0.b32.end [16/16] 0.0, 128
  %v1387 = vpop.trf.xlu0
  %v1388 = vpop.trf.xlu0
  %v1389 = vpop.trf.xlu0
  %v1390 = vpop.trf.xlu0
  %v1391 = vpop.trf.xlu0
  %v1392 = vpop.trf.xlu0
  %v1393 = vpop.trf.xlu0
  %v1394 = vpop.trf.xlu0
  %v1395 = vpop.trf.xlu0
  %v1396 = vpop.trf.xlu0
  %v1397 = vpop.trf.xlu0
  %v1398 = vpop.trf.xlu0
  %v1399 = vpop.trf.xlu0
  %v1400 = vpop.trf.xlu0
  %v1401 = vpop.trf.xlu0
  %v1402 = vpop.trf.xlu0
  %v1404 = vsel %vm313, %v1387, 0
  %1406 = vmatprep.subr.mxu0 0.0
  %1407 = vmatpush1.msra.mxu0 0.0
  %1408 = vmatprep.subr.mxu0 0.0
  %1409 = vmatpush1.msra.mxu0 0.0
  %1410 = vmatprep.subr.mxu0 0.0
  %1411 = vmatpush1.msra.mxu0 0.0
  %1412 = vmatprep.subr.mxu0 0.0
  %1413 = vmatpush1.msra.mxu0 0.0
  %1414 = vmatprep.subr.mxu0 0.0
  %1415 = vmatpush1.msra.mxu0 0.0
  %1416 = vmatprep.subr.mxu0 0.0
  %1417 = vmatpush1.msra.mxu0 0.0
  %1418 = vmatprep.subr.mxu0 0.0
  %1419 = vmatpush1.msra.mxu0 0.0
  %1420 = vmatprep.subr.mxu0 0.0
  %1421 = vmatpush1.msra.mxu0 0.0
  %1422 = vmatprep.subr.mxu0 0.0
  %1423 = vmatpush1.msra.mxu0 0.0
  %1424 = vmatprep.subr.mxu0 0.0
  %1425 = vmatpush1.msra.mxu0 0.0
  %1426 = vmatprep.subr.mxu0 0.0
  %1427 = vmatpush1.msra.mxu0 0.0
  %1428 = vmatprep.subr.mxu0 0.0
  %1429 = vmatpush1.msra.mxu0 0.0
  %1430 = vmatprep.subr.mxu0 0.0
  %1431 = vmatpush1.msra.mxu0 0.0
  %1432 = vmatprep.subr.mxu0 0.0
  %1433 = vmatpush1.msra.mxu0 0.0
  %1434 = vmatprep.subr.mxu0 0.0
  %1435 = vmatpush1.msra.mxu0 %v1152
  %1436 = vmatprep.subr.mxu0 0.0
  %1437 = vmatpush1.msra.mxu0 %v1147
  %1438 = vmatprep.subr.mxu0 0.0
  %1439 = vmatpush2.msra.mxu0 0.0
  %1440 = vmatprep.subr.mxu0 0.0
  %1441 = vmatpush2.msra.mxu0 0.0
  %1442 = vmatprep.subr.mxu0 0.0
  %1443 = vmatpush2.msra.mxu0 0.0
  %1444 = vmatprep.subr.mxu0 0.0
  %1445 = vmatpush2.msra.mxu0 0.0
  %1446 = vmatprep.subr.mxu0 0.0
  %1447 = vmatpush2.msra.mxu0 0.0
  %1448 = vmatprep.subr.mxu0 0.0
  %1449 = vmatpush2.msra.mxu0 0.0
  %1450 = vmatprep.subr.mxu0 0.0
  %1451 = vmatpush2.msra.mxu0 0.0
  %1452 = vmatprep.subr.mxu0 0.0
  %1453 = vmatpush2.msra.mxu0 0.0
  %1454 = vmatprep.subr.mxu0 0.0
  %1455 = vmatpush2.msra.mxu0 0.0
  %1456 = vmatprep.subr.mxu0 0.0
  %1457 = vmatpush2.msra.mxu0 0.0
  %1458 = vmatprep.subr.mxu0 0.0
  %1459 = vmatpush2.msra.mxu0 0.0
  %1460 = vmatprep.subr.mxu0 0.0
  %1461 = vmatpush2.msra.mxu0 0.0
  %1462 = vmatprep.subr.mxu0 0.0
  %1463 = vmatpush2.msra.mxu0 0.0
  %1464 = vmatprep.subr.mxu0 0.0
  %1465 = vmatpush2.msra.mxu0 0.0
  %1466 = vmatprep.subr.mxu0 0.0
  %1467 = vmatpush2.msra.mxu0 0.0
  %1468 = vmatprep.subr.mxu0 0.0
  %1469 = vmatpush2.msra.mxu0 0.0
  %1470 = vmatprep.mubr.f32.mxu0 0.0
  %1471 = vmatmul.mubr.f32.gmra.mxu0 %v1404
  %v1472 = vpop.f32.mrf.mxu0
  %v1473 = vadd.f32 0.0, %v1472
  %v1474 = vpop.f32.mrf.mxu0
  %1475 = vdwg.mxu0
  %v1477 = vsel %vm94, %v1367, 0
  %v1480 = vsel %vm94, %v1368, 0
  %1482 = vmatprep.subr.mxu0 0.0
  %1483 = vmatpush1.msra.mxu0 0.0
  %1484 = vmatprep.subr.mxu0 0.0
  %1485 = vmatpush1.msra.mxu0 0.0
  %1486 = vmatprep.subr.mxu0 0.0
  %1487 = vmatpush1.msra.mxu0 0.0
  %1488 = vmatprep.subr.mxu0 0.0
  %1489 = vmatpush1.msra.mxu0 0.0
  %1490 = vmatprep.subr.mxu0 0.0
  %1491 = vmatpush1.msra.mxu0 0.0
  %1492 = vmatprep.subr.mxu0 0.0
  %1493 = vmatpush1.msra.mxu0 0.0
  %1494 = vmatprep.subr.mxu0 0.0
  %1495 = vmatpush1.msra.mxu0 0.0
  %1496 = vmatprep.subr.mxu0 0.0
  %1497 = vmatpush1.msra.mxu0 0.0
  %1498 = vmatprep.subr.mxu0 0.0
  %1499 = vmatpush1.msra.mxu0 0.0
  %1500 = vmatprep.subr.mxu0 0.0
  %1501 = vmatpush1.msra.mxu0 0.0
  %1502 = vmatprep.subr.mxu0 0.0
  %1503 = vmatpush1.msra.mxu0 0.0
  %1504 = vmatprep.subr.mxu0 0.0
  %1505 = vmatpush1.msra.mxu0 0.0
  %1506 = vmatprep.subr.mxu0 0.0
  %1507 = vmatpush1.msra.mxu0 0.0
  %1508 = vmatprep.subr.mxu0 0.0
  %1509 = vmatpush1.msra.mxu0 0.0
  %1510 = vmatprep.subr.mxu0 0.0
  %1511 = vmatpush1.msra.mxu0 0.0
  %1512 = vmatprep.subr.mxu0 0.0
  %1513 = vmatpush1.msra.mxu0 %v1473
  %1514 = vmatprep.subr.mxu0 0.0
  %1515 = vmatpush2.msra.mxu0 0.0
  %1516 = vmatprep.subr.mxu0 0.0
  %1517 = vmatpush2.msra.mxu0 0.0
  %1518 = vmatprep.subr.mxu0 0.0
  %1519 = vmatpush2.msra.mxu0 0.0
  %1520 = vmatprep.subr.mxu0 0.0
  %1521 = vmatpush2.msra.mxu0 0.0
  %1522 = vmatprep.subr.mxu0 0.0
  %1523 = vmatpush2.msra.mxu0 0.0
  %1524 = vmatprep.subr.mxu0 0.0
  %1525 = vmatpush2.msra.mxu0 0.0
  %1526 = vmatprep.subr.mxu0 0.0
  %1527 = vmatpush2.msra.mxu0 0.0
  %1528 = vmatprep.subr.mxu0 0.0
  %1529 = vmatpush2.msra.mxu0 0.0
  %1530 = vmatprep.subr.mxu0 0.0
  %1531 = vmatpush2.msra.mxu0 0.0
  %1532 = vmatprep.subr.mxu0 0.0
  %1533 = vmatpush2.msra.mxu0 0.0
  %1534 = vmatprep.subr.mxu0 0.0
  %1535 = vmatpush2.msra.mxu0 0.0
  %1536 = vmatprep.subr.mxu0 0.0
  %1537 = vmatpush2.msra.mxu0 0.0
  %1538 = vmatprep.subr.mxu0 0.0
  %1539 = vmatpush2.msra.mxu0 0.0
  %1540 = vmatprep.subr.mxu0 0.0
  %1541 = vmatpush2.msra.mxu0 0.0
  %1542 = vmatprep.subr.mxu0 0.0
  %1543 = vmatpush2.msra.mxu0 0.0
  %1544 = vmatprep.subr.mxu0 0.0
  %1545 = vmatpush2.msra.mxu0 0.0
  %1546 = vmatprep.mubr.f32.mxu0 0.0
  %1547 = vmatmul.mubr.f32.gmra.mxu0 %v1477
  %v1548 = vpop.f32.mrf.mxu0
  %v1549 = vadd.f32 0.0, %v1548
  %v1550 = vpop.f32.mrf.mxu0
  %1551 = vmatprep.mubr.f32.mxu0 0.0
  %1552 = vmatmul.mubr.f32.gmra.mxu0 %v1480
  %v1553 = vpop.f32.mrf.mxu0
  %v1554 = vadd.f32 0.0, %v1553
  %v1555 = vpop.f32.mrf.mxu0
  %1556 = vdwg.mxu0
  %v1557 = vmul.f32 %v1549, %v128
  %v1558 = vmul.f32 %v1554, %v129
  %v1560 = vlaneseq
  %v1561 = vshrl.u32 %v1560, 7
  %v1562 = vsub.s32 0, %v1561
  %v1563 = vrot.slane %v1070, %v1562
  %v1565 = vadd.f32 %v1557, %v1563
  %v1566 = vadd.f32 %v1558, %v1563
  %1567 = vst.msk [vmem:[#allocation2] sm:$0xff] %vm94, %v1565
  %1568 = vst.msk [vmem:[#allocation2 + $0x8] sm:$0xff] %vm94, %v1566
  %1569 = vset.pattern.permute.xlu0 1
  %1570 = vperm.xlu0 %1569, %v1233
  %v1571 = vpop.permute.xlu0 %1570
  %1573 = vset.pattern.permute.xlu0 1
  %1574 = vperm.xlu0 %1573, %v1238
  %v1575 = vpop.permute.xlu0 %1574
  %v1577 = vlaneseq
  %v1578 = vshrl.u32 %v1577, 7
  %v1579 = vsub.s32 1, %v1578
  %v1580 = vrot.slane %v1314, %v1579
  %v1581 = vadd.f32 %v1571, %v1580
  %v1582 = vadd.f32 %v1575, %v1580
  %v1583 = vmax.f32 %v1581, 0.0
  %v1584 = vmax.f32 %v1582, 0.0
  %v1585 = vsel %vm92, %v1583, -1e+30
  %v1586 = vsel %vm93, %v1584, -1e+30
  %v1587 = vsel %vm94, %v1585, -inf
  %v1588 = vsel %vm94, %v1586, -inf
  %v1589 = vmax.f32 %v1587, %v1588
  %v1590 = vrot.slane %v1589, 4
  %v1591 = vmax.f32 %v1589, %v1590
  %v1592 = vrot.slane %v1591, 2
  %v1593 = vmax.f32 %v1591, %v1592
  %v1594 = vrot.slane %v1593, 1
  %v1595 = vmax.f32 %v1593, %v1594
  %v1596 = vsub.f32 %v1585, %v1595
  %v1597 = vsub.f32 %v1586, %v1595
  %v1598 = vmul.f32 %v1596, 1.442695
  %v1599 = vpow.pop %v1598
  %v1600 = vmul.f32 %v1597, 1.442695
  %v1601 = vpow.pop %v1600
  %v1602 = vsel %vm92, %v1599, 0.0
  %v1603 = vsel %vm93, %v1601, 0.0
  %v1604 = vsel %vm94, %v1602, 0.0
  %v1605 = vsel %vm94, %v1603, 0.0
  %v1606 = vadd.f32 %v1604, %v1605
  %v1607 = vrot.slane %v1606, 4
  %v1608 = vadd.f32 %v1606, %v1607
  %v1609 = vrot.slane %v1608, 2
  %v1610 = vadd.f32 %v1608, %v1609
  %v1611 = vrot.slane %v1610, 1
  %v1612 = vadd.f32 %v1610, %v1611
  %vm1613 = vcmp.gt.f32.partialorder %v1612, 0.0
  %v1614 = vrcp.pop %v1612
  %v1615 = vmul.f32 1.0, %v1614
  %v1616 = vsel %vm1613, %v1615, 0.0
  %v1617 = vmul.f32 %v1602, %v1616
  %v1618 = vmul.f32 %v1603, %v1616
  %v1619 = vmul.f32 %v1617, %v107
  %v1620 = vmul.f32 %v1618, %v107
  %1621 = vxpose.xlu0.b32.start [1/16] %v1619, 128
  %1622 = vxpose.xlu0.b32.cont [2/16] %v1620, 128
  %1623 = vxpose.xlu0.b32.cont [3/16] 0.0, 128
  %1624 = vxpose.xlu0.b32.cont [4/16] 0.0, 128
  %1625 = vxpose.xlu0.b32.cont [5/16] 0.0, 128
  %1626 = vxpose.xlu0.b32.cont [6/16] 0.0, 128
  %1627 = vxpose.xlu0.b32.cont [7/16] 0.0, 128
  %1628 = vxpose.xlu0.b32.cont [8/16] 0.0, 128
  %1629 = vxpose.xlu0.b32.cont [9/16] 0.0, 128
  %1630 = vxpose.xlu0.b32.cont [10/16] 0.0, 128
  %1631 = vxpose.xlu0.b32.cont [11/16] 0.0, 128
  %1632 = vxpose.xlu0.b32.cont [12/16] 0.0, 128
  %1633 = vxpose.xlu0.b32.cont [13/16] 0.0, 128
  %1634 = vxpose.xlu0.b32.cont [14/16] 0.0, 128
  %1635 = vxpose.xlu0.b32.cont [15/16] 0.0, 128
  %1636 = vxpose.xlu0.b32.end [16/16] 0.0, 128
  %v1637 = vpop.trf.xlu0
  %v1638 = vpop.trf.xlu0
  %v1639 = vpop.trf.xlu0
  %v1640 = vpop.trf.xlu0
  %v1641 = vpop.trf.xlu0
  %v1642 = vpop.trf.xlu0
  %v1643 = vpop.trf.xlu0
  %v1644 = vpop.trf.xlu0
  %v1645 = vpop.trf.xlu0
  %v1646 = vpop.trf.xlu0
  %v1647 = vpop.trf.xlu0
  %v1648 = vpop.trf.xlu0
  %v1649 = vpop.trf.xlu0
  %v1650 = vpop.trf.xlu0
  %v1651 = vpop.trf.xlu0
  %v1652 = vpop.trf.xlu0
  %1653 = vrot.lane.b32.xlu0 %v1147, 120
  %v1654 = vpop.permute.xlu0 %1653
  %1655 = vrot.lane.b32.xlu0 %v1152, 120
  %v1656 = vpop.permute.xlu0 %1655
  %v1660 = vsel %vm313, %v1637, 0
  %1662 = vmatprep.subr.mxu0 0.0
  %1663 = vmatpush1.msra.mxu0 0.0
  %1664 = vmatprep.subr.mxu0 0.0
  %1665 = vmatpush1.msra.mxu0 0.0
  %1666 = vmatprep.subr.mxu0 0.0
  %1667 = vmatpush1.msra.mxu0 0.0
  %1668 = vmatprep.subr.mxu0 0.0
  %1669 = vmatpush1.msra.mxu0 0.0
  %1670 = vmatprep.subr.mxu0 0.0
  %1671 = vmatpush1.msra.mxu0 0.0
  %1672 = vmatprep.subr.mxu0 0.0
  %1673 = vmatpush1.msra.mxu0 0.0
  %1674 = vmatprep.subr.mxu0 0.0
  %1675 = vmatpush1.msra.mxu0 0.0
  %1676 = vmatprep.subr.mxu0 0.0
  %1677 = vmatpush1.msra.mxu0 0.0
  %1678 = vmatprep.subr.mxu0 0.0
  %1679 = vmatpush1.msra.mxu0 0.0
  %1680 = vmatprep.subr.mxu0 0.0
  %1681 = vmatpush1.msra.mxu0 0.0
  %1682 = vmatprep.subr.mxu0 0.0
  %1683 = vmatpush1.msra.mxu0 0.0
  %1684 = vmatprep.subr.mxu0 0.0
  %1685 = vmatpush1.msra.mxu0 0.0
  %1686 = vmatprep.subr.mxu0 0.0
  %1687 = vmatpush1.msra.mxu0 0.0
  %1688 = vmatprep.subr.mxu0 0.0
  %1689 = vmatpush1.msra.mxu0 0.0
  %1690 = vmatprep.subr.mxu0 0.0
  %1691 = vmatpush1.msra.mxu0 %v1656
  %1692 = vmatprep.subr.mxu0 0.0
  %1693 = vmatpush1.msra.mxu0 %v1654
  %1694 = vmatprep.subr.mxu0 0.0
  %1695 = vmatpush2.msra.mxu0 0.0
  %1696 = vmatprep.subr.mxu0 0.0
  %1697 = vmatpush2.msra.mxu0 0.0
  %1698 = vmatprep.subr.mxu0 0.0
  %1699 = vmatpush2.msra.mxu0 0.0
  %1700 = vmatprep.subr.mxu0 0.0
  %1701 = vmatpush2.msra.mxu0 0.0
  %1702 = vmatprep.subr.mxu0 0.0
  %1703 = vmatpush2.msra.mxu0 0.0
  %1704 = vmatprep.subr.mxu0 0.0
  %1705 = vmatpush2.msra.mxu0 0.0
  %1706 = vmatprep.subr.mxu0 0.0
  %1707 = vmatpush2.msra.mxu0 0.0
  %1708 = vmatprep.subr.mxu0 0.0
  %1709 = vmatpush2.msra.mxu0 0.0
  %1710 = vmatprep.subr.mxu0 0.0
  %1711 = vmatpush2.msra.mxu0 0.0
  %1712 = vmatprep.subr.mxu0 0.0
  %1713 = vmatpush2.msra.mxu0 0.0
  %1714 = vmatprep.subr.mxu0 0.0
  %1715 = vmatpush2.msra.mxu0 0.0
  %1716 = vmatprep.subr.mxu0 0.0
  %1717 = vmatpush2.msra.mxu0 0.0
  %1718 = vmatprep.subr.mxu0 0.0
  %1719 = vmatpush2.msra.mxu0 0.0
  %1720 = vmatprep.subr.mxu0 0.0
  %1721 = vmatpush2.msra.mxu0 0.0
  %1722 = vmatprep.subr.mxu0 0.0
  %1723 = vmatpush2.msra.mxu0 0.0
  %1724 = vmatprep.subr.mxu0 0.0
  %1725 = vmatpush2.msra.mxu0 0.0
  %1726 = vmatprep.mubr.f32.mxu0 0.0
  %1727 = vmatmul.mubr.f32.gmra.mxu0 %v1660
  %v1728 = vpop.f32.mrf.mxu0
  %v1729 = vadd.f32 0.0, %v1728
  %v1730 = vpop.f32.mrf.mxu0
  %1731 = vdwg.mxu0
  %v1733 = vsel %vm94, %v1617, 0
  %v1736 = vsel %vm94, %v1618, 0
  %1738 = vmatprep.subr.mxu0 0.0
  %1739 = vmatpush1.msra.mxu0 0.0
  %1740 = vmatprep.subr.mxu0 0.0
  %1741 = vmatpush1.msra.mxu0 0.0
  %1742 = vmatprep.subr.mxu0 0.0
  %1743 = vmatpush1.msra.mxu0 0.0
  %1744 = vmatprep.subr.mxu0 0.0
  %1745 = vmatpush1.msra.mxu0 0.0
  %1746 = vmatprep.subr.mxu0 0.0
  %1747 = vmatpush1.msra.mxu0 0.0
  %1748 = vmatprep.subr.mxu0 0.0
  %1749 = vmatpush1.msra.mxu0 0.0
  %1750 = vmatprep.subr.mxu0 0.0
  %1751 = vmatpush1.msra.mxu0 0.0
  %1752 = vmatprep.subr.mxu0 0.0
  %1753 = vmatpush1.msra.mxu0 0.0
  %1754 = vmatprep.subr.mxu0 0.0
  %1755 = vmatpush1.msra.mxu0 0.0
  %1756 = vmatprep.subr.mxu0 0.0
  %1757 = vmatpush1.msra.mxu0 0.0
  %1758 = vmatprep.subr.mxu0 0.0
  %1759 = vmatpush1.msra.mxu0 0.0
  %1760 = vmatprep.subr.mxu0 0.0
  %1761 = vmatpush1.msra.mxu0 0.0
  %1762 = vmatprep.subr.mxu0 0.0
  %1763 = vmatpush1.msra.mxu0 0.0
  %1764 = vmatprep.subr.mxu0 0.0
  %1765 = vmatpush1.msra.mxu0 0.0
  %1766 = vmatprep.subr.mxu0 0.0
  %1767 = vmatpush1.msra.mxu0 0.0
  %1768 = vmatprep.subr.mxu0 0.0
  %1769 = vmatpush1.msra.mxu0 %v1729
  %1770 = vmatprep.subr.mxu0 0.0
  %1771 = vmatpush2.msra.mxu0 0.0
  %1772 = vmatprep.subr.mxu0 0.0
  %1773 = vmatpush2.msra.mxu0 0.0
  %1774 = vmatprep.subr.mxu0 0.0
  %1775 = vmatpush2.msra.mxu0 0.0
  %1776 = vmatprep.subr.mxu0 0.0
  %1777 = vmatpush2.msra.mxu0 0.0
  %1778 = vmatprep.subr.mxu0 0.0
  %1779 = vmatpush2.msra.mxu0 0.0
  %1780 = vmatprep.subr.mxu0 0.0
  %1781 = vmatpush2.msra.mxu0 0.0
  %1782 = vmatprep.subr.mxu0 0.0
  %1783 = vmatpush2.msra.mxu0 0.0
  %1784 = vmatprep.subr.mxu0 0.0
  %1785 = vmatpush2.msra.mxu0 0.0
  %1786 = vmatprep.subr.mxu0 0.0
  %1787 = vmatpush2.msra.mxu0 0.0
  %1788 = vmatprep.subr.mxu0 0.0
  %1789 = vmatpush2.msra.mxu0 0.0
  %1790 = vmatprep.subr.mxu0 0.0
  %1791 = vmatpush2.msra.mxu0 0.0
  %1792 = vmatprep.subr.mxu0 0.0
  %1793 = vmatpush2.msra.mxu0 0.0
  %1794 = vmatprep.subr.mxu0 0.0
  %1795 = vmatpush2.msra.mxu0 0.0
  %1796 = vmatprep.subr.mxu0 0.0
  %1797 = vmatpush2.msra.mxu0 0.0
  %1798 = vmatprep.subr.mxu0 0.0
  %1799 = vmatpush2.msra.mxu0 0.0
  %1800 = vmatprep.subr.mxu0 0.0
  %1801 = vmatpush2.msra.mxu0 0.0
  %1802 = vmatprep.mubr.f32.mxu0 0.0
  %1803 = vmatmul.mubr.f32.gmra.mxu0 %v1733
  %v1804 = vpop.f32.mrf.mxu0
  %v1805 = vadd.f32 0.0, %v1804
  %v1806 = vpop.f32.mrf.mxu0
  %1807 = vmatprep.mubr.f32.mxu0 0.0
  %1808 = vmatmul.mubr.f32.gmra.mxu0 %v1736
  %v1809 = vpop.f32.mrf.mxu0
  %v1810 = vadd.f32 0.0, %v1809
  %v1811 = vpop.f32.mrf.mxu0
  %1812 = vdwg.mxu0
  %v1813 = vmul.f32 %v1805, %v128
  %v1814 = vmul.f32 %v1810, %v129
  %1815 = vrot.lane.b32.xlu0 %v1563, 120
  %v1816 = vpop.permute.xlu0 %1815
  %v1818 = vadd.f32 %v1813, %v1816
  %v1819 = vadd.f32 %v1814, %v1816
  %1822 = vrot.lane.b32.xlu0 %v1818, 8
  %v1823 = vpop.permute.xlu0 %1822
  %1824 = vrot.lane.b32.xlu0 %v1819, 8
  %v1825 = vpop.permute.xlu0 %1824
  %1828 = vst.msk [vmem:[#allocation2] sm:$0xff] %vm982, %v1823
  %1829 = vst.msk [vmem:[#allocation2 + $0x8] sm:$0xff] %vm982, %v1825
  %v1830 = vld [vmem:[#allocation2] sm:$0xff]
  %v1831 = vld [vmem:[#allocation2 + $0x8] sm:$0xff]
  %v1832 = vld [vmem:[%s16] sm:$0xff]
  %v1833 = vld [vmem:[%s16 + $0x8] sm:$0xff]
  %v1834 = vld [vmem:[%s17] sm:$0x1]
  %v1836 = vlaneseq
  %v1837 = vshrl.u32 %v1836, 7
  %v1838 = vsub.s32 0, %v1837
  %v1839 = vrot.slane %v1834, %v1838
  %1841 = vmatprep.subr.mxu0 0.0
  %1842 = vmatpush1.msra.mxu0 0.0
  %1843 = vmatprep.subr.mxu0 0.0
  %1844 = vmatpush1.msra.mxu0 0.0
  %1845 = vmatprep.subr.mxu0 0.0
  %1846 = vmatpush1.msra.mxu0 0.0
  %1847 = vmatprep.subr.mxu0 0.0
  %1848 = vmatpush1.msra.mxu0 0.0
  %1849 = vmatprep.subr.mxu0 0.0
  %1850 = vmatpush1.msra.mxu0 0.0
  %1851 = vmatprep.subr.mxu0 0.0
  %1852 = vmatpush1.msra.mxu0 0.0
  %1853 = vmatprep.subr.mxu0 0.0
  %1854 = vmatpush1.msra.mxu0 0.0
  %1855 = vmatprep.subr.mxu0 0.0
  %1856 = vmatpush1.msra.mxu0 0.0
  %1857 = vmatprep.subr.mxu0 0.0
  %1858 = vmatpush1.msra.mxu0 0.0
  %1859 = vmatprep.subr.mxu0 0.0
  %1860 = vmatpush1.msra.mxu0 0.0
  %1861 = vmatprep.subr.mxu0 0.0
  %1862 = vmatpush1.msra.mxu0 0.0
  %1863 = vmatprep.subr.mxu0 0.0
  %1864 = vmatpush1.msra.mxu0 0.0
  %1865 = vmatprep.subr.mxu0 0.0
  %1866 = vmatpush1.msra.mxu0 0.0
  %1867 = vmatprep.subr.mxu0 0.0
  %1868 = vmatpush1.msra.mxu0 0.0
  %1869 = vmatprep.subr.mxu0 0.0
  %1870 = vmatpush1.msra.mxu0 %v1833
  %1871 = vmatprep.subr.mxu0 0.0
  %1872 = vmatpush1.msra.mxu0 %v1832
  %1873 = vmatprep.subr.mxu0 0.0
  %1874 = vmatpush2.msra.mxu0 0.0
  %1875 = vmatprep.subr.mxu0 0.0
  %1876 = vmatpush2.msra.mxu0 0.0
  %1877 = vmatprep.subr.mxu0 0.0
  %1878 = vmatpush2.msra.mxu0 0.0
  %1879 = vmatprep.subr.mxu0 0.0
  %1880 = vmatpush2.msra.mxu0 0.0
  %1881 = vmatprep.subr.mxu0 0.0
  %1882 = vmatpush2.msra.mxu0 0.0
  %1883 = vmatprep.subr.mxu0 0.0
  %1884 = vmatpush2.msra.mxu0 0.0
  %1885 = vmatprep.subr.mxu0 0.0
  %1886 = vmatpush2.msra.mxu0 0.0
  %1887 = vmatprep.subr.mxu0 0.0
  %1888 = vmatpush2.msra.mxu0 0.0
  %1889 = vmatprep.subr.mxu0 0.0
  %1890 = vmatpush2.msra.mxu0 0.0
  %1891 = vmatprep.subr.mxu0 0.0
  %1892 = vmatpush2.msra.mxu0 0.0
  %1893 = vmatprep.subr.mxu0 0.0
  %1894 = vmatpush2.msra.mxu0 0.0
  %1895 = vmatprep.subr.mxu0 0.0
  %1896 = vmatpush2.msra.mxu0 0.0
  %1897 = vmatprep.subr.mxu0 0.0
  %1898 = vmatpush2.msra.mxu0 0.0
  %1899 = vmatprep.subr.mxu0 0.0
  %1900 = vmatpush2.msra.mxu0 0.0
  %1901 = vmatprep.subr.mxu0 0.0
  %1902 = vmatpush2.msra.mxu0 0.0
  %1903 = vmatprep.subr.mxu0 0.0
  %1904 = vmatpush2.msra.mxu0 0.0
  %1905 = vmatprep.mubr.f32.mxu0 0.0
  %1906 = vmatmul.mubr.f32.gmra.mxu0 %v1078
  %v1907 = vpop.f32.mrf.mxu0
  %v1908 = vadd.f32 %v1839, %v1907
  %v1909 = vpop.f32.mrf.mxu0
  %1910 = vdwg.mxu0
  %v1911 = vld [vmem:[%s18] sm:$0xff]
  %v1912 = vld [vmem:[%s18 + $0x8] sm:$0xff]
  %v1913 = vld [vmem:[%s19] sm:$0xff]
  %v1914 = vld [vmem:[%s19 + $0x8] sm:$0xff]
  %v1915 = vld [vmem:[%s20] sm:$0x3]
  %v1916 = vld [vmem:[%s21] sm:$0x1]
  %v1918 = vsel %vm313, %v1830, 0
  %v1921 = vsel %vm313, %v1831, 0
  %v1924 = vsel %vm313, %v1908, 0
  %1926 = vmatprep.subr.mxu0 0.0
  %1927 = vmatpush1.msra.mxu0 0.0
  %1928 = vmatprep.subr.mxu0 0.0
  %1929 = vmatpush1.msra.mxu0 0.0
  %1930 = vmatprep.subr.mxu0 0.0
  %1931 = vmatpush1.msra.mxu0 0.0
  %1932 = vmatprep.subr.mxu0 0.0
  %1933 = vmatpush1.msra.mxu0 0.0
  %1934 = vmatprep.subr.mxu0 0.0
  %1935 = vmatpush1.msra.mxu0 0.0
  %1936 = vmatprep.subr.mxu0 0.0
  %1937 = vmatpush1.msra.mxu0 0.0
  %1938 = vmatprep.subr.mxu0 0.0
  %1939 = vmatpush1.msra.mxu0 0.0
  %1940 = vmatprep.subr.mxu0 0.0
  %1941 = vmatpush1.msra.mxu0 0.0
  %1942 = vmatprep.subr.mxu0 0.0
  %1943 = vmatpush1.msra.mxu0 0.0
  %1944 = vmatprep.subr.mxu0 0.0
  %1945 = vmatpush1.msra.mxu0 0.0
  %1946 = vmatprep.subr.mxu0 0.0
  %1947 = vmatpush1.msra.mxu0 0.0
  %1948 = vmatprep.subr.mxu0 0.0
  %1949 = vmatpush1.msra.mxu0 0.0
  %1950 = vmatprep.subr.mxu0 0.0
  %1951 = vmatpush1.msra.mxu0 0.0
  %1952 = vmatprep.subr.mxu0 0.0
  %1953 = vmatpush1.msra.mxu0 0.0
  %1954 = vmatprep.subr.mxu0 0.0
  %1955 = vmatpush1.msra.mxu0 %v1912
  %1956 = vmatprep.subr.mxu0 0.0
  %1957 = vmatpush1.msra.mxu0 %v1911
  %1958 = vmatprep.subr.mxu0 0.0
  %1959 = vmatpush2.msra.mxu0 0.0
  %1960 = vmatprep.subr.mxu0 0.0
  %1961 = vmatpush2.msra.mxu0 0.0
  %1962 = vmatprep.subr.mxu0 0.0
  %1963 = vmatpush2.msra.mxu0 0.0
  %1964 = vmatprep.subr.mxu0 0.0
  %1965 = vmatpush2.msra.mxu0 0.0
  %1966 = vmatprep.subr.mxu0 0.0
  %1967 = vmatpush2.msra.mxu0 0.0
  %1968 = vmatprep.subr.mxu0 0.0
  %1969 = vmatpush2.msra.mxu0 0.0
  %1970 = vmatprep.subr.mxu0 0.0
  %1971 = vmatpush2.msra.mxu0 0.0
  %1972 = vmatprep.subr.mxu0 0.0
  %1973 = vmatpush2.msra.mxu0 0.0
  %1974 = vmatprep.subr.mxu0 0.0
  %1975 = vmatpush2.msra.mxu0 0.0
  %1976 = vmatprep.subr.mxu0 0.0
  %1977 = vmatpush2.msra.mxu0 0.0
  %1978 = vmatprep.subr.mxu0 0.0
  %1979 = vmatpush2.msra.mxu0 0.0
  %1980 = vmatprep.subr.mxu0 0.0
  %1981 = vmatpush2.msra.mxu0 0.0
  %1982 = vmatprep.subr.mxu0 0.0
  %1983 = vmatpush2.msra.mxu0 0.0
  %1984 = vmatprep.subr.mxu0 0.0
  %1985 = vmatpush2.msra.mxu0 0.0
  %1986 = vmatprep.subr.mxu0 0.0
  %1987 = vmatpush2.msra.mxu0 0.0
  %1988 = vmatprep.subr.mxu0 0.0
  %1989 = vmatpush2.msra.mxu0 0.0
  %1990 = vmatprep.mubr.f32.mxu0 0.0
  %1991 = vmatmul.mubr.f32.gmra.mxu0 %v1918
  %v1992 = vpop.f32.mrf.mxu0
  %v1993 = vadd.f32 0.0, %v1992
  %v1994 = vpop.f32.mrf.mxu0
  %1995 = vmatprep.mubr.f32.mxu0 0.0
  %1996 = vmatmul.mubr.f32.gmra.mxu0 %v1921
  %v1997 = vpop.f32.mrf.mxu0
  %v1998 = vadd.f32 0.0, %v1997
  %v1999 = vpop.f32.mrf.mxu0
  %2000 = vmatprep.mubr.f32.mxu0 0.0
  %2001 = vmatmul.mubr.f32.gmra.mxu0 %v1924
  %v2002 = vpop.f32.mrf.mxu0
  %v2003 = vadd.f32 0.0, %v2002
  %v2004 = vpop.f32.mrf.mxu0
  %2005 = vdwg.mxu0
  %v2007 = vsel %vm313, %v1993, 0
  %v2010 = vsel %vm313, %v1998, 0
  %2012 = vmatprep.subr.mxu0 0.0
  %2013 = vmatpush1.msra.mxu0 0.0
  %2014 = vmatprep.subr.mxu0 0.0
  %2015 = vmatpush1.msra.mxu0 0.0
  %2016 = vmatprep.subr.mxu0 0.0
  %2017 = vmatpush1.msra.mxu0 0.0
  %2018 = vmatprep.subr.mxu0 0.0
  %2019 = vmatpush1.msra.mxu0 0.0
  %2020 = vmatprep.subr.mxu0 0.0
  %2021 = vmatpush1.msra.mxu0 0.0
  %2022 = vmatprep.subr.mxu0 0.0
  %2023 = vmatpush1.msra.mxu0 0.0
  %2024 = vmatprep.subr.mxu0 0.0
  %2025 = vmatpush1.msra.mxu0 0.0
  %2026 = vmatprep.subr.mxu0 0.0
  %2027 = vmatpush1.msra.mxu0 0.0
  %2028 = vmatprep.subr.mxu0 0.0
  %2029 = vmatpush1.msra.mxu0 0.0
  %2030 = vmatprep.subr.mxu0 0.0
  %2031 = vmatpush1.msra.mxu0 0.0
  %2032 = vmatprep.subr.mxu0 0.0
  %2033 = vmatpush1.msra.mxu0 0.0
  %2034 = vmatprep.subr.mxu0 0.0
  %2035 = vmatpush1.msra.mxu0 0.0
  %2036 = vmatprep.subr.mxu0 0.0
  %2037 = vmatpush1.msra.mxu0 0.0
  %2038 = vmatprep.subr.mxu0 0.0
  %2039 = vmatpush1.msra.mxu0 0.0
  %2040 = vmatprep.subr.mxu0 0.0
  %2041 = vmatpush1.msra.mxu0 %v1914
  %2042 = vmatprep.subr.mxu0 0.0
  %2043 = vmatpush1.msra.mxu0 %v1913
  %2044 = vmatprep.subr.mxu0 0.0
  %2045 = vmatpush2.msra.mxu0 0.0
  %2046 = vmatprep.subr.mxu0 0.0
  %2047 = vmatpush2.msra.mxu0 0.0
  %2048 = vmatprep.subr.mxu0 0.0
  %2049 = vmatpush2.msra.mxu0 0.0
  %2050 = vmatprep.subr.mxu0 0.0
  %2051 = vmatpush2.msra.mxu0 0.0
  %2052 = vmatprep.subr.mxu0 0.0
  %2053 = vmatpush2.msra.mxu0 0.0
  %2054 = vmatprep.subr.mxu0 0.0
  %2055 = vmatpush2.msra.mxu0 0.0
  %2056 = vmatprep.subr.mxu0 0.0
  %2057 = vmatpush2.msra.mxu0 0.0
  %2058 = vmatprep.subr.mxu0 0.0
  %2059 = vmatpush2.msra.mxu0 0.0
  %2060 = vmatprep.subr.mxu0 0.0
  %2061 = vmatpush2.msra.mxu0 0.0
  %2062 = vmatprep.subr.mxu0 0.0
  %2063 = vmatpush2.msra.mxu0 0.0
  %2064 = vmatprep.subr.mxu0 0.0
  %2065 = vmatpush2.msra.mxu0 0.0
  %2066 = vmatprep.subr.mxu0 0.0
  %2067 = vmatpush2.msra.mxu0 0.0
  %2068 = vmatprep.subr.mxu0 0.0
  %2069 = vmatpush2.msra.mxu0 0.0
  %2070 = vmatprep.subr.mxu0 0.0
  %2071 = vmatpush2.msra.mxu0 0.0
  %2072 = vmatprep.subr.mxu0 0.0
  %2073 = vmatpush2.msra.mxu0 0.0
  %2074 = vmatprep.subr.mxu0 0.0
  %2075 = vmatpush2.msra.mxu0 0.0
  %2076 = vmatprep.mubr.f32.mxu0 0.0
  %2077 = vmatmul.mubr.f32.gmra.mxu0 %v2007
  %v2078 = vpop.f32.mrf.mxu0
  %v2079 = vadd.f32 0.0, %v2078
  %v2080 = vpop.f32.mrf.mxu0
  %2081 = vmatprep.mubr.f32.mxu0 0.0
  %2082 = vmatmul.mubr.f32.gmra.mxu0 %v2010
  %v2083 = vpop.f32.mrf.mxu0
  %v2084 = vadd.f32 0.0, %v2083
  %v2085 = vpop.f32.mrf.mxu0
  %2086 = vdwg.mxu0
  %v2088 = vsel %vm313, %v1915, 0
  %v2091 = vsel %vm313, %v2003, 0
  %2093 = vmatprep.subr.mxu0 0.0
  %2094 = vmatpush1.xpose.msra.mxu0 0.0
  %2095 = vmatprep.subr.mxu0 0.0
  %2096 = vmatpush1.xpose.msra.mxu0 0.0
  %2097 = vmatprep.subr.mxu0 0.0
  %2098 = vmatpush1.xpose.msra.mxu0 0.0
  %2099 = vmatprep.subr.mxu0 0.0
  %2100 = vmatpush1.xpose.msra.mxu0 0.0
  %2101 = vmatprep.subr.mxu0 0.0
  %2102 = vmatpush1.xpose.msra.mxu0 0.0
  %2103 = vmatprep.subr.mxu0 0.0
  %2104 = vmatpush1.xpose.msra.mxu0 0.0
  %2105 = vmatprep.subr.mxu0 0.0
  %2106 = vmatpush1.xpose.msra.mxu0 0.0
  %2107 = vmatprep.subr.mxu0 0.0
  %2108 = vmatpush1.xpose.msra.mxu0 0.0
  %2109 = vmatprep.subr.mxu0 0.0
  %2110 = vmatpush1.xpose.msra.mxu0 0.0
  %2111 = vmatprep.subr.mxu0 0.0
  %2112 = vmatpush1.xpose.msra.mxu0 0.0
  %2113 = vmatprep.subr.mxu0 0.0
  %2114 = vmatpush1.xpose.msra.mxu0 0.0
  %2115 = vmatprep.subr.mxu0 0.0
  %2116 = vmatpush1.xpose.msra.mxu0 0.0
  %2117 = vmatprep.subr.mxu0 0.0
  %2118 = vmatpush1.xpose.msra.mxu0 0.0
  %2119 = vmatprep.subr.mxu0 0.0
  %2120 = vmatpush1.xpose.msra.mxu0 0.0
  %2121 = vmatprep.subr.mxu0 0.0
  %2122 = vmatpush1.xpose.msra.mxu0 0.0
  %2123 = vmatprep.subr.mxu0 0.0
  %2124 = vmatpush1.xpose.msra.mxu0 %v2091
  %2125 = vmatprep.subr.mxu0 0.0
  %2126 = vmatpush2.xpose.msra.mxu0 0.0
  %2127 = vmatprep.subr.mxu0 0.0
  %2128 = vmatpush2.xpose.msra.mxu0 0.0
  %2129 = vmatprep.subr.mxu0 0.0
  %2130 = vmatpush2.xpose.msra.mxu0 0.0
  %2131 = vmatprep.subr.mxu0 0.0
  %2132 = vmatpush2.xpose.msra.mxu0 0.0
  %2133 = vmatprep.subr.mxu0 0.0
  %2134 = vmatpush2.xpose.msra.mxu0 0.0
  %2135 = vmatprep.subr.mxu0 0.0
  %2136 = vmatpush2.xpose.msra.mxu0 0.0
  %2137 = vmatprep.subr.mxu0 0.0
  %2138 = vmatpush2.xpose.msra.mxu0 0.0
  %2139 = vmatprep.subr.mxu0 0.0
  %2140 = vmatpush2.xpose.msra.mxu0 0.0
  %2141 = vmatprep.subr.mxu0 0.0
  %2142 = vmatpush2.xpose.msra.mxu0 0.0
  %2143 = vmatprep.subr.mxu0 0.0
  %2144 = vmatpush2.xpose.msra.mxu0 0.0
  %2145 = vmatprep.subr.mxu0 0.0
  %2146 = vmatpush2.xpose.msra.mxu0 0.0
  %2147 = vmatprep.subr.mxu0 0.0
  %2148 = vmatpush2.xpose.msra.mxu0 0.0
  %2149 = vmatprep.subr.mxu0 0.0
  %2150 = vmatpush2.xpose.msra.mxu0 0.0
  %2151 = vmatprep.subr.mxu0 0.0
  %2152 = vmatpush2.xpose.msra.mxu0 0.0
  %2153 = vmatprep.subr.mxu0 0.0
  %2154 = vmatpush2.xpose.msra.mxu0 0.0
  %2155 = vmatprep.subr.mxu0 0.0
  %2156 = vmatpush2.xpose.msra.mxu0 0.0
  %2157 = vmatprep.mubr.f32.mxu0 0.0
  %2158 = vmatmul.mubr.f32.gmra.mxu0 %v2088
  %v2159 = vpop.f32.mrf.mxu0
  %v2160 = vadd.f32 0.0, %v2159
  %v2161 = vpop.f32.mrf.mxu0
  %2162 = vdwg.mxu0
  %2164 = vset.pattern.permute.xlu0 0
  %2165 = vperm.xlu0 %2164, %v2079
  %v2166 = vpop.permute.xlu0 %2165
  %2169 = vset.pattern.permute.xlu0 0
  %2170 = vperm.xlu0 %2169, %v2084
  %v2171 = vpop.permute.xlu0 %2170
  %v2173 = vlaneseq
  %v2174 = vshrl.u32 %v2173, 7
  %v2175 = vsub.s32 0, %v2174
  %v2176 = vrot.slane %v2160, %v2175
  %v2177 = vadd.f32 %v2166, %v2176
  %v2178 = vadd.f32 %v2171, %v2176
  %v2179 = vmax.f32 %v2177, 0.0
  %v2180 = vmax.f32 %v2178, 0.0
  %v2181 = vsel %vm92, %v2179, -1e+30
  %v2182 = vsel %vm93, %v2180, -1e+30
  %v2183 = vsel %vm94, %v2181, -inf
  %v2184 = vsel %vm94, %v2182, -inf
  %v2185 = vmax.f32 %v2183, %v2184
  %v2186 = vrot.slane %v2185, 4
  %v2187 = vmax.f32 %v2185, %v2186
  %v2188 = vrot.slane %v2187, 2
  %v2189 = vmax.f32 %v2187, %v2188
  %v2190 = vrot.slane %v2189, 1
  %v2191 = vmax.f32 %v2189, %v2190
  %v2192 = vsub.f32 %v2181, %v2191
  %v2193 = vsub.f32 %v2182, %v2191
  %v2194 = vmul.f32 %v2192, 1.442695
  %v2195 = vpow.pop %v2194
  %v2196 = vmul.f32 %v2193, 1.442695
  %v2197 = vpow.pop %v2196
  %v2198 = vsel %vm92, %v2195, 0.0
  %v2199 = vsel %vm93, %v2197, 0.0
  %v2200 = vsel %vm94, %v2198, 0.0
  %v2201 = vsel %vm94, %v2199, 0.0
  %v2202 = vadd.f32 %v2200, %v2201
  %v2203 = vrot.slane %v2202, 4
  %v2204 = vadd.f32 %v2202, %v2203
  %v2205 = vrot.slane %v2204, 2
  %v2206 = vadd.f32 %v2204, %v2205
  %v2207 = vrot.slane %v2206, 1
  %v2208 = vadd.f32 %v2206, %v2207
  %vm2209 = vcmp.gt.f32.partialorder %v2208, 0.0
  %v2210 = vrcp.pop %v2208
  %v2211 = vmul.f32 1.0, %v2210
  %v2212 = vsel %vm2209, %v2211, 0.0
  %v2213 = vmul.f32 %v2198, %v2212
  %v2214 = vmul.f32 %v2199, %v2212
  %v2215 = vmul.f32 %v2213, %v107
  %v2216 = vmul.f32 %v2214, %v107
  %2217 = vxpose.xlu0.b32.start [1/16] %v2215, 128
  %2218 = vxpose.xlu0.b32.cont [2/16] %v2216, 128
  %2219 = vxpose.xlu0.b32.cont [3/16] 0.0, 128
  %2220 = vxpose.xlu0.b32.cont [4/16] 0.0, 128
  %2221 = vxpose.xlu0.b32.cont [5/16] 0.0, 128
  %2222 = vxpose.xlu0.b32.cont [6/16] 0.0, 128
  %2223 = vxpose.xlu0.b32.cont [7/16] 0.0, 128
  %2224 = vxpose.xlu0.b32.cont [8/16] 0.0, 128
  %2225 = vxpose.xlu0.b32.cont [9/16] 0.0, 128
  %2226 = vxpose.xlu0.b32.cont [10/16] 0.0, 128
  %2227 = vxpose.xlu0.b32.cont [11/16] 0.0, 128
  %2228 = vxpose.xlu0.b32.cont [12/16] 0.0, 128
  %2229 = vxpose.xlu0.b32.cont [13/16] 0.0, 128
  %2230 = vxpose.xlu0.b32.cont [14/16] 0.0, 128
  %2231 = vxpose.xlu0.b32.cont [15/16] 0.0, 128
  %2232 = vxpose.xlu0.b32.end [16/16] 0.0, 128
  %v2233 = vpop.trf.xlu0
  %v2234 = vpop.trf.xlu0
  %v2235 = vpop.trf.xlu0
  %v2236 = vpop.trf.xlu0
  %v2237 = vpop.trf.xlu0
  %v2238 = vpop.trf.xlu0
  %v2239 = vpop.trf.xlu0
  %v2240 = vpop.trf.xlu0
  %v2241 = vpop.trf.xlu0
  %v2242 = vpop.trf.xlu0
  %v2243 = vpop.trf.xlu0
  %v2244 = vpop.trf.xlu0
  %v2245 = vpop.trf.xlu0
  %v2246 = vpop.trf.xlu0
  %v2247 = vpop.trf.xlu0
  %v2248 = vpop.trf.xlu0
  %v2250 = vsel %vm313, %v2233, 0
  %2252 = vmatprep.subr.mxu0 0.0
  %2253 = vmatpush1.msra.mxu0 0.0
  %2254 = vmatprep.subr.mxu0 0.0
  %2255 = vmatpush1.msra.mxu0 0.0
  %2256 = vmatprep.subr.mxu0 0.0
  %2257 = vmatpush1.msra.mxu0 0.0
  %2258 = vmatprep.subr.mxu0 0.0
  %2259 = vmatpush1.msra.mxu0 0.0
  %2260 = vmatprep.subr.mxu0 0.0
  %2261 = vmatpush1.msra.mxu0 0.0
  %2262 = vmatprep.subr.mxu0 0.0
  %2263 = vmatpush1.msra.mxu0 0.0
  %2264 = vmatprep.subr.mxu0 0.0
  %2265 = vmatpush1.msra.mxu0 0.0
  %2266 = vmatprep.subr.mxu0 0.0
  %2267 = vmatpush1.msra.mxu0 0.0
  %2268 = vmatprep.subr.mxu0 0.0
  %2269 = vmatpush1.msra.mxu0 0.0
  %2270 = vmatprep.subr.mxu0 0.0
  %2271 = vmatpush1.msra.mxu0 0.0
  %2272 = vmatprep.subr.mxu0 0.0
  %2273 = vmatpush1.msra.mxu0 0.0
  %2274 = vmatprep.subr.mxu0 0.0
  %2275 = vmatpush1.msra.mxu0 0.0
  %2276 = vmatprep.subr.mxu0 0.0
  %2277 = vmatpush1.msra.mxu0 0.0
  %2278 = vmatprep.subr.mxu0 0.0
  %2279 = vmatpush1.msra.mxu0 0.0
  %2280 = vmatprep.subr.mxu0 0.0
  %2281 = vmatpush1.msra.mxu0 %v1998
  %2282 = vmatprep.subr.mxu0 0.0
  %2283 = vmatpush1.msra.mxu0 %v1993
  %2284 = vmatprep.subr.mxu0 0.0
  %2285 = vmatpush2.msra.mxu0 0.0
  %2286 = vmatprep.subr.mxu0 0.0
  %2287 = vmatpush2.msra.mxu0 0.0
  %2288 = vmatprep.subr.mxu0 0.0
  %2289 = vmatpush2.msra.mxu0 0.0
  %2290 = vmatprep.subr.mxu0 0.0
  %2291 = vmatpush2.msra.mxu0 0.0
  %2292 = vmatprep.subr.mxu0 0.0
  %2293 = vmatpush2.msra.mxu0 0.0
  %2294 = vmatprep.subr.mxu0 0.0
  %2295 = vmatpush2.msra.mxu0 0.0
  %2296 = vmatprep.subr.mxu0 0.0
  %2297 = vmatpush2.msra.mxu0 0.0
  %2298 = vmatprep.subr.mxu0 0.0
  %2299 = vmatpush2.msra.mxu0 0.0
  %2300 = vmatprep.subr.mxu0 0.0
  %2301 = vmatpush2.msra.mxu0 0.0
  %2302 = vmatprep.subr.mxu0 0.0
  %2303 = vmatpush2.msra.mxu0 0.0
  %2304 = vmatprep.subr.mxu0 0.0
  %2305 = vmatpush2.msra.mxu0 0.0
  %2306 = vmatprep.subr.mxu0 0.0
  %2307 = vmatpush2.msra.mxu0 0.0
  %2308 = vmatprep.subr.mxu0 0.0
  %2309 = vmatpush2.msra.mxu0 0.0
  %2310 = vmatprep.subr.mxu0 0.0
  %2311 = vmatpush2.msra.mxu0 0.0
  %2312 = vmatprep.subr.mxu0 0.0
  %2313 = vmatpush2.msra.mxu0 0.0
  %2314 = vmatprep.subr.mxu0 0.0
  %2315 = vmatpush2.msra.mxu0 0.0
  %2316 = vmatprep.mubr.f32.mxu0 0.0
  %2317 = vmatmul.mubr.f32.gmra.mxu0 %v2250
  %v2318 = vpop.f32.mrf.mxu0
  %v2319 = vadd.f32 0.0, %v2318
  %v2320 = vpop.f32.mrf.mxu0
  %2321 = vdwg.mxu0
  %v2323 = vsel %vm94, %v2213, 0
  %v2326 = vsel %vm94, %v2214, 0
  %2328 = vmatprep.subr.mxu0 0.0
  %2329 = vmatpush1.msra.mxu0 0.0
  %2330 = vmatprep.subr.mxu0 0.0
  %2331 = vmatpush1.msra.mxu0 0.0
  %2332 = vmatprep.subr.mxu0 0.0
  %2333 = vmatpush1.msra.mxu0 0.0
  %2334 = vmatprep.subr.mxu0 0.0
  %2335 = vmatpush1.msra.mxu0 0.0
  %2336 = vmatprep.subr.mxu0 0.0
  %2337 = vmatpush1.msra.mxu0 0.0
  %2338 = vmatprep.subr.mxu0 0.0
  %2339 = vmatpush1.msra.mxu0 0.0
  %2340 = vmatprep.subr.mxu0 0.0
  %2341 = vmatpush1.msra.mxu0 0.0
  %2342 = vmatprep.subr.mxu0 0.0
  %2343 = vmatpush1.msra.mxu0 0.0
  %2344 = vmatprep.subr.mxu0 0.0
  %2345 = vmatpush1.msra.mxu0 0.0
  %2346 = vmatprep.subr.mxu0 0.0
  %2347 = vmatpush1.msra.mxu0 0.0
  %2348 = vmatprep.subr.mxu0 0.0
  %2349 = vmatpush1.msra.mxu0 0.0
  %2350 = vmatprep.subr.mxu0 0.0
  %2351 = vmatpush1.msra.mxu0 0.0
  %2352 = vmatprep.subr.mxu0 0.0
  %2353 = vmatpush1.msra.mxu0 0.0
  %2354 = vmatprep.subr.mxu0 0.0
  %2355 = vmatpush1.msra.mxu0 0.0
  %2356 = vmatprep.subr.mxu0 0.0
  %2357 = vmatpush1.msra.mxu0 0.0
  %2358 = vmatprep.subr.mxu0 0.0
  %2359 = vmatpush1.msra.mxu0 %v2319
  %2360 = vmatprep.subr.mxu0 0.0
  %2361 = vmatpush2.msra.mxu0 0.0
  %2362 = vmatprep.subr.mxu0 0.0
  %2363 = vmatpush2.msra.mxu0 0.0
  %2364 = vmatprep.subr.mxu0 0.0
  %2365 = vmatpush2.msra.mxu0 0.0
  %2366 = vmatprep.subr.mxu0 0.0
  %2367 = vmatpush2.msra.mxu0 0.0
  %2368 = vmatprep.subr.mxu0 0.0
  %2369 = vmatpush2.msra.mxu0 0.0
  %2370 = vmatprep.subr.mxu0 0.0
  %2371 = vmatpush2.msra.mxu0 0.0
  %2372 = vmatprep.subr.mxu0 0.0
  %2373 = vmatpush2.msra.mxu0 0.0
  %2374 = vmatprep.subr.mxu0 0.0
  %2375 = vmatpush2.msra.mxu0 0.0
  %2376 = vmatprep.subr.mxu0 0.0
  %2377 = vmatpush2.msra.mxu0 0.0
  %2378 = vmatprep.subr.mxu0 0.0
  %2379 = vmatpush2.msra.mxu0 0.0
  %2380 = vmatprep.subr.mxu0 0.0
  %2381 = vmatpush2.msra.mxu0 0.0
  %2382 = vmatprep.subr.mxu0 0.0
  %2383 = vmatpush2.msra.mxu0 0.0
  %2384 = vmatprep.subr.mxu0 0.0
  %2385 = vmatpush2.msra.mxu0 0.0
  %2386 = vmatprep.subr.mxu0 0.0
  %2387 = vmatpush2.msra.mxu0 0.0
  %2388 = vmatprep.subr.mxu0 0.0
  %2389 = vmatpush2.msra.mxu0 0.0
  %2390 = vmatprep.subr.mxu0 0.0
  %2391 = vmatpush2.msra.mxu0 0.0
  %2392 = vmatprep.mubr.f32.mxu0 0.0
  %2393 = vmatmul.mubr.f32.gmra.mxu0 %v2323
  %v2394 = vpop.f32.mrf.mxu0
  %v2395 = vadd.f32 0.0, %v2394
  %v2396 = vpop.f32.mrf.mxu0
  %2397 = vmatprep.mubr.f32.mxu0 0.0
  %2398 = vmatmul.mubr.f32.gmra.mxu0 %v2326
  %v2399 = vpop.f32.mrf.mxu0
  %v2400 = vadd.f32 0.0, %v2399
  %v2401 = vpop.f32.mrf.mxu0
  %2402 = vdwg.mxu0
  %v2403 = vmul.f32 %v2395, %v128
  %v2404 = vmul.f32 %v2400, %v129
  %v2406 = vlaneseq
  %v2407 = vshrl.u32 %v2406, 7
  %v2408 = vsub.s32 0, %v2407
  %v2409 = vrot.slane %v1916, %v2408
  %v2411 = vadd.f32 %v2403, %v2409
  %v2412 = vadd.f32 %v2404, %v2409
  %2413 = vst.msk [vmem:[#allocation2] sm:$0xff] %vm94, %v2411
  %2414 = vst.msk [vmem:[#allocation2 + $0x8] sm:$0xff] %vm94, %v2412
  %2415 = vset.pattern.permute.xlu0 1
  %2416 = vperm.xlu0 %2415, %v2079
  %v2417 = vpop.permute.xlu0 %2416
  %2419 = vset.pattern.permute.xlu0 1
  %2420 = vperm.xlu0 %2419, %v2084
  %v2421 = vpop.permute.xlu0 %2420
  %v2423 = vlaneseq
  %v2424 = vshrl.u32 %v2423, 7
  %v2425 = vsub.s32 1, %v2424
  %v2426 = vrot.slane %v2160, %v2425
  %v2427 = vadd.f32 %v2417, %v2426
  %v2428 = vadd.f32 %v2421, %v2426
  %v2429 = vmax.f32 %v2427, 0.0
  %v2430 = vmax.f32 %v2428, 0.0
  %v2431 = vsel %vm92, %v2429, -1e+30
  %v2432 = vsel %vm93, %v2430, -1e+30
  %v2433 = vsel %vm94, %v2431, -inf
  %v2434 = vsel %vm94, %v2432, -inf
  %v2435 = vmax.f32 %v2433, %v2434
  %v2436 = vrot.slane %v2435, 4
  %v2437 = vmax.f32 %v2435, %v2436
  %v2438 = vrot.slane %v2437, 2
  %v2439 = vmax.f32 %v2437, %v2438
  %v2440 = vrot.slane %v2439, 1
  %v2441 = vmax.f32 %v2439, %v2440
  %v2442 = vsub.f32 %v2431, %v2441
  %v2443 = vsub.f32 %v2432, %v2441
  %v2444 = vmul.f32 %v2442, 1.442695
  %v2445 = vpow.pop %v2444
  %v2446 = vmul.f32 %v2443, 1.442695
  %v2447 = vpow.pop %v2446
  %v2448 = vsel %vm92, %v2445, 0.0
  %v2449 = vsel %vm93, %v2447, 0.0
  %v2450 = vsel %vm94, %v2448, 0.0
  %v2451 = vsel %vm94, %v2449, 0.0
  %v2452 = vadd.f32 %v2450, %v2451
  %v2453 = vrot.slane %v2452, 4
  %v2454 = vadd.f32 %v2452, %v2453
  %v2455 = vrot.slane %v2454, 2
  %v2456 = vadd.f32 %v2454, %v2455
  %v2457 = vrot.slane %v2456, 1
  %v2458 = vadd.f32 %v2456, %v2457
  %vm2459 = vcmp.gt.f32.partialorder %v2458, 0.0
  %v2460 = vrcp.pop %v2458
  %v2461 = vmul.f32 1.0, %v2460
  %v2462 = vsel %vm2459, %v2461, 0.0
  %v2463 = vmul.f32 %v2448, %v2462
  %v2464 = vmul.f32 %v2449, %v2462
  %v2465 = vmul.f32 %v2463, %v107
  %v2466 = vmul.f32 %v2464, %v107
  %2467 = vxpose.xlu0.b32.start [1/16] %v2465, 128
  %2468 = vxpose.xlu0.b32.cont [2/16] %v2466, 128
  %2469 = vxpose.xlu0.b32.cont [3/16] 0.0, 128
  %2470 = vxpose.xlu0.b32.cont [4/16] 0.0, 128
  %2471 = vxpose.xlu0.b32.cont [5/16] 0.0, 128
  %2472 = vxpose.xlu0.b32.cont [6/16] 0.0, 128
  %2473 = vxpose.xlu0.b32.cont [7/16] 0.0, 128
  %2474 = vxpose.xlu0.b32.cont [8/16] 0.0, 128
  %2475 = vxpose.xlu0.b32.cont [9/16] 0.0, 128
  %2476 = vxpose.xlu0.b32.cont [10/16] 0.0, 128
  %2477 = vxpose.xlu0.b32.cont [11/16] 0.0, 128
  %2478 = vxpose.xlu0.b32.cont [12/16] 0.0, 128
  %2479 = vxpose.xlu0.b32.cont [13/16] 0.0, 128
  %2480 = vxpose.xlu0.b32.cont [14/16] 0.0, 128
  %2481 = vxpose.xlu0.b32.cont [15/16] 0.0, 128
  %2482 = vxpose.xlu0.b32.end [16/16] 0.0, 128
  %v2483 = vpop.trf.xlu0
  %v2484 = vpop.trf.xlu0
  %v2485 = vpop.trf.xlu0
  %v2486 = vpop.trf.xlu0
  %v2487 = vpop.trf.xlu0
  %v2488 = vpop.trf.xlu0
  %v2489 = vpop.trf.xlu0
  %v2490 = vpop.trf.xlu0
  %v2491 = vpop.trf.xlu0
  %v2492 = vpop.trf.xlu0
  %v2493 = vpop.trf.xlu0
  %v2494 = vpop.trf.xlu0
  %v2495 = vpop.trf.xlu0
  %v2496 = vpop.trf.xlu0
  %v2497 = vpop.trf.xlu0
  %v2498 = vpop.trf.xlu0
  %2499 = vrot.lane.b32.xlu0 %v1993, 120
  %v2500 = vpop.permute.xlu0 %2499
  %2501 = vrot.lane.b32.xlu0 %v1998, 120
  %v2502 = vpop.permute.xlu0 %2501
  %v2506 = vsel %vm313, %v2483, 0
  %2508 = vmatprep.subr.mxu0 0.0
  %2509 = vmatpush1.msra.mxu0 0.0
  %2510 = vmatprep.subr.mxu0 0.0
  %2511 = vmatpush1.msra.mxu0 0.0
  %2512 = vmatprep.subr.mxu0 0.0
  %2513 = vmatpush1.msra.mxu0 0.0
  %2514 = vmatprep.subr.mxu0 0.0
  %2515 = vmatpush1.msra.mxu0 0.0
  %2516 = vmatprep.subr.mxu0 0.0
  %2517 = vmatpush1.msra.mxu0 0.0
  %2518 = vmatprep.subr.mxu0 0.0
  %2519 = vmatpush1.msra.mxu0 0.0
  %2520 = vmatprep.subr.mxu0 0.0
  %2521 = vmatpush1.msra.mxu0 0.0
  %2522 = vmatprep.subr.mxu0 0.0
  %2523 = vmatpush1.msra.mxu0 0.0
  %2524 = vmatprep.subr.mxu0 0.0
  %2525 = vmatpush1.msra.mxu0 0.0
  %2526 = vmatprep.subr.mxu0 0.0
  %2527 = vmatpush1.msra.mxu0 0.0
  %2528 = vmatprep.subr.mxu0 0.0
  %2529 = vmatpush1.msra.mxu0 0.0
  %2530 = vmatprep.subr.mxu0 0.0
  %2531 = vmatpush1.msra.mxu0 0.0
  %2532 = vmatprep.subr.mxu0 0.0
  %2533 = vmatpush1.msra.mxu0 0.0
  %2534 = vmatprep.subr.mxu0 0.0
  %2535 = vmatpush1.msra.mxu0 0.0
  %2536 = vmatprep.subr.mxu0 0.0
  %2537 = vmatpush1.msra.mxu0 %v2502
  %2538 = vmatprep.subr.mxu0 0.0
  %2539 = vmatpush1.msra.mxu0 %v2500
  %2540 = vmatprep.subr.mxu0 0.0
  %2541 = vmatpush2.msra.mxu0 0.0
  %2542 = vmatprep.subr.mxu0 0.0
  %2543 = vmatpush2.msra.mxu0 0.0
  %2544 = vmatprep.subr.mxu0 0.0
  %2545 = vmatpush2.msra.mxu0 0.0
  %2546 = vmatprep.subr.mxu0 0.0
  %2547 = vmatpush2.msra.mxu0 0.0
  %2548 = vmatprep.subr.mxu0 0.0
  %2549 = vmatpush2.msra.mxu0 0.0
  %2550 = vmatprep.subr.mxu0 0.0
  %2551 = vmatpush2.msra.mxu0 0.0
  %2552 = vmatprep.subr.mxu0 0.0
  %2553 = vmatpush2.msra.mxu0 0.0
  %2554 = vmatprep.subr.mxu0 0.0
  %2555 = vmatpush2.msra.mxu0 0.0
  %2556 = vmatprep.subr.mxu0 0.0
  %2557 = vmatpush2.msra.mxu0 0.0
  %2558 = vmatprep.subr.mxu0 0.0
  %2559 = vmatpush2.msra.mxu0 0.0
  %2560 = vmatprep.subr.mxu0 0.0
  %2561 = vmatpush2.msra.mxu0 0.0
  %2562 = vmatprep.subr.mxu0 0.0
  %2563 = vmatpush2.msra.mxu0 0.0
  %2564 = vmatprep.subr.mxu0 0.0
  %2565 = vmatpush2.msra.mxu0 0.0
  %2566 = vmatprep.subr.mxu0 0.0
  %2567 = vmatpush2.msra.mxu0 0.0
  %2568 = vmatprep.subr.mxu0 0.0
  %2569 = vmatpush2.msra.mxu0 0.0
  %2570 = vmatprep.subr.mxu0 0.0
  %2571 = vmatpush2.msra.mxu0 0.0
  %2572 = vmatprep.mubr.f32.mxu0 0.0
  %2573 = vmatmul.mubr.f32.gmra.mxu0 %v2506
  %v2574 = vpop.f32.mrf.mxu0
  %v2575 = vadd.f32 0.0, %v2574
  %v2576 = vpop.f32.mrf.mxu0
  %2577 = vdwg.mxu0
  %v2579 = vsel %vm94, %v2463, 0
  %v2582 = vsel %vm94, %v2464, 0
  %2584 = vmatprep.subr.mxu0 0.0
  %2585 = vmatpush1.msra.mxu0 0.0
  %2586 = vmatprep.subr.mxu0 0.0
  %2587 = vmatpush1.msra.mxu0 0.0
  %2588 = vmatprep.subr.mxu0 0.0
  %2589 = vmatpush1.msra.mxu0 0.0
  %2590 = vmatprep.subr.mxu0 0.0
  %2591 = vmatpush1.msra.mxu0 0.0
  %2592 = vmatprep.subr.mxu0 0.0
  %2593 = vmatpush1.msra.mxu0 0.0
  %2594 = vmatprep.subr.mxu0 0.0
  %2595 = vmatpush1.msra.mxu0 0.0
  %2596 = vmatprep.subr.mxu0 0.0
  %2597 = vmatpush1.msra.mxu0 0.0
  %2598 = vmatprep.subr.mxu0 0.0
  %2599 = vmatpush1.msra.mxu0 0.0
  %2600 = vmatprep.subr.mxu0 0.0
  %2601 = vmatpush1.msra.mxu0 0.0
  %2602 = vmatprep.subr.mxu0 0.0
  %2603 = vmatpush1.msra.mxu0 0.0
  %2604 = vmatprep.subr.mxu0 0.0
  %2605 = vmatpush1.msra.mxu0 0.0
  %2606 = vmatprep.subr.mxu0 0.0
  %2607 = vmatpush1.msra.mxu0 0.0
  %2608 = vmatprep.subr.mxu0 0.0
  %2609 = vmatpush1.msra.mxu0 0.0
  %2610 = vmatprep.subr.mxu0 0.0
  %2611 = vmatpush1.msra.mxu0 0.0
  %2612 = vmatprep.subr.mxu0 0.0
  %2613 = vmatpush1.msra.mxu0 0.0
  %2614 = vmatprep.subr.mxu0 0.0
  %2615 = vmatpush1.msra.mxu0 %v2575
  %2616 = vmatprep.subr.mxu0 0.0
  %2617 = vmatpush2.msra.mxu0 0.0
  %2618 = vmatprep.subr.mxu0 0.0
  %2619 = vmatpush2.msra.mxu0 0.0
  %2620 = vmatprep.subr.mxu0 0.0
  %2621 = vmatpush2.msra.mxu0 0.0
  %2622 = vmatprep.subr.mxu0 0.0
  %2623 = vmatpush2.msra.mxu0 0.0
  %2624 = vmatprep.subr.mxu0 0.0
  %2625 = vmatpush2.msra.mxu0 0.0
  %2626 = vmatprep.subr.mxu0 0.0
  %2627 = vmatpush2.msra.mxu0 0.0
  %2628 = vmatprep.subr.mxu0 0.0
  %2629 = vmatpush2.msra.mxu0 0.0
  %2630 = vmatprep.subr.mxu0 0.0
  %2631 = vmatpush2.msra.mxu0 0.0
  %2632 = vmatprep.subr.mxu0 0.0
  %2633 = vmatpush2.msra.mxu0 0.0
  %2634 = vmatprep.subr.mxu0 0.0
  %2635 = vmatpush2.msra.mxu0 0.0
  %2636 = vmatprep.subr.mxu0 0.0
  %2637 = vmatpush2.msra.mxu0 0.0
  %2638 = vmatprep.subr.mxu0 0.0
  %2639 = vmatpush2.msra.mxu0 0.0
  %2640 = vmatprep.subr.mxu0 0.0
  %2641 = vmatpush2.msra.mxu0 0.0
  %2642 = vmatprep.subr.mxu0 0.0
  %2643 = vmatpush2.msra.mxu0 0.0
  %2644 = vmatprep.subr.mxu0 0.0
  %2645 = vmatpush2.msra.mxu0 0.0
  %2646 = vmatprep.subr.mxu0 0.0
  %2647 = vmatpush2.msra.mxu0 0.0
  %2648 = vmatprep.mubr.f32.mxu0 0.0
  %2649 = vmatmul.mubr.f32.gmra.mxu0 %v2579
  %v2650 = vpop.f32.mrf.mxu0
  %v2651 = vadd.f32 0.0, %v2650
  %v2652 = vpop.f32.mrf.mxu0
  %2653 = vmatprep.mubr.f32.mxu0 0.0
  %2654 = vmatmul.mubr.f32.gmra.mxu0 %v2582
  %v2655 = vpop.f32.mrf.mxu0
  %v2656 = vadd.f32 0.0, %v2655
  %v2657 = vpop.f32.mrf.mxu0
  %2658 = vdwg.mxu0
  %v2659 = vmul.f32 %v2651, %v128
  %v2660 = vmul.f32 %v2656, %v129
  %2661 = vrot.lane.b32.xlu0 %v2409, 120
  %v2662 = vpop.permute.xlu0 %2661
  %v2664 = vadd.f32 %v2659, %v2662
  %v2665 = vadd.f32 %v2660, %v2662
  %2668 = vrot.lane.b32.xlu0 %v2664, 8
  %v2669 = vpop.permute.xlu0 %2668
  %2670 = vrot.lane.b32.xlu0 %v2665, 8
  %v2671 = vpop.permute.xlu0 %2670
  %2674 = vst.msk [vmem:[#allocation2] sm:$0xff] %vm982, %v2669
  %2675 = vst.msk [vmem:[#allocation2 + $0x8] sm:$0xff] %vm982, %v2671
  %v2676 = vld [vmem:[#allocation2] sm:$0xff]
  %v2677 = vld [vmem:[#allocation2 + $0x8] sm:$0xff]
  %v2678 = vld [vmem:[%s22] sm:$0xff]
  %v2679 = vld [vmem:[%s22 + $0x8] sm:$0xff]
  %v2680 = vld [vmem:[%s23] sm:$0x1]
  %v2682 = vlaneseq
  %v2683 = vshrl.u32 %v2682, 7
  %v2684 = vsub.s32 0, %v2683
  %v2685 = vrot.slane %v2680, %v2684
  %v2688 = vsel %vm313, %v2676, 0
  %v2691 = vsel %vm313, %v2677, 0
  %2693 = vmatprep.subr.mxu0 0.0
  %2694 = vmatpush1.msra.mxu0 0.0
  %2695 = vmatprep.subr.mxu0 0.0
  %2696 = vmatpush1.msra.mxu0 0.0
  %2697 = vmatprep.subr.mxu0 0.0
  %2698 = vmatpush1.msra.mxu0 0.0
  %2699 = vmatprep.subr.mxu0 0.0
  %2700 = vmatpush1.msra.mxu0 0.0
  %2701 = vmatprep.subr.mxu0 0.0
  %2702 = vmatpush1.msra.mxu0 0.0
  %2703 = vmatprep.subr.mxu0 0.0
  %2704 = vmatpush1.msra.mxu0 0.0
  %2705 = vmatprep.subr.mxu0 0.0
  %2706 = vmatpush1.msra.mxu0 0.0
  %2707 = vmatprep.subr.mxu0 0.0
  %2708 = vmatpush1.msra.mxu0 0.0
  %2709 = vmatprep.subr.mxu0 0.0
  %2710 = vmatpush1.msra.mxu0 0.0
  %2711 = vmatprep.subr.mxu0 0.0
  %2712 = vmatpush1.msra.mxu0 0.0
  %2713 = vmatprep.subr.mxu0 0.0
  %2714 = vmatpush1.msra.mxu0 0.0
  %2715 = vmatprep.subr.mxu0 0.0
  %2716 = vmatpush1.msra.mxu0 0.0
  %2717 = vmatprep.subr.mxu0 0.0
  %2718 = vmatpush1.msra.mxu0 0.0
  %2719 = vmatprep.subr.mxu0 0.0
  %2720 = vmatpush1.msra.mxu0 0.0
  %2721 = vmatprep.subr.mxu0 0.0
  %2722 = vmatpush1.msra.mxu0 %v2679
  %2723 = vmatprep.subr.mxu0 0.0
  %2724 = vmatpush1.msra.mxu0 %v2678
  %2725 = vmatprep.subr.mxu0 0.0
  %2726 = vmatpush2.msra.mxu0 0.0
  %2727 = vmatprep.subr.mxu0 0.0
  %2728 = vmatpush2.msra.mxu0 0.0
  %2729 = vmatprep.subr.mxu0 0.0
  %2730 = vmatpush2.msra.mxu0 0.0
  %2731 = vmatprep.subr.mxu0 0.0
  %2732 = vmatpush2.msra.mxu0 0.0
  %2733 = vmatprep.subr.mxu0 0.0
  %2734 = vmatpush2.msra.mxu0 0.0
  %2735 = vmatprep.subr.mxu0 0.0
  %2736 = vmatpush2.msra.mxu0 0.0
  %2737 = vmatprep.subr.mxu0 0.0
  %2738 = vmatpush2.msra.mxu0 0.0
  %2739 = vmatprep.subr.mxu0 0.0
  %2740 = vmatpush2.msra.mxu0 0.0
  %2741 = vmatprep.subr.mxu0 0.0
  %2742 = vmatpush2.msra.mxu0 0.0
  %2743 = vmatprep.subr.mxu0 0.0
  %2744 = vmatpush2.msra.mxu0 0.0
  %2745 = vmatprep.subr.mxu0 0.0
  %2746 = vmatpush2.msra.mxu0 0.0
  %2747 = vmatprep.subr.mxu0 0.0
  %2748 = vmatpush2.msra.mxu0 0.0
  %2749 = vmatprep.subr.mxu0 0.0
  %2750 = vmatpush2.msra.mxu0 0.0
  %2751 = vmatprep.subr.mxu0 0.0
  %2752 = vmatpush2.msra.mxu0 0.0
  %2753 = vmatprep.subr.mxu0 0.0
  %2754 = vmatpush2.msra.mxu0 0.0
  %2755 = vmatprep.subr.mxu0 0.0
  %2756 = vmatpush2.msra.mxu0 0.0
  %2757 = vmatprep.mubr.f32.mxu0 0.0
  %2758 = vmatmul.mubr.f32.gmra.mxu0 %v2688
  %v2759 = vpop.f32.mrf.mxu0
  %v2760 = vadd.f32 %v2685, %v2759
  %v2761 = vpop.f32.mrf.mxu0
  %2762 = vmatprep.mubr.f32.mxu0 0.0
  %2763 = vmatmul.mubr.f32.gmra.mxu0 %v2691
  %v2764 = vpop.f32.mrf.mxu0
  %v2765 = vadd.f32 %v2685, %v2764
  %v2766 = vpop.f32.mrf.mxu0
  %2767 = vdwg.mxu0
  %v2768 = vmax.f32 %v2760, 0.0
  %v2769 = vmax.f32 %v2765, 0.0
  %v2770 = vld [vmem:[%s24] sm:$0xff]
  %v2771 = vld [vmem:[%s24 + $0x8] sm:$0xff]
  %v2772 = vld [vmem:[%s24 + $0x10] sm:$0xff]
  %v2773 = vld [vmem:[%s24 + $0x18] sm:$0xff]
  %v2774 = vld [vmem:[%s25] sm:$0x1]
  %v2776 = vlaneseq
  %v2777 = vshrl.u32 %v2776, 7
  %v2778 = vsub.s32 0, %v2777
  %v2779 = vrot.slane %v2774, %v2778
  %vm2781 = vcmask 261120
  %v2783 = vsel %vm2781, %v2768, 0
  %v2786 = vsel %vm2781, %v2769, 0
  %2788 = vmatprep.subr.mxu0 0.0
  %2789 = vmatpush1.msra.mxu0 0.0
  %2790 = vmatprep.subr.mxu0 0.0
  %2791 = vmatpush1.msra.mxu0 0.0
  %2792 = vmatprep.subr.mxu0 0.0
  %2793 = vmatpush1.msra.mxu0 0.0
  %2794 = vmatprep.subr.mxu0 0.0
  %2795 = vmatpush1.msra.mxu0 0.0
  %2796 = vmatprep.subr.mxu0 0.0
  %2797 = vmatpush1.msra.mxu0 0.0
  %2798 = vmatprep.subr.mxu0 0.0
  %2799 = vmatpush1.msra.mxu0 0.0
  %2800 = vmatprep.subr.mxu0 0.0
  %2801 = vmatpush1.msra.mxu0 0.0
  %2802 = vmatprep.subr.mxu0 0.0
  %2803 = vmatpush1.msra.mxu0 0.0
  %2804 = vmatprep.subr.mxu0 0.0
  %2805 = vmatpush1.msra.mxu0 0.0
  %2806 = vmatprep.subr.mxu0 0.0
  %2807 = vmatpush1.msra.mxu0 0.0
  %2808 = vmatprep.subr.mxu0 0.0
  %2809 = vmatpush1.msra.mxu0 0.0
  %2810 = vmatprep.subr.mxu0 0.0
  %2811 = vmatpush1.msra.mxu0 0.0
  %2812 = vmatprep.subr.mxu0 0.0
  %2813 = vmatpush1.msra.mxu0 %v2773
  %2814 = vmatprep.subr.mxu0 0.0
  %2815 = vmatpush1.msra.mxu0 %v2772
  %2816 = vmatprep.subr.mxu0 0.0
  %2817 = vmatpush1.msra.mxu0 %v2771
  %2818 = vmatprep.subr.mxu0 0.0
  %2819 = vmatpush1.msra.mxu0 %v2770
  %2820 = vmatprep.subr.mxu0 0.0
  %2821 = vmatpush2.msra.mxu0 0.0
  %2822 = vmatprep.subr.mxu0 0.0
  %2823 = vmatpush2.msra.mxu0 0.0
  %2824 = vmatprep.subr.mxu0 0.0
  %2825 = vmatpush2.msra.mxu0 0.0
  %2826 = vmatprep.subr.mxu0 0.0
  %2827 = vmatpush2.msra.mxu0 0.0
  %2828 = vmatprep.subr.mxu0 0.0
  %2829 = vmatpush2.msra.mxu0 0.0
  %2830 = vmatprep.subr.mxu0 0.0
  %2831 = vmatpush2.msra.mxu0 0.0
  %2832 = vmatprep.subr.mxu0 0.0
  %2833 = vmatpush2.msra.mxu0 0.0
  %2834 = vmatprep.subr.mxu0 0.0
  %2835 = vmatpush2.msra.mxu0 0.0
  %2836 = vmatprep.subr.mxu0 0.0
  %2837 = vmatpush2.msra.mxu0 0.0
  %2838 = vmatprep.subr.mxu0 0.0
  %2839 = vmatpush2.msra.mxu0 0.0
  %2840 = vmatprep.subr.mxu0 0.0
  %2841 = vmatpush2.msra.mxu0 0.0
  %2842 = vmatprep.subr.mxu0 0.0
  %2843 = vmatpush2.msra.mxu0 0.0
  %2844 = vmatprep.subr.mxu0 0.0
  %2845 = vmatpush2.msra.mxu0 0.0
  %2846 = vmatprep.subr.mxu0 0.0
  %2847 = vmatpush2.msra.mxu0 0.0
  %2848 = vmatprep.subr.mxu0 0.0
  %2849 = vmatpush2.msra.mxu0 0.0
  %2850 = vmatprep.subr.mxu0 0.0
  %2851 = vmatpush2.msra.mxu0 0.0
  %2852 = vmatprep.mubr.f32.mxu0 0.0
  %2853 = vmatmul.mubr.f32.gmra.mxu0 %v2783
  %v2854 = vpop.f32.mrf.mxu0
  %v2855 = vadd.f32 %v2779, %v2854
  %v2856 = vpop.f32.mrf.mxu0
  %2857 = vmatprep.mubr.f32.mxu0 0.0
  %2858 = vmatmul.mubr.f32.gmra.mxu0 %v2786
  %v2859 = vpop.f32.mrf.mxu0
  %v2860 = vadd.f32 %v2779, %v2859
  %v2861 = vpop.f32.mrf.mxu0
  %2862 = vdwg.mxu0
  %v2863 = vmax.f32 %v2855, 0.0
  %v2864 = vmax.f32 %v2860, 0.0
  %v2865 = vld [vmem:[%s26] sm:$0xff]
  %v2866 = vld [vmem:[%s26 + $0x8] sm:$0xff]
  %v2867 = vld [vmem:[%s27] sm:$0x1]
  %v2869 = vlaneseq
  %v2870 = vshrl.u32 %v2869, 7
  %v2871 = vsub.s32 0, %v2870
  %v2872 = vrot.slane %v2867, %v2871
  %v2875 = vsel %vm313, %v2863, 0
  %v2878 = vsel %vm313, %v2864, 0
  %2880 = vmatprep.subr.mxu0 0.0
  %2881 = vmatpush1.msra.mxu0 0.0
  %2882 = vmatprep.subr.mxu0 0.0
  %2883 = vmatpush1.msra.mxu0 0.0
  %2884 = vmatprep.subr.mxu0 0.0
  %2885 = vmatpush1.msra.mxu0 0.0
  %2886 = vmatprep.subr.mxu0 0.0
  %2887 = vmatpush1.msra.mxu0 0.0
  %2888 = vmatprep.subr.mxu0 0.0
  %2889 = vmatpush1.msra.mxu0 0.0
  %2890 = vmatprep.subr.mxu0 0.0
  %2891 = vmatpush1.msra.mxu0 0.0
  %2892 = vmatprep.subr.mxu0 0.0
  %2893 = vmatpush1.msra.mxu0 0.0
  %2894 = vmatprep.subr.mxu0 0.0
  %2895 = vmatpush1.msra.mxu0 0.0
  %2896 = vmatprep.subr.mxu0 0.0
  %2897 = vmatpush1.msra.mxu0 0.0
  %2898 = vmatprep.subr.mxu0 0.0
  %2899 = vmatpush1.msra.mxu0 0.0
  %2900 = vmatprep.subr.mxu0 0.0
  %2901 = vmatpush1.msra.mxu0 0.0
  %2902 = vmatprep.subr.mxu0 0.0
  %2903 = vmatpush1.msra.mxu0 0.0
  %2904 = vmatprep.subr.mxu0 0.0
  %2905 = vmatpush1.msra.mxu0 0.0
  %2906 = vmatprep.subr.mxu0 0.0
  %2907 = vmatpush1.msra.mxu0 0.0
  %2908 = vmatprep.subr.mxu0 0.0
  %2909 = vmatpush1.msra.mxu0 %v2866
  %2910 = vmatprep.subr.mxu0 0.0
  %2911 = vmatpush1.msra.mxu0 %v2865
  %2912 = vmatprep.subr.mxu0 0.0
  %2913 = vmatpush2.msra.mxu0 0.0
  %2914 = vmatprep.subr.mxu0 0.0
  %2915 = vmatpush2.msra.mxu0 0.0
  %2916 = vmatprep.subr.mxu0 0.0
  %2917 = vmatpush2.msra.mxu0 0.0
  %2918 = vmatprep.subr.mxu0 0.0
  %2919 = vmatpush2.msra.mxu0 0.0
  %2920 = vmatprep.subr.mxu0 0.0
  %2921 = vmatpush2.msra.mxu0 0.0
  %2922 = vmatprep.subr.mxu0 0.0
  %2923 = vmatpush2.msra.mxu0 0.0
  %2924 = vmatprep.subr.mxu0 0.0
  %2925 = vmatpush2.msra.mxu0 0.0
  %2926 = vmatprep.subr.mxu0 0.0
  %2927 = vmatpush2.msra.mxu0 0.0
  %2928 = vmatprep.subr.mxu0 0.0
  %2929 = vmatpush2.msra.mxu0 0.0
  %2930 = vmatprep.subr.mxu0 0.0
  %2931 = vmatpush2.msra.mxu0 0.0
  %2932 = vmatprep.subr.mxu0 0.0
  %2933 = vmatpush2.msra.mxu0 0.0
  %2934 = vmatprep.subr.mxu0 0.0
  %2935 = vmatpush2.msra.mxu0 0.0
  %2936 = vmatprep.subr.mxu0 0.0
  %2937 = vmatpush2.msra.mxu0 0.0
  %2938 = vmatprep.subr.mxu0 0.0
  %2939 = vmatpush2.msra.mxu0 0.0
  %2940 = vmatprep.subr.mxu0 0.0
  %2941 = vmatpush2.msra.mxu0 0.0
  %2942 = vmatprep.subr.mxu0 0.0
  %2943 = vmatpush2.msra.mxu0 0.0
  %2944 = vmatprep.mubr.f32.mxu0 0.0
  %2945 = vmatmul.mubr.f32.gmra.mxu0 %v2875
  %v2946 = vpop.f32.mrf.mxu0
  %v2947 = vadd.f32 %v2872, %v2946
  %v2948 = vpop.f32.mrf.mxu0
  %2949 = vmatprep.mubr.f32.mxu0 0.0
  %2950 = vmatmul.mubr.f32.gmra.mxu0 %v2878
  %v2951 = vpop.f32.mrf.mxu0
  %v2952 = vadd.f32 %v2872, %v2951
  %v2953 = vpop.f32.mrf.mxu0
  %2954 = vdwg.mxu0
  %vm2955 = vcmask 31744
  %2956 = vst.msk [vmem:[%s28] sm:$0xff] %vm2955, %v2947
  %2957 = vst.msk [vmem:[%s28 + $0x8] sm:$0xff] %vm2955, %v2952
  // Predicated region
  $region114: #{tpu_custom_call.1} parent=0 // pred_check
    _
  $region115: #{tpu_custom_call.1} parent=0 // pred_check_branch
    %2959 = sbr.rel (0) target = $region117
  $region116: #{tpu_custom_call.1} parent=0 // pred_region
    _
  $region117: #{tpu_custom_call.1} parent=0 // pred_fallthru
    _
  // Predicated region
  $region118: #{tpu_custom_call.1} parent=0 // pred_check
    _
  $region119: #{tpu_custom_call.1} parent=0 // pred_check_branch
    %2961 = sbr.rel (0) target = $region121
  $region120: #{tpu_custom_call.1} parent=0 // pred_region
    _
  $region121: #{tpu_custom_call.1} parent=0 // pred_fallthru
    _

</llo_original>
